<compile_context>
chip_gen: v6e
topology: v6e:2x2x1
jax: 0.10.0
libtpu: 0.0.40
codegen_flags: <defaults>
</compile_context>

<pallas_src>
import jax
import jax.numpy as jnp
from jax import lax
from jax.experimental import pallas as pl
from jax.experimental.pallas import tpu as pltpu

# ------------------------- configuration (small) -------------------------
EMBED_DIMS = 128          # embed_dims
F3D = 32                  # feature_3d_dim
NUM_DEPTH = 64            # num_depth
MIN_DEPTH = 0.25
MAX_DEPTH = 10.0
FFN_DIM = 1024            # feedforward_channels (hard-coded in the module)
PROB_DIM = 2 * F3D        # MLP input / hidden dim (with_feature_3d=True)
FUSION_DIM = EMBED_DIMS + 2 * F3D
AC_DIM = 8                # packed per-token [ax, ay, az, cx, cy, cz, 0, 0]
TM = 256                  # token tile (raise to 512 on v6e/v7x for large T)
LN_EPS = 1e-5


# ------------------------------ Pallas kernel -----------------------------
def fusion_kernel(f2d_ref, f3d_ref, ac_ref,
                  wp1_ref, wm2_ref, pbias_ref, wpts4_ref,
                  wf1_ref, bf1_ref, wf2o_ref, wo_ref, misc_ref,
                  out_ref, prob_ref):
    f2d = f2d_ref[...]                                   # (TM, C)   f32
    f3d = f3d_ref[...]                                   # (TM, F3D) f32
    x2f = jnp.concatenate([f2d, f3d], axis=-1)           # (TM, C+F3D) f32
    x2 = x2f.astype(jnp.bfloat16)                        # bf16 MXU operands

    # --- depth probability branch (pre-fc folded into MLP1; bf16 ops, f32 acc) ---
    pb = pbias_ref[...]                                  # (2, PBW) f32
    h = (jnp.dot(x2, wp1_ref[...], preferred_element_type=jnp.float32)
         + pb[0:1, :PROB_DIM])
    h = jnp.maximum(h, 0.0).astype(jnp.bfloat16)
    logits = (jnp.dot(h, wm2_ref[...], preferred_element_type=jnp.float32)
              + pb[1:2, :NUM_DEPTH])
    m = jnp.max(logits, axis=-1, keepdims=True)
    e = jnp.exp(logits - m)
    inv_denom = pl.reciprocal(jnp.sum(e, axis=-1, keepdims=True))  # exact
    prob = e * inv_denom                                 # (TM, D) f32
    prob_ref[...] = prob

    # --- pts branch: p(d) = a*d + c, sum_d prob*p = a*sd + c  (rows of prob sum to 1)
    didx = lax.broadcasted_iota(jnp.int32, (1, NUM_DEPTH), 1).astype(jnp.float32)
    depth = MIN_DEPTH + didx * ((MAX_DEPTH - MIN_DEPTH) / (NUM_DEPTH - 1))
    sd = jnp.sum(prob * depth, axis=-1, keepdims=True)   # (TM, 1) expected depth
    ac = ac_ref[...]                                     # (TM, 8) f32
    w4 = wpts4_ref[...]                                  # (4, F3D): rows of w_pts + b_pts
    px = ac[:, 0:1] * sd + ac[:, 3:4]
    py = ac[:, 1:2] * sd + ac[:, 4:5]
    pz = ac[:, 2:3] * sd + ac[:, 5:6]
    pts_feature = (px * w4[0:1, :] + py * w4[1:2, :]
                   + pz * w4[2:3, :] + w4[3:4, :])        # (TM, F3D) f32

    # --- fusion FFN on x = [f2d | f3d | pts_feature] (single-K matmuls, bf16 ops) ---
    x_b = jnp.concatenate([x2f, pts_feature], axis=-1).astype(jnp.bfloat16)  # (TM, 192)
    hidden = (jnp.dot(x_b, wf1_ref[...], preferred_element_type=jnp.float32)
              + bf1_ref[...])
    hidden = jnp.maximum(hidden, 0.0).astype(jnp.bfloat16)   # (TM, FFN_DIM)
    misc = misc_ref[...]                                  # (3, C): [b_out' | ln_g | ln_b]
    y = (jnp.dot(x_b, wo_ref[...], preferred_element_type=jnp.float32)
         + jnp.dot(hidden, wf2o_ref[...], preferred_element_type=jnp.float32)
         + misc[0:1, :]
         + f2d)                                            # residual, f32

    # LayerNorm (f32, rsqrt on EUP)
    mu = jnp.mean(y, axis=-1, keepdims=True)
    var = jnp.mean((y - mu) ** 2, axis=-1, keepdims=True)
    yn = (y - mu) * lax.rsqrt(var + LN_EPS)
    out_ref[...] = yn * misc[1:2, :] + misc[2:3, :]


# --------------------- weight folding / packing (offline) ------------------
def prepare_kernel_params(params):
    (w_pre, b_pre, w_m1, b_m1, w_m2, b_m2, w_pts, b_pts,
     w_f1, b_f1, w_f2, b_f2, w_out, b_out, ln_g, ln_b) = params
    bf16 = lambda a: a.astype(jnp.bfloat16)

    # fold pts_prob_pre_fc into MLP layer 1, merge 2d/3d pieces into one weight
    wp2d = w_pre @ w_m1[:F3D]                              # (C, PROB_DIM)
    wp3d = w_m1[F3D:]                                      # (F3D, PROB_DIM)
    wp1 = bf16(jnp.concatenate([wp2d, wp3d], axis=0))      # (C+F3D, PROB_DIM)
    bp1 = b_pre @ w_m1[:F3D] + b_m1                        # (1, PROB_DIM)
    wm2 = bf16(w_m2)                                       # (PROB_DIM, NUM_DEPTH)
    pbw = max(PROB_DIM, NUM_DEPTH)
    pad_to = lambda a, w: jnp.pad(a, ((0, 0), (0, w - a.shape[1])))
    pbias = jnp.concatenate([pad_to(bp1, pbw), pad_to(b_m2, pbw)], axis=0)  # (2, pbw)

    # pts_fc weight + bias stacked
    wpts4 = jnp.concatenate([w_pts, b_pts], axis=0)        # (4, F3D) f32

    # fusion FFN + final Linear; fold fc2 through the final Linear:
    # (h@w_f2 + b_f2)@w_out = h@(w_f2@w_out) + b_f2@w_out
    wf1 = bf16(w_f1)                                       # (FUSION_DIM, FFN_DIM)
    wf2o = bf16(w_f2 @ w_out)                              # (FFN_DIM, C)
    wo = bf16(w_out)                                       # (FUSION_DIM, C)
    bout = b_f2 @ w_out + b_out                            # (1, C)
    misc = jnp.concatenate([bout, ln_g, ln_b], axis=0)     # (3, C)

    return (wp1, wm2, pbias, wpts4, wf1, b_f1, wf2o, wo, misc)


# ------------------------------ pallas wrapper ------------------------------
def fused_enhancer_pallas(f2d, f3d, ac, params, tm=TM):
    T, C = f2d.shape
    kparams = prepare_kernel_params(params)

    # pad tokens so TM can stay MXU-sized for any feature-pyramid shape
    Tpad = ((T + tm - 1) // tm) * tm
    pad = Tpad - T
    if pad:
        padrows = lambda a: jnp.pad(a, ((0, pad), (0, 0)))
        f2d, f3d, ac = map(padrows, (f2d, f3d, ac))
    grid = (Tpad // tm,)

    def full_spec(arr):
        n = arr.ndim
        return pl.BlockSpec(arr.shape, lambda i, n=n: (0,) * n)

    in_specs = [
        pl.BlockSpec((tm, C), lambda i: (i, 0)),
        pl.BlockSpec((tm, F3D), lambda i: (i, 0)),
        pl.BlockSpec((tm, AC_DIM), lambda i: (i, 0)),
    ] + [full_spec(p) for p in kparams]
    out_specs = [
        pl.BlockSpec((tm, C), lambda i: (i, 0)),
        pl.BlockSpec((tm, NUM_DEPTH), lambda i: (i, 0)),
    ]
    out_shape = (jax.ShapeDtypeStruct((Tpad, C), jnp.float32),
                 jax.ShapeDtypeStruct((Tpad, NUM_DEPTH), jnp.float32))

    out, prob = pl.pallas_call(
        fusion_kernel,
        grid_spec=pl.GridSpec(grid=grid, in_specs=in_specs, out_specs=out_specs),
        out_shape=out_shape,
        compiler_params=pltpu.CompilerParams(
            dimension_semantics=("parallel",),
            vmem_limit_bytes=32 * 1024 * 1024),
    )(f2d, f3d, ac, *kparams)
    return out[:T], prob[:T]


# ------------------------------- JAX glue ----------------------------------
def deformable_format(feature_maps):
    """list of (B, N, C, H, W) -> (B, N, sum(H*W), C), spatial_shapes."""
    feats, shapes = [], []
    for fm in feature_maps:
        B, N, C, H, W = fm.shape
        feats.append(fm.reshape(B, N, C, H * W))
        shapes.append((H, W))
    feats = jnp.concatenate(feats, axis=-1)
    feats = jnp.transpose(feats, (0, 1, 3, 2))
    return feats, shapes


def deformable_unformat(feat, spatial_shapes):
    """(B, N, L, C) -> list of (B, N, C, H, W)."""
    B, N, L, C = feat.shape
    out, start = [], 0
    for (h, w) in spatial_shapes:
        chunk = feat[:, :, start:start + h * w, :]
        out.append(jnp.transpose(chunk, (0, 1, 3, 2)).reshape(B, N, C, h, w))
        start += h * w
    return out


def _pixel_grid(spatial_shapes, image_wh):
    wh = image_wh.reshape(-1, 2)[0]
    uv = []
    for (h, w) in spatial_shapes:
        stride = wh[0] / w
        u = jnp.linspace(0.0, wh[0] - stride, w, dtype=jnp.float32)
        v = jnp.linspace(0.0, wh[1] - stride, h, dtype=jnp.float32)
        u = jnp.tile(u[None, :], (h, 1))
        v = jnp.tile(v[:, None], (1, w))
        uv.append(jnp.stack([u, v], axis=-1).reshape(h * w, 2))
    return jnp.concatenate(uv, axis=0)                      # (L, 2)


def get_pts_affine(spatial_shapes, image_wh, projection_mat):
    """Exact affine-in-depth form of get_pts: pts(d) = a*d + c.

    pts4(d) = [u*d, v*d, d, 1] and X = pts4 @ inv(proj)^T, so
      a = [u, v, 1] @ (inv(proj)^T)[:3, :3],  c = (inv(proj)^T)[3, :3].
    Returns a, c of shape (B, N, L, 3).
    """
    uv = _pixel_grid(spatial_shapes, image_wh)               # (L, 2)
    uv1 = jnp.concatenate([uv, jnp.ones((uv.shape[0], 1), jnp.float32)], axis=-1)
    M = jnp.swapaxes(jnp.linalg.inv(projection_mat), -1, -2)  # (B, N, 4, 4) = inv(proj)^T
    M3 = M[..., :3]                                           # (B, N, 4, 3)
    a = jnp.einsum('lk,bnkc->bnlc', uv1, M3[..., :3, :])      # (B, N, L, 3)
    c = jnp.broadcast_to(M3[..., 3:4, :], a.shape)            # (B, N, L, 3)
    return a, c


def get_pts_full(spatial_shapes, image_wh, projection_mat):
    """Original (solve-based) get_pts, used only for the f32 reference check."""
    pixels = _pixel_grid(spatial_shapes, image_wh)[:, None]               # (L, 1, 2)
    depths = jnp.linspace(MIN_DEPTH, MAX_DEPTH, NUM_DEPTH,
                          dtype=jnp.float32)[None, :, None]               # (1, D, 1)
    pts = pixels * depths                                                 # (L, D, 2)
    depths = jnp.tile(depths, (pixels.shape[0], 1, 1))                    # (L, D, 1)
    pts = jnp.concatenate([pts, depths, jnp.ones_like(depths)], axis=-1)  # (L, D, 4)
    a = projection_mat[:, :, None]                                        # (B, N, 1, 4, 4)
    x = jnp.linalg.solve(a, jnp.swapaxes(pts, -1, -2))                    # (B, N, L, 4, D)
    x = jnp.swapaxes(x, -1, -2)                                           # (B, N, L, D, 4)
    return x[..., :3]


def make_params(key):
    ks = jax.random.split(key, 9)

    def linear(k, din, dout, scale=0.02):
        kw, kb = jax.random.split(k)
        w = scale * jax.random.normal(kw, (din, dout), jnp.float32)
        b = scale * jax.random.normal(kb, (1, dout), jnp.float32)
        return w, b

    w_pre, b_pre = linear(ks[0], EMBED_DIMS, F3D)          # pts_prob_pre_fc
    w_m1, b_m1 = linear(ks[1], PROB_DIM, PROB_DIM)         # pts_prob_fc layer 1
    w_m2, b_m2 = linear(ks[2], PROB_DIM, NUM_DEPTH)        # pts_prob_fc layer 2
    w_pts, b_pts = linear(ks[3], 3, F3D)                   # pts_fc
    w_f1, b_f1 = linear(ks[4], FUSION_DIM, FFN_DIM)        # FFN fc1
    w_f2, b_f2 = linear(ks[5], FFN_DIM, FUSION_DIM)        # FFN fc2
    w_out, b_out = linear(ks[6], FUSION_DIM, EMBED_DIMS)   # fusion_fc final Linear
    ln_g = 1.0 + 0.02 * jax.random.normal(ks[7], (1, EMBED_DIMS), jnp.float32)
    ln_b = 0.02 * jax.random.normal(ks[8], (1, EMBED_DIMS), jnp.float32)
    return (w_pre, b_pre, w_m1, b_m1, w_m2, b_m2, w_pts, b_pts,
            w_f1, b_f1, w_f2, b_f2, w_out, b_out, ln_g, ln_b)


def reference_forward(f2d, f3d, px, py, pz, params):
    """Pure-JAX reference with the ORIGINAL (unfolded, f32) formulation."""
    (w_pre, b_pre, w_m1, b_m1, w_m2, b_m2, w_pts, b_pts,
     w_f1, b_f1, w_f2, b_f2, w_out, b_out, ln_g, ln_b) = params
    pre = f2d @ w_pre + b_pre
    dp_in = jnp.concatenate([pre, f3d], axis=-1)
    h = jnp.maximum(dp_in @ w_m1 + b_m1, 0.0)
    logits = h @ w_m2 + b_m2
    prob = jax.nn.softmax(logits, axis=-1)
    pts = jnp.stack([px, py, pz], axis=-1)                 # (T, D, 3)
    pf = pts @ w_pts + b_pts                               # (T, D, F3D)
    pts_feature = jnp.sum(prob[..., None] * pf, axis=-2)
    x = jnp.concatenate([f2d, f3d, pts_feature], axis=-1)
    ffn = x + (jnp.maximum(x @ w_f1 + b_f1, 0.0) @ w_f2 + b_f2)
    y = ffn @ w_out + b_out + f2d
    mu = y.mean(-1, keepdims=True)
    var = ((y - mu) ** 2).mean(-1, keepdims=True)
    y = (y - mu) / jnp.sqrt(var + LN_EPS) * ln_g + ln_b
    return y, prob


def depth_fusion_forward(feature_maps, feature_3d_maps, image_wh, projection_mat, params):
    feature_2d, spatial_shapes = deformable_format(feature_maps)
    feature_3d, _ = deformable_format(feature_3d_maps)
    a, c = get_pts_affine(spatial_shapes, image_wh, projection_mat)   # (B, N, L, 3) x2
    B, N, L, C = feature_2d.shape
    T = B * N * L
    f2d = feature_2d.reshape(T, C)
    f3d = feature_3d.reshape(T, F3D)
    ac = jnp.concatenate([a.reshape(T, 3), c.reshape(T, 3),
                          jnp.zeros((T, AC_DIM - 6), jnp.float32)], axis=-1)
    out_flat, prob_flat = fused_enhancer_pallas(f2d, f3d, ac, params)
    fused_maps = deformable_unformat(out_flat.reshape(B, N, L, C), spatial_shapes)
    depth_prob = prob_flat.reshape(B, N, L, NUM_DEPTH)
    loss_depth = None   # TODO(synk): depth_prob_loss (BCE vs gt) only used in training mode
    flat = (f2d, f3d, out_flat, prob_flat, spatial_shapes)
    return fused_maps, depth_prob, loss_depth, flat


# --------------------------------- main ------------------------------------
if __name__ == "__main__":
    key = jax.random.PRNGKey(0)
    ks = jax.random.split(key, 6)

    B, N = 2, 1
    spatial = [(8, 16), (8, 8)]   # two pyramid levels -> L = 192, T = 384 (padded to 512)

    feature_maps = [jax.random.normal(ks[i], (B, N, EMBED_DIMS, h, w), jnp.float32)
                    for i, (h, w) in enumerate(spatial)]
    feature_3d_maps = [jax.random.normal(ks[2 + i], (B, N, F3D, h, w), jnp.float32)
                       for i, (h, w) in enumerate(spatial)]
    image_wh = jnp.tile(jnp.array([32.0, 16.0], jnp.float32), (B, N, 1))

    proj = []
    for b in range(B):
        fx, fy, cx, cy = 10.0 + b, 12.0 + b, 16.0, 8.0
        proj.append([[fx, 0.0, cx, 0.0],
                     [0.0, fy, cy, 0.0],
                     [0.0, 0.0, 1.0, 0.0],
                     [0.0, 0.0, 0.0, 1.0]])
    projection_mat = jnp.asarray(proj, jnp.float32)[:, None]      # (B, N, 4, 4)

    params = make_params(ks[4])

    fused_maps, depth_prob, loss_depth, flat = depth_fusion_forward(
        feature_maps, feature_3d_maps, image_wh, projection_mat, params)
    jax.block_until_ready((fused_maps, depth_prob))

    # correctness check vs pure-JAX f32 reference using the ORIGINAL (solve-based,
    # unfolded) formulation.  Tolerances account for the bf16 MXU operands on the
    # prob/FFN paths and the offline w_f2 @ w_out fold; observed errors are ~1e-3.
    f2d, f3d, out_flat, prob_flat, spatial_shapes = flat
    T = f2d.shape[0]
    pts_full = get_pts_full(spatial_shapes, image_wh, projection_mat)   # (B, N, L, D, 3)
    px = pts_full[..., 0].reshape(T, NUM_DEPTH)
    py = pts_full[..., 1].reshape(T, NUM_DEPTH)
    pz = pts_full[..., 2].reshape(T, NUM_DEPTH)
    ref_out, ref_prob = reference_forward(f2d, f3d, px, py, pz, params)
    err_out = float(jnp.max(jnp.abs(out_flat - ref_out)))
    err_prob = float(jnp.max(jnp.abs(prob_flat - ref_prob)))
    assert err_out < 1e-2, f"fused output mismatch: {err_out}"
    assert err_prob < 5e-3, f"depth_prob mismatch: {err_prob}"

    print("KERNEL_OK")
</pallas_src>

<mosaic_0001>
module attributes {stable_mosaic.version = 11 : i64} {
  func.func @fusion_kernel(%arg0: i32, %arg1: memref<256x128xf32, #tpu.memory_space<vmem>>, %arg2: memref<256x32xf32, #tpu.memory_space<vmem>>, %arg3: memref<256x8xf32, #tpu.memory_space<vmem>>, %arg4: memref<160x64xbf16, #tpu.memory_space<vmem>>, %arg5: memref<64x64xbf16, #tpu.memory_space<vmem>>, %arg6: memref<2x64xf32, #tpu.memory_space<vmem>>, %arg7: memref<4x32xf32, #tpu.memory_space<vmem>>, %arg8: memref<192x1024xbf16, #tpu.memory_space<vmem>>, %arg9: memref<1x1024xf32, #tpu.memory_space<vmem>>, %arg10: memref<1024x128xbf16, #tpu.memory_space<vmem>>, %arg11: memref<192x128xbf16, #tpu.memory_space<vmem>>, %arg12: memref<3x128xf32, #tpu.memory_space<vmem>>, %arg13: memref<256x128xf32, #tpu.memory_space<vmem>>, %arg14: memref<256x64xf32, #tpu.memory_space<vmem>>) attributes {dimension_semantics = [#tpu.dimension_semantics<parallel>], iteration_bounds = array<i64: 2>, scalar_prefetch = 0 : i64, scratch_operands = 0 : i64, tpu.core_type = #tpu.core_type<tc>, window_params = [{transform_indices = @transform_0, window_bounds = array<i64: 256, 128>}, {transform_indices = @transform_1, window_bounds = array<i64: 256, 32>}, {transform_indices = @transform_2, window_bounds = array<i64: 256, 8>}, {pipeline_mode = #tpu.pipeline_mode<synchronous>, transform_indices = @transform_3, window_bounds = array<i64: 160, 64>}, {pipeline_mode = #tpu.pipeline_mode<synchronous>, transform_indices = @transform_4, window_bounds = array<i64: 64, 64>}, {pipeline_mode = #tpu.pipeline_mode<synchronous>, transform_indices = @transform_5, window_bounds = array<i64: 2, 64>}, {pipeline_mode = #tpu.pipeline_mode<synchronous>, transform_indices = @transform_6, window_bounds = array<i64: 4, 32>}, {pipeline_mode = #tpu.pipeline_mode<synchronous>, transform_indices = @transform_7, window_bounds = array<i64: 192, 1024>}, {pipeline_mode = #tpu.pipeline_mode<synchronous>, transform_indices = @transform_8, window_bounds = array<i64: 1, 1024>}, {pipeline_mode = #tpu.pipeline_mode<synchronous>, transform_indices = @transform_9, window_bounds = array<i64: 1024, 128>}, {pipeline_mode = #tpu.pipeline_mode<synchronous>, transform_indices = @transform_10, window_bounds = array<i64: 192, 128>}, {pipeline_mode = #tpu.pipeline_mode<synchronous>, transform_indices = @transform_11, window_bounds = array<i64: 3, 128>}, {transform_indices = @transform_12, window_bounds = array<i64: 256, 128>}, {transform_indices = @transform_13, window_bounds = array<i64: 256, 64>}]} {
    %c0 = arith.constant 0 : index
    %c0_0 = arith.constant 0 : index
    %0 = vector.load %arg1[%c0, %c0_0] : memref<256x128xf32, #tpu.memory_space<vmem>>, vector<256x128xf32>
    %c0_1 = arith.constant 0 : index
    %c0_2 = arith.constant 0 : index
    %1 = vector.load %arg2[%c0_1, %c0_2] : memref<256x32xf32, #tpu.memory_space<vmem>>, vector<256x32xf32>
    %2 = tpu.concatenate %0, %1 in 1 : vector<256x128xf32>, vector<256x32xf32> -> vector<256x160xf32>
    %3 = arith.truncf %2 : vector<256x160xf32> to vector<256x160xbf16>
    %c0_3 = arith.constant 0 : index
    %c0_4 = arith.constant 0 : index
    %4 = vector.load %arg6[%c0_3, %c0_4] : memref<2x64xf32, #tpu.memory_space<vmem>>, vector<2x64xf32>
    %c0_5 = arith.constant 0 : index
    %c0_6 = arith.constant 0 : index
    %5 = vector.load %arg4[%c0_5, %c0_6] : memref<160x64xbf16, #tpu.memory_space<vmem>>, vector<160x64xbf16>
    %cst = arith.constant dense<0.000000e+00> : vector<256x64xf32>
    %6 = tpu.matmul %3, %5, %cst {dimension_numbers = #tpu.dot_dimension_numbers<[1], [0], [0], [1], [0, 0, 1, 1], [], []>} : vector<256x160xbf16>, vector<160x64xbf16>, vector<256x64xf32> -> vector<256x64xf32>
    %7 = vector.extract_strided_slice %4 {offsets = [0, 0], sizes = [1, 64], strides = [1, 1]} : vector<2x64xf32> to vector<1x64xf32>
    %8 = vector.broadcast %7 : vector<1x64xf32> to vector<256x64xf32>
    %9 = arith.addf %6, %8 : vector<256x64xf32>
    %cst_7 = arith.constant 0.000000e+00 : f32
    %10 = vector.broadcast %cst_7 : f32 to vector<256x64xf32>
    %11 = arith.maximumf %9, %10 : vector<256x64xf32>
    %12 = arith.truncf %11 : vector<256x64xf32> to vector<256x64xbf16>
    %c0_8 = arith.constant 0 : index
    %c0_9 = arith.constant 0 : index
    %13 = vector.load %arg5[%c0_8, %c0_9] : memref<64x64xbf16, #tpu.memory_space<vmem>>, vector<64x64xbf16>
    %cst_10 = arith.constant dense<0.000000e+00> : vector<256x64xf32>
    %14 = tpu.matmul %12, %13, %cst_10 {dimension_numbers = #tpu.dot_dimension_numbers<[1], [0], [0], [1], [0, 0, 1, 1], [], []>} : vector<256x64xbf16>, vector<64x64xbf16>, vector<256x64xf32> -> vector<256x64xf32>
    %15 = vector.extract_strided_slice %4 {offsets = [1, 0], sizes = [1, 64], strides = [1, 1]} : vector<2x64xf32> to vector<1x64xf32>
    %16 = vector.broadcast %15 : vector<1x64xf32> to vector<256x64xf32>
    %17 = arith.addf %14, %16 : vector<256x64xf32>
    %cst_11 = arith.constant dense<0xFF800000> : vector<256xf32>
    %18 = vector.multi_reduction <maximumf>, %17, %cst_11 [1] : vector<256x64xf32> to vector<256xf32>
    %19 = vector.shape_cast %18 : vector<256xf32> to vector<256x1xf32>
    %20 = vector.broadcast %19 : vector<256x1xf32> to vector<256x64xf32>
    %21 = arith.subf %17, %20 : vector<256x64xf32>
    %22 = math.exp %21 : vector<256x64xf32>
    %cst_12 = arith.constant dense<0.000000e+00> : vector<256xf32>
    %23 = vector.multi_reduction <add>, %22, %cst_12 [1] : vector<256x64xf32> to vector<256xf32>
    %24 = vector.shape_cast %23 : vector<256xf32> to vector<256x1xf32>
    %25 = tpu.reciprocal %24 : vector<256x1xf32> -> vector<256x1xf32>
    %26 = vector.broadcast %25 : vector<256x1xf32> to vector<256x64xf32>
    %27 = arith.mulf %22, %26 : vector<256x64xf32>
    %c0_13 = arith.constant 0 : index
    %c0_14 = arith.constant 0 : index
    %28 = vector.load %arg14[%c0_13, %c0_14] : memref<256x64xf32, #tpu.memory_space<vmem>>, vector<256x64xf32>
    tpu.vector_store %arg14[%c0_13, %c0_14], %27 {strides = array<i32>} : memref<256x64xf32, #tpu.memory_space<vmem>>, vector<256x64xf32>,
    %29 = tpu.iota {dimensions = array<i32: 1>} : vector<1x64xi32>
    %30 = arith.sitofp %29 : vector<1x64xi32> to vector<1x64xf32>
    %cst_15 = arith.constant 0.15476191 : f32
    %31 = vector.broadcast %cst_15 : f32 to vector<1x64xf32>
    %32 = arith.mulf %30, %31 : vector<1x64xf32>
    %cst_16 = arith.constant 2.500000e-01 : f32
    %33 = vector.broadcast %cst_16 : f32 to vector<1x64xf32>
    %34 = arith.addf %33, %32 : vector<1x64xf32>
    %35 = vector.broadcast %34 : vector<1x64xf32> to vector<256x64xf32>
    %36 = arith.mulf %27, %35 : vector<256x64xf32>
    %cst_17 = arith.constant dense<0.000000e+00> : vector<256xf32>
    %37 = vector.multi_reduction <add>, %36, %cst_17 [1] : vector<256x64xf32> to vector<256xf32>
    %38 = vector.shape_cast %37 : vector<256xf32> to vector<256x1xf32>
    %c0_18 = arith.constant 0 : index
    %c0_19 = arith.constant 0 : index
    %39 = vector.load %arg3[%c0_18, %c0_19] : memref<256x8xf32, #tpu.memory_space<vmem>>, vector<256x8xf32>
    %c0_20 = arith.constant 0 : index
    %c0_21 = arith.constant 0 : index
    %40 = vector.load %arg7[%c0_20, %c0_21] : memref<4x32xf32, #tpu.memory_space<vmem>>, vector<4x32xf32>
    %41 = vector.extract_strided_slice %39 {offsets = [0, 0], sizes = [256, 1], strides = [1, 1]} : vector<256x8xf32> to vector<256x1xf32>
    %42 = arith.mulf %41, %38 : vector<256x1xf32>
    %43 = vector.extract_strided_slice %39 {offsets = [0, 3], sizes = [256, 1], strides = [1, 1]} : vector<256x8xf32> to vector<256x1xf32>
    %44 = arith.addf %42, %43 : vector<256x1xf32>
    %45 = vector.extract_strided_slice %39 {offsets = [0, 1], sizes = [256, 1], strides = [1, 1]} : vector<256x8xf32> to vector<256x1xf32>
    %46 = arith.mulf %45, %38 : vector<256x1xf32>
    %47 = vector.extract_strided_slice %39 {offsets = [0, 4], sizes = [256, 1], strides = [1, 1]} : vector<256x8xf32> to vector<256x1xf32>
    %48 = arith.addf %46, %47 : vector<256x1xf32>
    %49 = vector.extract_strided_slice %39 {offsets = [0, 2], sizes = [256, 1], strides = [1, 1]} : vector<256x8xf32> to vector<256x1xf32>
    %50 = arith.mulf %49, %38 : vector<256x1xf32>
    %51 = vector.extract_strided_slice %39 {offsets = [0, 5], sizes = [256, 1], strides = [1, 1]} : vector<256x8xf32> to vector<256x1xf32>
    %52 = arith.addf %50, %51 : vector<256x1xf32>
    %53 = vector.extract_strided_slice %40 {offsets = [0, 0], sizes = [1, 32], strides = [1, 1]} : vector<4x32xf32> to vector<1x32xf32>
    %54 = vector.broadcast %44 : vector<256x1xf32> to vector<256x32xf32>
    %55 = vector.broadcast %53 : vector<1x32xf32> to vector<256x32xf32>
    %56 = arith.mulf %54, %55 : vector<256x32xf32>
    %57 = vector.extract_strided_slice %40 {offsets = [1, 0], sizes = [1, 32], strides = [1, 1]} : vector<4x32xf32> to vector<1x32xf32>
    %58 = vector.broadcast %48 : vector<256x1xf32> to vector<256x32xf32>
    %59 = vector.broadcast %57 : vector<1x32xf32> to vector<256x32xf32>
    %60 = arith.mulf %58, %59 : vector<256x32xf32>
    %61 = arith.addf %56, %60 : vector<256x32xf32>
    %62 = vector.extract_strided_slice %40 {offsets = [2, 0], sizes = [1, 32], strides = [1, 1]} : vector<4x32xf32> to vector<1x32xf32>
    %63 = vector.broadcast %52 : vector<256x1xf32> to vector<256x32xf32>
    %64 = vector.broadcast %62 : vector<1x32xf32> to vector<256x32xf32>
    %65 = arith.mulf %63, %64 : vector<256x32xf32>
    %66 = arith.addf %61, %65 : vector<256x32xf32>
    %67 = vector.extract_strided_slice %40 {offsets = [3, 0], sizes = [1, 32], strides = [1, 1]} : vector<4x32xf32> to vector<1x32xf32>
    %68 = vector.broadcast %67 : vector<1x32xf32> to vector<256x32xf32>
    %69 = arith.addf %66, %68 : vector<256x32xf32>
    %70 = tpu.concatenate %2, %69 in 1 : vector<256x160xf32>, vector<256x32xf32> -> vector<256x192xf32>
    %71 = arith.truncf %70 : vector<256x192xf32> to vector<256x192xbf16>
    %c0_22 = arith.constant 0 : index
    %c0_23 = arith.constant 0 : index
    %72 = vector.load %arg8[%c0_22, %c0_23] : memref<192x1024xbf16, #tpu.memory_space<vmem>>, vector<192x1024xbf16>
    %cst_24 = arith.constant dense<0.000000e+00> : vector<256x1024xf32>
    %73 = tpu.matmul %71, %72, %cst_24 {dimension_numbers = #tpu.dot_dimension_numbers<[1], [0], [0], [1], [0, 0, 1, 1], [], []>} : vector<256x192xbf16>, vector<192x1024xbf16>, vector<256x1024xf32> -> vector<256x1024xf32>
    %c0_25 = arith.constant 0 : index
    %c0_26 = arith.constant 0 : index
    %74 = vector.load %arg9[%c0_25, %c0_26] : memref<1x1024xf32, #tpu.memory_space<vmem>>, vector<1x1024xf32>
    %75 = vector.broadcast %74 : vector<1x1024xf32> to vector<256x1024xf32>
    %76 = arith.addf %73, %75 : vector<256x1024xf32>
    %cst_27 = arith.constant 0.000000e+00 : f32
    %77 = vector.broadcast %cst_27 : f32 to vector<256x1024xf32>
    %78 = arith.maximumf %76, %77 : vector<256x1024xf32>
    %79 = arith.truncf %78 : vector<256x1024xf32> to vector<256x1024xbf16>
    %c0_28 = arith.constant 0 : index
    %c0_29 = arith.constant 0 : index
    %80 = vector.load %arg12[%c0_28, %c0_29] : memref<3x128xf32, #tpu.memory_space<vmem>>, vector<3x128xf32>
    %c0_30 = arith.constant 0 : index
    %c0_31 = arith.constant 0 : index
    %81 = vector.load %arg11[%c0_30, %c0_31] : memref<192x128xbf16, #tpu.memory_space<vmem>>, vector<192x128xbf16>
    %cst_32 = arith.constant dense<0.000000e+00> : vector<256x128xf32>
    %82 = tpu.matmul %71, %81, %cst_32 {dimension_numbers = #tpu.dot_dimension_numbers<[1], [0], [0], [1], [0, 0, 1, 1], [], []>} : vector<256x192xbf16>, vector<192x128xbf16>, vector<256x128xf32> -> vector<256x128xf32>
    %c0_33 = arith.constant 0 : index
    %c0_34 = arith.constant 0 : index
    %83 = vector.load %arg10[%c0_33, %c0_34] : memref<1024x128xbf16, #tpu.memory_space<vmem>>, vector<1024x128xbf16>
    %cst_35 = arith.constant dense<0.000000e+00> : vector<256x128xf32>
    %84 = tpu.matmul %79, %83, %cst_35 {dimension_numbers = #tpu.dot_dimension_numbers<[1], [0], [0], [1], [0, 0, 1, 1], [], []>} : vector<256x1024xbf16>, vector<1024x128xbf16>, vector<256x128xf32> -> vector<256x128xf32>
    %85 = arith.addf %82, %84 : vector<256x128xf32>
    %86 = vector.extract_strided_slice %80 {offsets = [0, 0], sizes = [1, 128], strides = [1, 1]} : vector<3x128xf32> to vector<1x128xf32>
    %87 = vector.broadcast %86 : vector<1x128xf32> to vector<256x128xf32>
    %88 = arith.addf %85, %87 : vector<256x128xf32>
    %89 = arith.addf %88, %0 : vector<256x128xf32>
    %cst_36 = arith.constant dense<0.000000e+00> : vector<256xf32>
    %90 = vector.multi_reduction <add>, %89, %cst_36 [1] : vector<256x128xf32> to vector<256xf32>
    %91 = vector.shape_cast %90 : vector<256xf32> to vector<256x1xf32>
    %cst_37 = arith.constant 1.280000e+02 : f32
    %92 = vector.broadcast %cst_37 : f32 to vector<256x1xf32>
    %93 = arith.divf %91, %92 : vector<256x1xf32>
    %94 = vector.broadcast %93 : vector<256x1xf32> to vector<256x128xf32>
    %95 = arith.subf %89, %94 : vector<256x128xf32>
    %96 = arith.mulf %95, %95 : vector<256x128xf32>
    %cst_38 = arith.constant dense<0.000000e+00> : vector<256xf32>
    %97 = vector.multi_reduction <add>, %96, %cst_38 [1] : vector<256x128xf32> to vector<256xf32>
    %98 = vector.shape_cast %97 : vector<256xf32> to vector<256x1xf32>
    %cst_39 = arith.constant 1.280000e+02 : f32
    %99 = vector.broadcast %cst_39 : f32 to vector<256x1xf32>
    %100 = arith.divf %98, %99 : vector<256x1xf32>
    %101 = vector.broadcast %93 : vector<256x1xf32> to vector<256x128xf32>
    %102 = arith.subf %89, %101 : vector<256x128xf32>
    %cst_40 = arith.constant 9.99999974E-6 : f32
    %103 = vector.broadcast %cst_40 : f32 to vector<256x1xf32>
    %104 = arith.addf %100, %103 : vector<256x1xf32>
    %105 = math.rsqrt %104 : vector<256x1xf32>
    %106 = vector.broadcast %105 : vector<256x1xf32> to vector<256x128xf32>
    %107 = arith.mulf %102, %106 : vector<256x128xf32>
    %108 = vector.extract_strided_slice %80 {offsets = [1, 0], sizes = [1, 128], strides = [1, 1]} : vector<3x128xf32> to vector<1x128xf32>
    %109 = vector.broadcast %108 : vector<1x128xf32> to vector<256x128xf32>
    %110 = arith.mulf %107, %109 : vector<256x128xf32>
    %111 = vector.extract_strided_slice %80 {offsets = [2, 0], sizes = [1, 128], strides = [1, 1]} : vector<3x128xf32> to vector<1x128xf32>
    %112 = vector.broadcast %111 : vector<1x128xf32> to vector<256x128xf32>
    %113 = arith.addf %110, %112 : vector<256x128xf32>
    %c0_41 = arith.constant 0 : index
    %c0_42 = arith.constant 0 : index
    %114 = vector.load %arg13[%c0_41, %c0_42] : memref<256x128xf32, #tpu.memory_space<vmem>>, vector<256x128xf32>
    tpu.vector_store %arg13[%c0_41, %c0_42], %113 {strides = array<i32>} : memref<256x128xf32, #tpu.memory_space<vmem>>, vector<256x128xf32>,
    return
  }
  func.func @transform_0(%arg0: i32) -> (i32, i32) {
    %c0_i32 = arith.constant 0 : i32
    %c0_i32_0 = arith.constant 0 : i32
    return %arg0, %c0_i32 : i32, i32
  }
  func.func @transform_1(%arg0: i32) -> (i32, i32) {
    %c0_i32 = arith.constant 0 : i32
    %c0_i32_0 = arith.constant 0 : i32
    return %arg0, %c0_i32 : i32, i32
  }
  func.func @transform_2(%arg0: i32) -> (i32, i32) {
    %c0_i32 = arith.constant 0 : i32
    %c0_i32_0 = arith.constant 0 : i32
    return %arg0, %c0_i32 : i32, i32
  }
  func.func @transform_3(%arg0: i32) -> (i32, i32) {
    %c0_i32 = arith.constant 0 : i32
    %c0_i32_0 = arith.constant 0 : i32
    %c0_i32_1 = arith.constant 0 : i32
    return %c0_i32, %c0_i32_0 : i32, i32
  }
  func.func @transform_4(%arg0: i32) -> (i32, i32) {
    %c0_i32 = arith.constant 0 : i32
    %c0_i32_0 = arith.constant 0 : i32
    %c0_i32_1 = arith.constant 0 : i32
    return %c0_i32, %c0_i32_0 : i32, i32
  }
  func.func @transform_5(%arg0: i32) -> (i32, i32) {
    %c0_i32 = arith.constant 0 : i32
    %c0_i32_0 = arith.constant 0 : i32
    %c0_i32_1 = arith.constant 0 : i32
    return %c0_i32, %c0_i32_0 : i32, i32
  }
  func.func @transform_6(%arg0: i32) -> (i32, i32) {
    %c0_i32 = arith.constant 0 : i32
    %c0_i32_0 = arith.constant 0 : i32
    %c0_i32_1 = arith.constant 0 : i32
    return %c0_i32, %c0_i32_0 : i32, i32
  }
  func.func @transform_7(%arg0: i32) -> (i32, i32) {
    %c0_i32 = arith.constant 0 : i32
    %c0_i32_0 = arith.constant 0 : i32
    %c0_i32_1 = arith.constant 0 : i32
    return %c0_i32, %c0_i32_0 : i32, i32
  }
  func.func @transform_8(%arg0: i32) -> (i32, i32) {
    %c0_i32 = arith.constant 0 : i32
    %c0_i32_0 = arith.constant 0 : i32
    %c0_i32_1 = arith.constant 0 : i32
    return %c0_i32, %c0_i32_0 : i32, i32
  }
  func.func @transform_9(%arg0: i32) -> (i32, i32) {
    %c0_i32 = arith.constant 0 : i32
    %c0_i32_0 = arith.constant 0 : i32
    %c0_i32_1 = arith.constant 0 : i32
    return %c0_i32, %c0_i32_0 : i32, i32
  }
  func.func @transform_10(%arg0: i32) -> (i32, i32) {
    %c0_i32 = arith.constant 0 : i32
    %c0_i32_0 = arith.constant 0 : i32
    %c0_i32_1 = arith.constant 0 : i32
    return %c0_i32, %c0_i32_0 : i32, i32
  }
  func.func @transform_11(%arg0: i32) -> (i32, i32) {
    %c0_i32 = arith.constant 0 : i32
    %c0_i32_0 = arith.constant 0 : i32
    %c0_i32_1 = arith.constant 0 : i32
    return %c0_i32, %c0_i32_0 : i32, i32
  }
  func.func @transform_12(%arg0: i32) -> (i32, i32) {
    %c0_i32 = arith.constant 0 : i32
    %c0_i32_0 = arith.constant 0 : i32
    return %arg0, %c0_i32 : i32, i32
  }
  func.func @transform_13(%arg0: i32) -> (i32, i32) {
    %c0_i32 = arith.constant 0 : i32
    %c0_i32_0 = arith.constant 0 : i32
    return %arg0, %c0_i32 : i32, i32
  }
}

</mosaic_0001>

<llo_original>
// kernel: tpu_custom_call.1
$region0: #{tpu_custom_call.1}
  #allocation0 [shape = 'u32[]', space=smem, size = 0x4, offset = 0x4, fixed_abs, tag = 'smem constant byte address 0x4 - core index']
  #allocation1 [shape = 'u32[144,128]{1,0:T(1,128)}', space=vmem, size = 0x12000, scoped, tag = 'internal scratch']
  %s0 = inlined_call_operand.vmem [shape: f32[512,128], index: 0, kind: input, shape index: {}]
  %s1 = inlined_call_operand.vmem [shape: f32[512,32], index: 1, kind: input, shape index: {}]
  %s2 = inlined_call_operand.vmem [shape: f32[512,8], index: 2, kind: input, shape index: {}]
  %s3 = inlined_call_operand.vmem [shape: bf16[160,64], index: 3, kind: input, shape index: {}]
  %s4 = inlined_call_operand.vmem [shape: bf16[64,64], index: 4, kind: input, shape index: {}]
  %s5 = inlined_call_operand.vmem [shape: f32[2,64], index: 5, kind: input, shape index: {}]
  %s6 = inlined_call_operand.vmem [shape: f32[4,32], index: 6, kind: input, shape index: {}]
  %s7 = inlined_call_operand.vmem [shape: bf16[192,1024], index: 7, kind: input, shape index: {}]
  %s8 = inlined_call_operand.vmem [shape: f32[1,1024], index: 8, kind: input, shape index: {}]
  %s9 = inlined_call_operand.hbm [shape: bf16[1024,128], index: 9, kind: input, shape index: {}]
  %s10 = inlined_call_operand.hbm [shape: bf16[192,128], index: 10, kind: input, shape index: {}]
  %s11 = inlined_call_operand.vmem [shape: f32[3,128], index: 11, kind: input, shape index: {}]
  %s12 = inlined_call_operand.hbm [shape: f32[512,128], index: 12, kind: output, shape index: {0}]
  %s13 = inlined_call_operand.vmem [shape: f32[512,64], index: 13, kind: output, shape index: {1}]
  %14 = xla_tuple %s12, %s13
  %s15 = sld [smem:[#allocation0]]
  $region97: #{tpu_custom_call.1} parent=0
    _
  %s17 = ssub.s32 1, %s15
  %s18 = scalar_select 0, %s17, %s15
  $region1: #{tpu_custom_call.1} parent=0
    #allocation2 [shape = 'u8[262144]{0}', space=vmem, size = 0x40000, scoped, tag = 'input window, operand 9, single buffered']
    #allocation3 [shape = 's32[2]{0}', space=sflag, size = 0x8, scoped, tag = 'scoped memory for tpu_custom_call.1']
    #allocation4 [shape = 's32[2]{0}', space=sflag, size = 0x8, scoped, tag = 'scoped memory for tpu_custom_call.1']
    #allocation5 [shape = 'u8[49152]{0}', space=vmem, size = 0xc000, scoped, tag = 'input window, operand 10, single buffered']
    #allocation6 [shape = 's32[1]{0}', space=sflag, size = 0x4, scoped, tag = 'scoped memory for tpu_custom_call.1']
    #allocation7 [shape = 'u8[262144]{0}', space=vmem, size = 0x40000, scoped, tag = 'output window, operand 0']
    %19 = vsyncpa [#allocation3], 0
    %20 = vsyncpa [#allocation6], 0
    %21 = vsyncpa [#allocation4], 0
    %s22 = scalar_lea.sflag [#allocation4], 1
    %23 = vsyncpa %s22, 0
    loop: start=0, step=1, limit=4
    $region2: #{tpu_custom_call.1} parent=1 // loop_pre_header
      _
    $region3: #{tpu_custom_call.1} parent=1 // loop_header
      %s25 = sphi 0, %s29
      %p26 = scmp.ge.s32.totalorder %s25, 4
      %s35 = sphi 0, %s37
      %s38 = sphi 0, %s35
      %s39 = sphi 0, %s38
      %s55 = sphi 0, %s39
      %s61 = sphi 0, %s63
      %s64 = sphi 0, %s61
      %s65 = sphi 0, %s64
      %s81 = sphi 0, %s65
      %s87 = sphi 0, %s89
      %s90 = sphi 0, %s87
      %s91 = sphi 0, %s90
      %s107 = sphi 0, %s91
      %s111 = sphi 0, %s111
      %s113 = sphi 0, %s111
      %s114 = sphi 0, %s113
      %s128 = sphi 0, %s114
      %s132 = sphi 0, %s132
      %s134 = sphi 0, %s132
      %s135 = sphi 0, %s134
      %s149 = sphi 0, %s135
      %s153 = sphi 0, %s153
      %s155 = sphi 0, %s153
      %s156 = sphi 0, %s155
      %s170 = sphi 0, %s156
      %s174 = sphi 0, %s174
      %s176 = sphi 0, %s174
      %s177 = sphi 0, %s176
      %s191 = sphi 0, %s177
      %s195 = sphi 0, %s195
      %s197 = sphi 0, %s195
      %s198 = sphi 0, %s197
      %s212 = sphi 0, %s198
      %s216 = sphi 0, %s216
      %s218 = sphi 0, %s216
      %s219 = sphi 0, %s218
      %s233 = sphi 0, %s219
      %s237 = sphi 0, %s237
      %s239 = sphi 0, %s237
      %s240 = sphi 0, %s239
      %s254 = sphi 0, %s240
      %s258 = sphi 0, %s258
      %s260 = sphi 0, %s258
      %s261 = sphi 0, %s260
      %s275 = sphi 0, %s261
      %s279 = sphi 0, %s279
      %s281 = sphi 0, %s279
      %s282 = sphi 0, %s281
      %s296 = sphi 0, %s282
      %s302 = sphi 0, %s304
      %s305 = sphi 0, %s302
      %s306 = sphi 0, %s305
      %s322 = sphi 0, %s306
      %s328 = sphi 0, %s330
      %s331 = sphi 0, %s328
      %s332 = sphi 0, %s331
      %s348 = sphi 0, %s332
    $region4: #{tpu_custom_call.1} parent=1 // loop_header_branch
      %28 = sbr.rel (%p26) target = $region8
    $region5: #{tpu_custom_call.1} parent=1 // loop_body
      %s30 = ssub.s32 %s25, 1
      %s31 = ssub.s32 %s25, 2
      %s32 = sadd.s32 %s25, 1
      %s33 = ssub.s32 %s25, %s32
      %p34 = scmp.eq.s32.totalorder %s33, 0
      %s36 = sadd.s32 %s35, 1
      %s37 = scalar_select %p34, %s35, %s36
      %p40 = pneg %p34
      %p41 = scmp.eq.s32.totalorder %s25, 1
      %p42 = por %p40, %p41
      %p43 = scmp.ne.s32.totalorder %s35, %s38
      %p44 = scmp.eq.s32.totalorder %s25, 0
      %p45 = por %p43, %p44
      %p46 = scmp.ne.s32.totalorder %s35, %s38
      %p47 = scmp.eq.s32.totalorder %s30, 1
      %p48 = por %p46, %p47
      %p49 = scmp.ne.s32.totalorder %s38, %s39
      %p50 = scmp.eq.s32.totalorder %s30, 0
      %p51 = por %p49, %p50
      %p52 = scmp.ne.s32.totalorder %s38, %s39
      %p53 = scmp.eq.s32.totalorder %s31, 1
      %p54 = por %p52, %p53
      %p56 = scmp.ne.s32.totalorder %s39, %s55
      %p57 = scmp.eq.s32.totalorder %s31, 0
      %p58 = por %p56, %p57
      %s59 = ssub.s32 %s25, %s32
      %p60 = scmp.eq.s32.totalorder %s59, 0
      %s62 = sadd.s32 %s61, 1
      %s63 = scalar_select %p60, %s61, %s62
      %p66 = pneg %p60
      %p67 = scmp.eq.s32.totalorder %s25, 1
      %p68 = por %p66, %p67
      %p69 = scmp.ne.s32.totalorder %s61, %s64
      %p70 = scmp.eq.s32.totalorder %s25, 0
      %p71 = por %p69, %p70
      %p72 = scmp.ne.s32.totalorder %s61, %s64
      %p73 = scmp.eq.s32.totalorder %s30, 1
      %p74 = por %p72, %p73
      %p75 = scmp.ne.s32.totalorder %s64, %s65
      %p76 = scmp.eq.s32.totalorder %s30, 0
      %p77 = por %p75, %p76
      %p78 = scmp.ne.s32.totalorder %s64, %s65
      %p79 = scmp.eq.s32.totalorder %s31, 1
      %p80 = por %p78, %p79
      %p82 = scmp.ne.s32.totalorder %s65, %s81
      %p83 = scmp.eq.s32.totalorder %s31, 0
      %p84 = por %p82, %p83
      %s85 = ssub.s32 %s25, %s32
      %p86 = scmp.eq.s32.totalorder %s85, 0
      %s88 = sadd.s32 %s87, 1
      %s89 = scalar_select %p86, %s87, %s88
      %p92 = pneg %p86
      %p93 = scmp.eq.s32.totalorder %s25, 1
      %p94 = por %p92, %p93
      %p95 = scmp.ne.s32.totalorder %s87, %s90
      %p96 = scmp.eq.s32.totalorder %s25, 0
      %p97 = por %p95, %p96
      %p98 = scmp.ne.s32.totalorder %s87, %s90
      %p99 = scmp.eq.s32.totalorder %s30, 1
      %p100 = por %p98, %p99
      %p101 = scmp.ne.s32.totalorder %s90, %s91
      %p102 = scmp.eq.s32.totalorder %s30, 0
      %p103 = por %p101, %p102
      %p104 = scmp.ne.s32.totalorder %s90, %s91
      %p105 = scmp.eq.s32.totalorder %s31, 1
      %p106 = por %p104, %p105
      %p108 = scmp.ne.s32.totalorder %s91, %s107
      %p109 = scmp.eq.s32.totalorder %s31, 0
      %p110 = por %p108, %p109
      %s112 = sadd.s32 %s111, 1
      %p115 = scmp.eq.s32.totalorder %s25, 1
      %p116 = scmp.ne.s32.totalorder %s111, %s113
      %p117 = scmp.eq.s32.totalorder %s25, 0
      %p118 = por %p116, %p117
      %p119 = scmp.ne.s32.totalorder %s111, %s113
      %p120 = scmp.eq.s32.totalorder %s30, 1
      %p121 = por %p119, %p120
      %p122 = scmp.ne.s32.totalorder %s113, %s114
      %p123 = scmp.eq.s32.totalorder %s30, 0
      %p124 = por %p122, %p123
      %p125 = scmp.ne.s32.totalorder %s113, %s114
      %p126 = scmp.eq.s32.totalorder %s31, 1
      %p127 = por %p125, %p126
      %p129 = scmp.ne.s32.totalorder %s114, %s128
      %p130 = scmp.eq.s32.totalorder %s31, 0
      %p131 = por %p129, %p130
      %s133 = sadd.s32 %s132, 1
      %p136 = scmp.eq.s32.totalorder %s25, 1
      %p137 = scmp.ne.s32.totalorder %s132, %s134
      %p138 = scmp.eq.s32.totalorder %s25, 0
      %p139 = por %p137, %p138
      %p140 = scmp.ne.s32.totalorder %s132, %s134
      %p141 = scmp.eq.s32.totalorder %s30, 1
      %p142 = por %p140, %p141
      %p143 = scmp.ne.s32.totalorder %s134, %s135
      %p144 = scmp.eq.s32.totalorder %s30, 0
      %p145 = por %p143, %p144
      %p146 = scmp.ne.s32.totalorder %s134, %s135
      %p147 = scmp.eq.s32.totalorder %s31, 1
      %p148 = por %p146, %p147
      %p150 = scmp.ne.s32.totalorder %s135, %s149
      %p151 = scmp.eq.s32.totalorder %s31, 0
      %p152 = por %p150, %p151
      %s154 = sadd.s32 %s153, 1
      %p157 = scmp.eq.s32.totalorder %s25, 1
      %p158 = scmp.ne.s32.totalorder %s153, %s155
      %p159 = scmp.eq.s32.totalorder %s25, 0
      %p160 = por %p158, %p159
      %p161 = scmp.ne.s32.totalorder %s153, %s155
      %p162 = scmp.eq.s32.totalorder %s30, 1
      %p163 = por %p161, %p162
      %p164 = scmp.ne.s32.totalorder %s155, %s156
      %p165 = scmp.eq.s32.totalorder %s30, 0
      %p166 = por %p164, %p165
      %p167 = scmp.ne.s32.totalorder %s155, %s156
      %p168 = scmp.eq.s32.totalorder %s31, 1
      %p169 = por %p167, %p168
      %p171 = scmp.ne.s32.totalorder %s156, %s170
      %p172 = scmp.eq.s32.totalorder %s31, 0
      %p173 = por %p171, %p172
      %s175 = sadd.s32 %s174, 1
      %p178 = scmp.eq.s32.totalorder %s25, 1
      %p179 = scmp.ne.s32.totalorder %s174, %s176
      %p180 = scmp.eq.s32.totalorder %s25, 0
      %p181 = por %p179, %p180
      %p182 = scmp.ne.s32.totalorder %s174, %s176
      %p183 = scmp.eq.s32.totalorder %s30, 1
      %p184 = por %p182, %p183
      %p185 = scmp.ne.s32.totalorder %s176, %s177
      %p186 = scmp.eq.s32.totalorder %s30, 0
      %p187 = por %p185, %p186
      %p188 = scmp.ne.s32.totalorder %s176, %s177
      %p189 = scmp.eq.s32.totalorder %s31, 1
      %p190 = por %p188, %p189
      %p192 = scmp.ne.s32.totalorder %s177, %s191
      %p193 = scmp.eq.s32.totalorder %s31, 0
      %p194 = por %p192, %p193
      %s196 = sadd.s32 %s195, 1
      %p199 = scmp.eq.s32.totalorder %s25, 1
      %p200 = scmp.ne.s32.totalorder %s195, %s197
      %p201 = scmp.eq.s32.totalorder %s25, 0
      %p202 = por %p200, %p201
      %p203 = scmp.ne.s32.totalorder %s195, %s197
      %p204 = scmp.eq.s32.totalorder %s30, 1
      %p205 = por %p203, %p204
      %p206 = scmp.ne.s32.totalorder %s197, %s198
      %p207 = scmp.eq.s32.totalorder %s30, 0
      %p208 = por %p206, %p207
      %p209 = scmp.ne.s32.totalorder %s197, %s198
      %p210 = scmp.eq.s32.totalorder %s31, 1
      %p211 = por %p209, %p210
      %p213 = scmp.ne.s32.totalorder %s198, %s212
      %p214 = scmp.eq.s32.totalorder %s31, 0
      %p215 = por %p213, %p214
      %s217 = sadd.s32 %s216, 1
      %p220 = scmp.eq.s32.totalorder %s25, 1
      %p221 = scmp.ne.s32.totalorder %s216, %s218
      %p222 = scmp.eq.s32.totalorder %s25, 0
      %p223 = por %p221, %p222
      %p224 = scmp.ne.s32.totalorder %s216, %s218
      %p225 = scmp.eq.s32.totalorder %s30, 1
      %p226 = por %p224, %p225
      %p227 = scmp.ne.s32.totalorder %s218, %s219
      %p228 = scmp.eq.s32.totalorder %s30, 0
      %p229 = por %p227, %p228
      %p230 = scmp.ne.s32.totalorder %s218, %s219
      %p231 = scmp.eq.s32.totalorder %s31, 1
      %p232 = por %p230, %p231
      %p234 = scmp.ne.s32.totalorder %s219, %s233
      %p235 = scmp.eq.s32.totalorder %s31, 0
      %p236 = por %p234, %p235
      %s238 = sadd.s32 %s237, 1
      %p241 = scmp.eq.s32.totalorder %s25, 1
      %p242 = scmp.ne.s32.totalorder %s237, %s239
      %p243 = scmp.eq.s32.totalorder %s25, 0
      %p244 = por %p242, %p243
      %p245 = scmp.ne.s32.totalorder %s237, %s239
      %p246 = scmp.eq.s32.totalorder %s30, 1
      %p247 = por %p245, %p246
      %p248 = scmp.ne.s32.totalorder %s239, %s240
      %p249 = scmp.eq.s32.totalorder %s30, 0
      %p250 = por %p248, %p249
      %p251 = scmp.ne.s32.totalorder %s239, %s240
      %p252 = scmp.eq.s32.totalorder %s31, 1
      %p253 = por %p251, %p252
      %p255 = scmp.ne.s32.totalorder %s240, %s254
      %p256 = scmp.eq.s32.totalorder %s31, 0
      %p257 = por %p255, %p256
      %s259 = sadd.s32 %s258, 1
      %p262 = scmp.eq.s32.totalorder %s25, 1
      %p263 = scmp.ne.s32.totalorder %s258, %s260
      %p264 = scmp.eq.s32.totalorder %s25, 0
      %p265 = por %p263, %p264
      %p266 = scmp.ne.s32.totalorder %s258, %s260
      %p267 = scmp.eq.s32.totalorder %s30, 1
      %p268 = por %p266, %p267
      %p269 = scmp.ne.s32.totalorder %s260, %s261
      %p270 = scmp.eq.s32.totalorder %s30, 0
      %p271 = por %p269, %p270
      %p272 = scmp.ne.s32.totalorder %s260, %s261
      %p273 = scmp.eq.s32.totalorder %s31, 1
      %p274 = por %p272, %p273
      %p276 = scmp.ne.s32.totalorder %s261, %s275
      %p277 = scmp.eq.s32.totalorder %s31, 0
      %p278 = por %p276, %p277
      %s280 = sadd.s32 %s279, 1
      %p283 = scmp.eq.s32.totalorder %s25, 1
      %p284 = scmp.ne.s32.totalorder %s279, %s281
      %p285 = scmp.eq.s32.totalorder %s25, 0
      %p286 = por %p284, %p285
      %p287 = scmp.ne.s32.totalorder %s279, %s281
      %p288 = scmp.eq.s32.totalorder %s30, 1
      %p289 = por %p287, %p288
      %p290 = scmp.ne.s32.totalorder %s281, %s282
      %p291 = scmp.eq.s32.totalorder %s30, 0
      %p292 = por %p290, %p291
      %p293 = scmp.ne.s32.totalorder %s281, %s282
      %p294 = scmp.eq.s32.totalorder %s31, 1
      %p295 = por %p293, %p294
      %p297 = scmp.ne.s32.totalorder %s282, %s296
      %p298 = scmp.eq.s32.totalorder %s31, 0
      %p299 = por %p297, %p298
      %s300 = ssub.s32 %s25, %s32
      %p301 = scmp.eq.s32.totalorder %s300, 0
      %s303 = sadd.s32 %s302, 1
      %s304 = scalar_select %p301, %s302, %s303
      %p307 = pneg %p301
      %p308 = scmp.eq.s32.totalorder %s25, 1
      %p309 = por %p307, %p308
      %p310 = scmp.ne.s32.totalorder %s302, %s305
      %p311 = scmp.eq.s32.totalorder %s25, 0
      %p312 = por %p310, %p311
      %p313 = scmp.ne.s32.totalorder %s302, %s305
      %p314 = scmp.eq.s32.totalorder %s30, 1
      %p315 = por %p313, %p314
      %p316 = scmp.ne.s32.totalorder %s305, %s306
      %p317 = scmp.eq.s32.totalorder %s30, 0
      %p318 = por %p316, %p317
      %p319 = scmp.ne.s32.totalorder %s305, %s306
      %p320 = scmp.eq.s32.totalorder %s31, 1
      %p321 = por %p319, %p320
      %p323 = scmp.ne.s32.totalorder %s306, %s322
      %p324 = scmp.eq.s32.totalorder %s31, 0
      %p325 = por %p323, %p324
      %s326 = ssub.s32 %s25, %s32
      %p327 = scmp.eq.s32.totalorder %s326, 0
      %s329 = sadd.s32 %s328, 1
      %s330 = scalar_select %p327, %s328, %s329
      %p333 = pneg %p327
      %p334 = scmp.eq.s32.totalorder %s25, 1
      %p335 = por %p333, %p334
      %p336 = scmp.ne.s32.totalorder %s328, %s331
      %p337 = scmp.eq.s32.totalorder %s25, 0
      %p338 = por %p336, %p337
      %p339 = scmp.ne.s32.totalorder %s328, %s331
      %p340 = scmp.eq.s32.totalorder %s30, 1
      %p341 = por %p339, %p340
      %p342 = scmp.ne.s32.totalorder %s331, %s332
      %p343 = scmp.eq.s32.totalorder %s30, 0
      %p344 = por %p342, %p343
      %p345 = scmp.ne.s32.totalorder %s331, %s332
      %p346 = scmp.eq.s32.totalorder %s31, 1
      %p347 = por %p345, %p346
      %p349 = scmp.ne.s32.totalorder %s332, %s348
      %p350 = scmp.eq.s32.totalorder %s31, 0
      %p351 = por %p349, %p350
      %p352 = scmp.le.s32.totalorder 1, %s25
      %p353 = scmp.lt.s32.totalorder %s25, 3
      %p354 = pnand %p352, %p353
      %p355 = pneg %p354
      // Predicated region
      $region9: #{tpu_custom_call.1} parent=5 // pred_check
        _
      $region10: #{tpu_custom_call.1} parent=5 // pred_check_branch
        %357 = sbr.rel (%p354) target = $region12
      $region11: #{tpu_custom_call.1} parent=5 // pred_region
        %s358 = ssub.s32 %s25, 1
        // Predicated region
        $region13: #{tpu_custom_call.1} parent=11 // pred_check
          %p359 = pneg %p124
        $region14: #{tpu_custom_call.1} parent=11 // pred_check_branch
          %361 = sbr.rel (%p359) target = $region16
        $region15: #{tpu_custom_call.1} parent=11 // pred_region
          _
        $region16: #{tpu_custom_call.1} parent=11 // pred_fallthru
          _
        // Predicated region
        $region17: #{tpu_custom_call.1} parent=11 // pred_check
          %p362 = pneg %p145
        $region18: #{tpu_custom_call.1} parent=11 // pred_check_branch
          %364 = sbr.rel (%p362) target = $region20
        $region19: #{tpu_custom_call.1} parent=11 // pred_region
          _
        $region20: #{tpu_custom_call.1} parent=11 // pred_fallthru
          _
        // Predicated region
        $region21: #{tpu_custom_call.1} parent=11 // pred_check
          %p365 = pneg %p166
        $region22: #{tpu_custom_call.1} parent=11 // pred_check_branch
          %367 = sbr.rel (%p365) target = $region24
        $region23: #{tpu_custom_call.1} parent=11 // pred_region
          _
        $region24: #{tpu_custom_call.1} parent=11 // pred_fallthru
          _
        // Predicated region
        $region25: #{tpu_custom_call.1} parent=11 // pred_check
          %p368 = pneg %p187
        $region26: #{tpu_custom_call.1} parent=11 // pred_check_branch
          %370 = sbr.rel (%p368) target = $region28
        $region27: #{tpu_custom_call.1} parent=11 // pred_region
          _
        $region28: #{tpu_custom_call.1} parent=11 // pred_fallthru
          _
        // Predicated region
        $region29: #{tpu_custom_call.1} parent=11 // pred_check
          %p371 = pneg %p208
        $region30: #{tpu_custom_call.1} parent=11 // pred_check_branch
          %373 = sbr.rel (%p371) target = $region32
        $region31: #{tpu_custom_call.1} parent=11 // pred_region
          _
        $region32: #{tpu_custom_call.1} parent=11 // pred_fallthru
          _
        // Predicated region
        $region33: #{tpu_custom_call.1} parent=11 // pred_check
          %p374 = pneg %p229
        $region34: #{tpu_custom_call.1} parent=11 // pred_check_branch
          %376 = sbr.rel (%p374) target = $region36
        $region35: #{tpu_custom_call.1} parent=11 // pred_region
          _
        $region36: #{tpu_custom_call.1} parent=11 // pred_fallthru
          _
        // Predicated region
        $region37: #{tpu_custom_call.1} parent=11 // pred_check
          %p377 = pneg %p250
        $region38: #{tpu_custom_call.1} parent=11 // pred_check_branch
          %379 = sbr.rel (%p377) target = $region40
        $region39: #{tpu_custom_call.1} parent=11 // pred_region
          %s381 = ssub.s32 8192, 8192
          %382 = vsyncadd [#allocation3], %s381
          %s383 = sshll.u32 [#allocation2], 4
          %s384 = int_to_ptr.vmem [resolvable:$true] %s383
          %389 = dma.hbm_to_vmem [thread:$0]  %s9, 8192, %s384, [#allocation3], 64, 64, 4
        $region40: #{tpu_custom_call.1} parent=11 // pred_fallthru
          _
        // Predicated region
        $region41: #{tpu_custom_call.1} parent=11 // pred_check
          %p390 = pneg %p271
        $region42: #{tpu_custom_call.1} parent=11 // pred_check_branch
          %392 = sbr.rel (%p390) target = $region44
        $region43: #{tpu_custom_call.1} parent=11 // pred_region
          %s394 = ssub.s32 1536, 1536
          %395 = vsyncadd [#allocation6], %s394
          %s396 = sshll.u32 [#allocation5], 4
          %s397 = int_to_ptr.vmem [resolvable:$true] %s396
          %402 = dma.hbm_to_vmem [thread:$0]  %s10, 1536, %s397, [#allocation6], 64, 64, 4
        $region44: #{tpu_custom_call.1} parent=11 // pred_fallthru
          _
        // Predicated region
        $region45: #{tpu_custom_call.1} parent=11 // pred_check
          %p403 = pneg %p292
        $region46: #{tpu_custom_call.1} parent=11 // pred_check_branch
          %405 = sbr.rel (%p403) target = $region48
        $region47: #{tpu_custom_call.1} parent=11 // pred_region
          _
        $region48: #{tpu_custom_call.1} parent=11 // pred_fallthru
          _
      $region12: #{tpu_custom_call.1} parent=5 // pred_fallthru
        _
      %p406 = scmp.lt.s32.totalorder %s25, 2
      // Predicated region
      $region49: #{tpu_custom_call.1} parent=5 // pred_check
        %p407 = pneg %p406
      $region50: #{tpu_custom_call.1} parent=5 // pred_check_branch
        %409 = sbr.rel (%p407) target = $region52
      $region51: #{tpu_custom_call.1} parent=5 // pred_region
        // Predicated region
        $region53: #{tpu_custom_call.1} parent=51 // pred_check
          %p410 = pneg %p45
        $region54: #{tpu_custom_call.1} parent=51 // pred_check_branch
          %412 = sbr.rel (%p410) target = $region56
        $region55: #{tpu_custom_call.1} parent=51 // pred_region
          %s413 = smul.u32 32, %s25
          %p414 = scmp.lt.s32.totalorder %s413, 63
          %s415 = scalar_select %p414, %s413, 63
          %s416 = smul.addr %s415, 8
          %s417 = scalar_lea.vmem %s0, %s416
          %s418 = smul.u32 32, %s25
        $region56: #{tpu_custom_call.1} parent=51 // pred_fallthru
          _
        // Predicated region
        $region57: #{tpu_custom_call.1} parent=51 // pred_check
          %p419 = pneg %p71
        $region58: #{tpu_custom_call.1} parent=51 // pred_check_branch
          %421 = sbr.rel (%p419) target = $region60
        $region59: #{tpu_custom_call.1} parent=51 // pred_region
          %s422 = smul.u32 32, %s25
          %p423 = scmp.lt.s32.totalorder %s422, 63
          %s424 = scalar_select %p423, %s422, 63
          %s425 = smul.addr %s424, 8
          %s426 = scalar_lea.vmem %s1, %s425
          %s427 = smul.u32 32, %s25
        $region60: #{tpu_custom_call.1} parent=51 // pred_fallthru
          _
        // Predicated region
        $region61: #{tpu_custom_call.1} parent=51 // pred_check
          %p428 = pneg %p97
        $region62: #{tpu_custom_call.1} parent=51 // pred_check_branch
          %430 = sbr.rel (%p428) target = $region64
        $region63: #{tpu_custom_call.1} parent=51 // pred_region
          %s431 = smul.u32 32, %s25
          %p432 = scmp.lt.s32.totalorder %s431, 63
          %s433 = scalar_select %p432, %s431, 63
          %s434 = smul.addr %s433, 8
          %s435 = scalar_lea.vmem %s2, %s434
          %s436 = smul.u32 32, %s25
        $region64: #{tpu_custom_call.1} parent=51 // pred_fallthru
          _
      $region52: #{tpu_custom_call.1} parent=5 // pred_fallthru
        _
      %p437 = scmp.le.s32.totalorder 1, %s25
      %p438 = scmp.lt.s32.totalorder %s25, 3
      %p439 = pnand %p437, %p438
      %p440 = pneg %p439
      // Predicated region
      $region65: #{tpu_custom_call.1} parent=5 // pred_check
        _
      $region66: #{tpu_custom_call.1} parent=5 // pred_check_branch
        %442 = sbr.rel (%p439) target = $region68
      $region67: #{tpu_custom_call.1} parent=5 // pred_region
        %s443 = ssub.s32 %s25, 1
        // Predicated region
        $region69: #{tpu_custom_call.1} parent=67 // pred_check
          %p444 = pneg %p250
        $region70: #{tpu_custom_call.1} parent=67 // pred_check_branch
          %446 = sbr.rel (%p444) target = $region72
        $region71: #{tpu_custom_call.1} parent=67 // pred_region
          %447 = dma.done [#allocation3], 8192
        $region72: #{tpu_custom_call.1} parent=67 // pred_fallthru
          _
        // Predicated region
        $region73: #{tpu_custom_call.1} parent=67 // pred_check
          %p448 = pneg %p271
        $region74: #{tpu_custom_call.1} parent=67 // pred_check_branch
          %450 = sbr.rel (%p448) target = $region76
        $region75: #{tpu_custom_call.1} parent=67 // pred_region
          %451 = dma.done [#allocation6], 1536
        $region76: #{tpu_custom_call.1} parent=67 // pred_fallthru
          _
        %s452 = smul.u32 32, %s30
        %p453 = scmp.lt.s32.totalorder %s452, 63
        %s454 = scalar_select %p453, %s452, 63
        %s455 = smul.addr %s454, 8
        %s456 = scalar_lea.vmem %s0, %s455
        %p457 = pneg %p51
        %p458 = pneg %p48
        %s459 = smul.u32 32, %s30
        %p460 = scmp.lt.s32.totalorder %s459, 63
        %s461 = scalar_select %p460, %s459, 63
        %s462 = smul.addr %s461, 8
        %s463 = scalar_lea.vmem %s1, %s462
        %p464 = pneg %p77
        %p465 = pneg %p74
        %s466 = smul.u32 32, %s30
        %p467 = scmp.lt.s32.totalorder %s466, 63
        %s468 = scalar_select %p467, %s466, 63
        %s469 = smul.addr %s468, 8
        %s470 = scalar_lea.vmem %s2, %s469
        %p471 = pneg %p103
        %p472 = pneg %p100
        %p473 = pneg %p124
        %p474 = pneg %p121
        %p475 = pneg %p145
        %p476 = pneg %p142
        %p477 = pneg %p166
        %p478 = pneg %p163
        %p479 = pneg %p187
        %p480 = pneg %p184
        %p481 = pneg %p208
        %p482 = pneg %p205
        %p483 = pneg %p229
        %p484 = pneg %p226
        %p485 = pneg %p250
        %p486 = pneg %p247
        %p487 = pneg %p271
        %p488 = pneg %p268
        %p489 = pneg %p292
        %p490 = pneg %p289
        %p491 = pneg %p318
        %p492 = pneg %p315
        %s493 = sand.u32 %s305, 1
        %s494 = scalar_lea.sflag [#allocation4], %s493
        %s495 = sand.u32 %s305, 1
        %s496 = smul.addr %s495, 256
        %s497 = scalar_lea.vmem [#allocation7], %s496
        %p498 = pneg %p344
        %p499 = pneg %p341
        %s500 = smul.u32 32, %s30
        %p501 = scmp.lt.s32.totalorder %s500, 63
        %s502 = scalar_select %p501, %s500, 63
        %s503 = smul.addr %s502, 8
        %s504 = scalar_lea.vmem %s13, %s503
        %s505 = smul.u32 32, %s30
        %p506 = scmp.lt.s32.totalorder %s505, 63
        %s507 = scalar_select %p506, %s505, 63
        %s508 = smul.addr %s507, 8
        %s509 = scalar_lea.vmem %s0, %s508
        %s510 = smul.u32 32, %s30
        %s511 = smul.u32 32, %s30
        %p512 = scmp.lt.s32.totalorder %s511, 63
        %s513 = scalar_select %p512, %s511, 63
        %s514 = smul.addr %s513, 8
        %s515 = scalar_lea.vmem %s1, %s514
        %s516 = smul.u32 32, %s30
        %s517 = smul.u32 32, %s30
        %p518 = scmp.lt.s32.totalorder %s517, 63
        %s519 = scalar_select %p518, %s517, 63
        %s520 = smul.addr %s519, 8
        %s521 = scalar_lea.vmem %s2, %s520
        %s522 = smul.u32 32, %s30
        %s523 = smul.u32 32, %s30
        %s524 = smul.u32 32, %s30
        %p525 = scmp.lt.s32.totalorder %s524, 63
        %s526 = scalar_select %p525, %s524, 63
        %s527 = smul.addr %s526, 8
        %s528 = scalar_lea.vmem %s13, %s527
        %s529 = smul.u32 32, %s30
        %v531 = vld [vmem:[%s509] sm:$0xff]
        %v532 = vld [vmem:[%s509 + $0x8] sm:$0xff]
        %v533 = vld [vmem:[%s509 + $0x10] sm:$0xff]
        %v534 = vld [vmem:[%s509 + $0x18] sm:$0xff]
        %v535 = vld [vmem:[%s509 + $0x20] sm:$0xff]
        %v536 = vld [vmem:[%s509 + $0x28] sm:$0xff]
        %v537 = vld [vmem:[%s509 + $0x30] sm:$0xff]
        %v538 = vld [vmem:[%s509 + $0x38] sm:$0xff]
        %v539 = vld [vmem:[%s509 + $0x40] sm:$0xff]
        %v540 = vld [vmem:[%s509 + $0x48] sm:$0xff]
        %v541 = vld [vmem:[%s509 + $0x50] sm:$0xff]
        %v542 = vld [vmem:[%s509 + $0x58] sm:$0xff]
        %v543 = vld [vmem:[%s509 + $0x60] sm:$0xff]
        %v544 = vld [vmem:[%s509 + $0x68] sm:$0xff]
        %v545 = vld [vmem:[%s509 + $0x70] sm:$0xff]
        %v546 = vld [vmem:[%s509 + $0x78] sm:$0xff]
        %v547 = vld [vmem:[%s509 + $0x80] sm:$0xff]
        %v548 = vld [vmem:[%s509 + $0x88] sm:$0xff]
        %v549 = vld [vmem:[%s509 + $0x90] sm:$0xff]
        %v550 = vld [vmem:[%s509 + $0x98] sm:$0xff]
        %v551 = vld [vmem:[%s509 + $0xa0] sm:$0xff]
        %v552 = vld [vmem:[%s509 + $0xa8] sm:$0xff]
        %v553 = vld [vmem:[%s509 + $0xb0] sm:$0xff]
        %v554 = vld [vmem:[%s509 + $0xb8] sm:$0xff]
        %v555 = vld [vmem:[%s509 + $0xc0] sm:$0xff]
        %v556 = vld [vmem:[%s509 + $0xc8] sm:$0xff]
        %v557 = vld [vmem:[%s509 + $0xd0] sm:$0xff]
        %v558 = vld [vmem:[%s509 + $0xd8] sm:$0xff]
        %v559 = vld [vmem:[%s509 + $0xe0] sm:$0xff]
        %v560 = vld [vmem:[%s509 + $0xe8] sm:$0xff]
        %v561 = vld [vmem:[%s509 + $0xf0] sm:$0xff]
        %v562 = vld [vmem:[%s509 + $0xf8] sm:$0xff]
        %v563 = vld [vmem:[%s515] sm:$0xff]
        %v564 = vld [vmem:[%s515 + $0x8] sm:$0xff]
        %v565 = vld [vmem:[%s515 + $0x10] sm:$0xff]
        %v566 = vld [vmem:[%s515 + $0x18] sm:$0xff]
        %v567 = vld [vmem:[%s515 + $0x20] sm:$0xff]
        %v568 = vld [vmem:[%s515 + $0x28] sm:$0xff]
        %v569 = vld [vmem:[%s515 + $0x30] sm:$0xff]
        %v570 = vld [vmem:[%s515 + $0x38] sm:$0xff]
        %v571 = vld [vmem:[%s515 + $0x40] sm:$0xff]
        %v572 = vld [vmem:[%s515 + $0x48] sm:$0xff]
        %v573 = vld [vmem:[%s515 + $0x50] sm:$0xff]
        %v574 = vld [vmem:[%s515 + $0x58] sm:$0xff]
        %v575 = vld [vmem:[%s515 + $0x60] sm:$0xff]
        %v576 = vld [vmem:[%s515 + $0x68] sm:$0xff]
        %v577 = vld [vmem:[%s515 + $0x70] sm:$0xff]
        %v578 = vld [vmem:[%s515 + $0x78] sm:$0xff]
        %v579 = vld [vmem:[%s515 + $0x80] sm:$0xff]
        %v580 = vld [vmem:[%s515 + $0x88] sm:$0xff]
        %v581 = vld [vmem:[%s515 + $0x90] sm:$0xff]
        %v582 = vld [vmem:[%s515 + $0x98] sm:$0xff]
        %v583 = vld [vmem:[%s515 + $0xa0] sm:$0xff]
        %v584 = vld [vmem:[%s515 + $0xa8] sm:$0xff]
        %v585 = vld [vmem:[%s515 + $0xb0] sm:$0xff]
        %v586 = vld [vmem:[%s515 + $0xb8] sm:$0xff]
        %v587 = vld [vmem:[%s515 + $0xc0] sm:$0xff]
        %v588 = vld [vmem:[%s515 + $0xc8] sm:$0xff]
        %v589 = vld [vmem:[%s515 + $0xd0] sm:$0xff]
        %v590 = vld [vmem:[%s515 + $0xd8] sm:$0xff]
        %v591 = vld [vmem:[%s515 + $0xe0] sm:$0xff]
        %v592 = vld [vmem:[%s515 + $0xe8] sm:$0xff]
        %v593 = vld [vmem:[%s515 + $0xf0] sm:$0xff]
        %v594 = vld [vmem:[%s515 + $0xf8] sm:$0xff]
        %v595 = vpack.c.bf16 %v532, %v531
        %v596 = vpack.c.bf16 %v564, %v563
        %v597 = vpack.c.bf16 %v534, %v533
        %v598 = vpack.c.bf16 %v566, %v565
        %v599 = vpack.c.bf16 %v536, %v535
        %v600 = vpack.c.bf16 %v568, %v567
        %v601 = vpack.c.bf16 %v538, %v537
        %v602 = vpack.c.bf16 %v570, %v569
        %v603 = vpack.c.bf16 %v540, %v539
        %v604 = vpack.c.bf16 %v572, %v571
        %v605 = vpack.c.bf16 %v542, %v541
        %v606 = vpack.c.bf16 %v574, %v573
        %v607 = vpack.c.bf16 %v544, %v543
        %v608 = vpack.c.bf16 %v576, %v575
        %v609 = vpack.c.bf16 %v546, %v545
        %v610 = vpack.c.bf16 %v578, %v577
        %v611 = vpack.c.bf16 %v548, %v547
        %v612 = vpack.c.bf16 %v580, %v579
        %v613 = vpack.c.bf16 %v550, %v549
        %v614 = vpack.c.bf16 %v582, %v581
        %v615 = vpack.c.bf16 %v552, %v551
        %v616 = vpack.c.bf16 %v584, %v583
        %v617 = vpack.c.bf16 %v554, %v553
        %v618 = vpack.c.bf16 %v586, %v585
        %v619 = vpack.c.bf16 %v556, %v555
        %v620 = vpack.c.bf16 %v588, %v587
        %v621 = vpack.c.bf16 %v558, %v557
        %v622 = vpack.c.bf16 %v590, %v589
        %v623 = vpack.c.bf16 %v560, %v559
        %v624 = vpack.c.bf16 %v592, %v591
        %v625 = vpack.c.bf16 %v562, %v561
        %v626 = vpack.c.bf16 %v594, %v593
        %v627 = vld [vmem:[%s5] sm:$0x3]
        %v628 = vld [vmem:[%s3] sm:$0xf]
        %v629 = vld [vmem:[%s3 + $0x4] sm:$0xf]
        %v630 = vld [vmem:[%s3 + $0x8] sm:$0xf]
        %v631 = vld [vmem:[%s3 + $0xc] sm:$0xf]
        %v632 = vld [vmem:[%s3 + $0x10] sm:$0xf]
        %v633 = vld [vmem:[%s3 + $0x14] sm:$0xf]
        %v634 = vld [vmem:[%s3 + $0x18] sm:$0xf]
        %v635 = vld [vmem:[%s3 + $0x1c] sm:$0xf]
        %v636 = vld [vmem:[%s3 + $0x20] sm:$0xf]
        %v637 = vld [vmem:[%s3 + $0x24] sm:$0xf]
        %v638 = vld [vmem:[%s3 + $0x28] sm:$0xf]
        %v639 = vld [vmem:[%s3 + $0x2c] sm:$0xf]
        %v640 = vld [vmem:[%s3 + $0x30] sm:$0xf]
        %v641 = vld [vmem:[%s3 + $0x34] sm:$0xf]
        %v642 = vld [vmem:[%s3 + $0x38] sm:$0xf]
        %v643 = vld [vmem:[%s3 + $0x3c] sm:$0xf]
        %v644 = vld [vmem:[%s3 + $0x40] sm:$0xf]
        %v645 = vld [vmem:[%s3 + $0x44] sm:$0xf]
        %v646 = vld [vmem:[%s3 + $0x48] sm:$0xf]
        %v647 = vld [vmem:[%s3 + $0x4c] sm:$0xf]
        %v648 = vlaneseq
        %v649 = vshrl.u32 %v648, 7
        %v650 = vsub.s32 0, %v649
        %v651 = vrot.slane %v627, %v650
        %v672 = vunpack.c.l.b16 %v628
        %v673 = vunpack.c.l.b16 %v629
        %v674 = vunpack.c.l.b16 %v630
        %v675 = vunpack.c.l.b16 %v631
        %v676 = vunpack.c.l.b16 %v632
        %v677 = vunpack.c.l.b16 %v633
        %v678 = vunpack.c.l.b16 %v634
        %v679 = vunpack.c.l.b16 %v635
        %v680 = vunpack.c.l.b16 %v636
        %v681 = vunpack.c.l.b16 %v637
        %v682 = vunpack.c.l.b16 %v638
        %v683 = vunpack.c.l.b16 %v639
        %v684 = vunpack.c.l.b16 %v640
        %v685 = vunpack.c.l.b16 %v641
        %v686 = vunpack.c.l.b16 %v642
        %v687 = vunpack.c.l.b16 %v643
        %v688 = vunpack.c.l.b16 %v644
        %v689 = vunpack.c.l.b16 %v645
        %v690 = vunpack.c.l.b16 %v646
        %v691 = vunpack.c.l.b16 %v647
        %v692 = vpack.c.b16 %v673, %v672
        %v693 = vpack.c.b16 %v675, %v674
        %v694 = vpack.c.b16 %v677, %v676
        %v695 = vpack.c.b16 %v679, %v678
        %v696 = vpack.c.b16 %v681, %v680
        %v697 = vpack.c.b16 %v683, %v682
        %v698 = vpack.c.b16 %v685, %v684
        %v699 = vpack.c.b16 %v687, %v686
        %v700 = vpack.c.b16 %v689, %v688
        %v701 = vpack.c.b16 %v691, %v690
        %vm712 = vcmask 261120
        %v714 = vsel %vm712, %v596, 0
        %v717 = vsel %vm712, %v598, 0
        %v720 = vsel %vm712, %v600, 0
        %v723 = vsel %vm712, %v602, 0
        %v726 = vsel %vm712, %v604, 0
        %v729 = vsel %vm712, %v606, 0
        %v732 = vsel %vm712, %v608, 0
        %v735 = vsel %vm712, %v610, 0
        %v738 = vsel %vm712, %v612, 0
        %v741 = vsel %vm712, %v614, 0
        %v744 = vsel %vm712, %v616, 0
        %v747 = vsel %vm712, %v618, 0
        %v750 = vsel %vm712, %v620, 0
        %v753 = vsel %vm712, %v622, 0
        %v756 = vsel %vm712, %v624, 0
        %v759 = vsel %vm712, %v626, 0
        %761 = vmatprep.subr.bf16.mxu0 0
        %762 = vmatpush1.bf16.msra.mxu0 %v699
        %763 = vmatprep.subr.bf16.mxu0 0
        %764 = vmatpush1.bf16.msra.mxu0 %v698
        %765 = vmatprep.subr.bf16.mxu0 0
        %766 = vmatpush1.bf16.msra.mxu0 %v697
        %767 = vmatprep.subr.bf16.mxu0 0
        %768 = vmatpush1.bf16.msra.mxu0 %v696
        %769 = vmatprep.subr.bf16.mxu0 0
        %770 = vmatpush1.bf16.msra.mxu0 %v695
        %771 = vmatprep.subr.bf16.mxu0 0
        %772 = vmatpush1.bf16.msra.mxu0 %v694
        %773 = vmatprep.subr.bf16.mxu0 0
        %774 = vmatpush1.bf16.msra.mxu0 %v693
        %775 = vmatprep.subr.bf16.mxu0 0
        %776 = vmatpush1.bf16.msra.mxu0 %v692
        %777 = vmatprep.subr.bf16.mxu0 0
        %778 = vmatpush2.bf16.msra.mxu0 0
        %779 = vmatprep.subr.bf16.mxu0 0
        %780 = vmatpush2.bf16.msra.mxu0 0
        %781 = vmatprep.subr.bf16.mxu0 0
        %782 = vmatpush2.bf16.msra.mxu0 0
        %783 = vmatprep.subr.bf16.mxu0 0
        %784 = vmatpush2.bf16.msra.mxu0 0
        %785 = vmatprep.subr.bf16.mxu0 0
        %786 = vmatpush2.bf16.msra.mxu0 0
        %787 = vmatprep.subr.bf16.mxu0 0
        %788 = vmatpush2.bf16.msra.mxu0 0
        %789 = vmatprep.subr.bf16.mxu0 0
        %790 = vmatpush2.bf16.msra.mxu0 %v701
        %791 = vmatprep.subr.bf16.mxu0 0
        %792 = vmatpush2.bf16.msra.mxu0 %v700
        %793 = vmatprep.mubr.bf16.mxu0 %v714
        %794 = vmatmul.mubr.bf16.gmra.mxu0 %v595
        %v795 = vpop.f32.mrf.mxu0
        %v796 = vadd.f32 %v651, %v795
        %v797 = vpop.f32.mrf.mxu0
        %v798 = vpop.f32.mrf.mxu0
        %v799 = vadd.f32 %v651, %v798
        %v800 = vpop.f32.mrf.mxu0
        %801 = vmatprep.mubr.bf16.mxu0 %v717
        %802 = vmatmul.mubr.bf16.gmra.mxu0 %v597
        %v803 = vpop.f32.mrf.mxu0
        %v804 = vadd.f32 %v651, %v803
        %v805 = vpop.f32.mrf.mxu0
        %v806 = vpop.f32.mrf.mxu0
        %v807 = vadd.f32 %v651, %v806
        %v808 = vpop.f32.mrf.mxu0
        %809 = vmatprep.mubr.bf16.mxu0 %v720
        %810 = vmatmul.mubr.bf16.gmra.mxu0 %v599
        %v811 = vpop.f32.mrf.mxu0
        %v812 = vadd.f32 %v651, %v811
        %v813 = vpop.f32.mrf.mxu0
        %v814 = vpop.f32.mrf.mxu0
        %v815 = vadd.f32 %v651, %v814
        %v816 = vpop.f32.mrf.mxu0
        %817 = vmatprep.mubr.bf16.mxu0 %v723
        %818 = vmatmul.mubr.bf16.gmra.mxu0 %v601
        %v819 = vpop.f32.mrf.mxu0
        %v820 = vadd.f32 %v651, %v819
        %v821 = vpop.f32.mrf.mxu0
        %v822 = vpop.f32.mrf.mxu0
        %v823 = vadd.f32 %v651, %v822
        %v824 = vpop.f32.mrf.mxu0
        %825 = vmatprep.mubr.bf16.mxu0 %v726
        %826 = vmatmul.mubr.bf16.gmra.mxu0 %v603
        %v827 = vpop.f32.mrf.mxu0
        %v828 = vadd.f32 %v651, %v827
        %v829 = vpop.f32.mrf.mxu0
        %v830 = vpop.f32.mrf.mxu0
        %v831 = vadd.f32 %v651, %v830
        %v832 = vpop.f32.mrf.mxu0
        %833 = vmatprep.mubr.bf16.mxu0 %v729
        %834 = vmatmul.mubr.bf16.gmra.mxu0 %v605
        %v835 = vpop.f32.mrf.mxu0
        %v836 = vadd.f32 %v651, %v835
        %v837 = vpop.f32.mrf.mxu0
        %v838 = vpop.f32.mrf.mxu0
        %v839 = vadd.f32 %v651, %v838
        %v840 = vpop.f32.mrf.mxu0
        %841 = vmatprep.mubr.bf16.mxu0 %v732
        %842 = vmatmul.mubr.bf16.gmra.mxu0 %v607
        %v843 = vpop.f32.mrf.mxu0
        %v844 = vadd.f32 %v651, %v843
        %v845 = vpop.f32.mrf.mxu0
        %v846 = vpop.f32.mrf.mxu0
        %v847 = vadd.f32 %v651, %v846
        %v848 = vpop.f32.mrf.mxu0
        %849 = vmatprep.mubr.bf16.mxu0 %v735
        %850 = vmatmul.mubr.bf16.gmra.mxu0 %v609
        %v851 = vpop.f32.mrf.mxu0
        %v852 = vadd.f32 %v651, %v851
        %v853 = vpop.f32.mrf.mxu0
        %v854 = vpop.f32.mrf.mxu0
        %v855 = vadd.f32 %v651, %v854
        %v856 = vpop.f32.mrf.mxu0
        %857 = vmatprep.mubr.bf16.mxu0 %v738
        %858 = vmatmul.mubr.bf16.gmra.mxu0 %v611
        %v859 = vpop.f32.mrf.mxu0
        %v860 = vadd.f32 %v651, %v859
        %v861 = vpop.f32.mrf.mxu0
        %v862 = vpop.f32.mrf.mxu0
        %v863 = vadd.f32 %v651, %v862
        %v864 = vpop.f32.mrf.mxu0
        %865 = vmatprep.mubr.bf16.mxu0 %v741
        %866 = vmatmul.mubr.bf16.gmra.mxu0 %v613
        %v867 = vpop.f32.mrf.mxu0
        %v868 = vadd.f32 %v651, %v867
        %v869 = vpop.f32.mrf.mxu0
        %v870 = vpop.f32.mrf.mxu0
        %v871 = vadd.f32 %v651, %v870
        %v872 = vpop.f32.mrf.mxu0
        %873 = vmatprep.mubr.bf16.mxu0 %v744
        %874 = vmatmul.mubr.bf16.gmra.mxu0 %v615
        %v875 = vpop.f32.mrf.mxu0
        %v876 = vadd.f32 %v651, %v875
        %v877 = vpop.f32.mrf.mxu0
        %v878 = vpop.f32.mrf.mxu0
        %v879 = vadd.f32 %v651, %v878
        %v880 = vpop.f32.mrf.mxu0
        %881 = vmatprep.mubr.bf16.mxu0 %v747
        %882 = vmatmul.mubr.bf16.gmra.mxu0 %v617
        %v883 = vpop.f32.mrf.mxu0
        %v884 = vadd.f32 %v651, %v883
        %v885 = vpop.f32.mrf.mxu0
        %v886 = vpop.f32.mrf.mxu0
        %v887 = vadd.f32 %v651, %v886
        %v888 = vpop.f32.mrf.mxu0
        %889 = vmatprep.mubr.bf16.mxu0 %v750
        %890 = vmatmul.mubr.bf16.gmra.mxu0 %v619
        %v891 = vpop.f32.mrf.mxu0
        %v892 = vadd.f32 %v651, %v891
        %v893 = vpop.f32.mrf.mxu0
        %v894 = vpop.f32.mrf.mxu0
        %v895 = vadd.f32 %v651, %v894
        %v896 = vpop.f32.mrf.mxu0
        %897 = vmatprep.mubr.bf16.mxu0 %v753
        %898 = vmatmul.mubr.bf16.gmra.mxu0 %v621
        %v899 = vpop.f32.mrf.mxu0
        %v900 = vadd.f32 %v651, %v899
        %v901 = vpop.f32.mrf.mxu0
        %v902 = vpop.f32.mrf.mxu0
        %v903 = vadd.f32 %v651, %v902
        %v904 = vpop.f32.mrf.mxu0
        %905 = vmatprep.mubr.bf16.mxu0 %v756
        %906 = vmatmul.mubr.bf16.gmra.mxu0 %v623
        %v907 = vpop.f32.mrf.mxu0
        %v908 = vadd.f32 %v651, %v907
        %v909 = vpop.f32.mrf.mxu0
        %v910 = vpop.f32.mrf.mxu0
        %v911 = vadd.f32 %v651, %v910
        %v912 = vpop.f32.mrf.mxu0
        %913 = vmatprep.mubr.bf16.mxu0 %v759
        %914 = vmatmul.mubr.bf16.gmra.mxu0 %v625
        %v915 = vpop.f32.mrf.mxu0
        %v916 = vadd.f32 %v651, %v915
        %v917 = vpop.f32.mrf.mxu0
        %v918 = vpop.f32.mrf.mxu0
        %v919 = vadd.f32 %v651, %v918
        %v920 = vpop.f32.mrf.mxu0
        %921 = vdwg.mxu0
        %v922 = vmax.f32 %v796, 0.0
        %v923 = vmax.f32 %v799, 0.0
        %v924 = vmax.f32 %v804, 0.0
        %v925 = vmax.f32 %v807, 0.0
        %v926 = vmax.f32 %v812, 0.0
        %v927 = vmax.f32 %v815, 0.0
        %v928 = vmax.f32 %v820, 0.0
        %v929 = vmax.f32 %v823, 0.0
        %v930 = vmax.f32 %v828, 0.0
        %v931 = vmax.f32 %v831, 0.0
        %v932 = vmax.f32 %v836, 0.0
        %v933 = vmax.f32 %v839, 0.0
        %v934 = vmax.f32 %v844, 0.0
        %v935 = vmax.f32 %v847, 0.0
        %v936 = vmax.f32 %v852, 0.0
        %v937 = vmax.f32 %v855, 0.0
        %v938 = vmax.f32 %v860, 0.0
        %v939 = vmax.f32 %v863, 0.0
        %v940 = vmax.f32 %v868, 0.0
        %v941 = vmax.f32 %v871, 0.0
        %v942 = vmax.f32 %v876, 0.0
        %v943 = vmax.f32 %v879, 0.0
        %v944 = vmax.f32 %v884, 0.0
        %v945 = vmax.f32 %v887, 0.0
        %v946 = vmax.f32 %v892, 0.0
        %v947 = vmax.f32 %v895, 0.0
        %v948 = vmax.f32 %v900, 0.0
        %v949 = vmax.f32 %v903, 0.0
        %v950 = vmax.f32 %v908, 0.0
        %v951 = vmax.f32 %v911, 0.0
        %v952 = vmax.f32 %v916, 0.0
        %v953 = vmax.f32 %v919, 0.0
        %v954 = vpack.c.bf16 %v923, %v922
        %v955 = vpack.c.bf16 %v925, %v924
        %v956 = vpack.c.bf16 %v927, %v926
        %v957 = vpack.c.bf16 %v929, %v928
        %v958 = vpack.c.bf16 %v931, %v930
        %v959 = vpack.c.bf16 %v933, %v932
        %v960 = vpack.c.bf16 %v935, %v934
        %v961 = vpack.c.bf16 %v937, %v936
        %v962 = vpack.c.bf16 %v939, %v938
        %v963 = vpack.c.bf16 %v941, %v940
        %v964 = vpack.c.bf16 %v943, %v942
        %v965 = vpack.c.bf16 %v945, %v944
        %v966 = vpack.c.bf16 %v947, %v946
        %v967 = vpack.c.bf16 %v949, %v948
        %v968 = vpack.c.bf16 %v951, %v950
        %v969 = vpack.c.bf16 %v953, %v952
        %v970 = vld [vmem:[%s4] sm:$0xf]
        %v971 = vld [vmem:[%s4 + $0x4] sm:$0xf]
        %v972 = vld [vmem:[%s4 + $0x8] sm:$0xf]
        %v973 = vld [vmem:[%s4 + $0xc] sm:$0xf]
        %v974 = vld [vmem:[%s4 + $0x10] sm:$0xf]
        %v975 = vld [vmem:[%s4 + $0x14] sm:$0xf]
        %v976 = vld [vmem:[%s4 + $0x18] sm:$0xf]
        %v977 = vld [vmem:[%s4 + $0x1c] sm:$0xf]
        %v978 = vlaneseq
        %v979 = vshrl.u32 %v978, 7
        %v980 = vsub.s32 1, %v979
        %v981 = vrot.slane %v627, %v980
        %v990 = vunpack.c.l.b16 %v970
        %v991 = vunpack.c.l.b16 %v971
        %v992 = vunpack.c.l.b16 %v972
        %v993 = vunpack.c.l.b16 %v973
        %v994 = vunpack.c.l.b16 %v974
        %v995 = vunpack.c.l.b16 %v975
        %v996 = vunpack.c.l.b16 %v976
        %v997 = vunpack.c.l.b16 %v977
        %v998 = vpack.c.b16 %v991, %v990
        %v999 = vpack.c.b16 %v993, %v992
        %v1000 = vpack.c.b16 %v995, %v994
        %v1001 = vpack.c.b16 %v997, %v996
        %vm1006 = vcmask 523264
        %v1008 = vsel %vm1006, %v954, 0
        %v1011 = vsel %vm1006, %v955, 0
        %v1014 = vsel %vm1006, %v956, 0
        %v1017 = vsel %vm1006, %v957, 0
        %v1020 = vsel %vm1006, %v958, 0
        %v1023 = vsel %vm1006, %v959, 0
        %v1026 = vsel %vm1006, %v960, 0
        %v1029 = vsel %vm1006, %v961, 0
        %v1032 = vsel %vm1006, %v962, 0
        %v1035 = vsel %vm1006, %v963, 0
        %v1038 = vsel %vm1006, %v964, 0
        %v1041 = vsel %vm1006, %v965, 0
        %v1044 = vsel %vm1006, %v966, 0
        %v1047 = vsel %vm1006, %v967, 0
        %v1050 = vsel %vm1006, %v968, 0
        %v1053 = vsel %vm1006, %v969, 0
        %1055 = vmatprep.subr.bf16.mxu0 0
        %1056 = vmatpush1.bf16.msra.mxu0 0
        %1057 = vmatprep.subr.bf16.mxu0 0
        %1058 = vmatpush1.bf16.msra.mxu0 0
        %1059 = vmatprep.subr.bf16.mxu0 0
        %1060 = vmatpush1.bf16.msra.mxu0 0
        %1061 = vmatprep.subr.bf16.mxu0 0
        %1062 = vmatpush1.bf16.msra.mxu0 0
        %1063 = vmatprep.subr.bf16.mxu0 0
        %1064 = vmatpush1.bf16.msra.mxu0 %v1001
        %1065 = vmatprep.subr.bf16.mxu0 0
        %1066 = vmatpush1.bf16.msra.mxu0 %v1000
        %1067 = vmatprep.subr.bf16.mxu0 0
        %1068 = vmatpush1.bf16.msra.mxu0 %v999
        %1069 = vmatprep.subr.bf16.mxu0 0
        %1070 = vmatpush1.bf16.msra.mxu0 %v998
        %1071 = vmatprep.subr.bf16.mxu0 0
        %1072 = vmatpush2.bf16.msra.mxu0 0
        %1073 = vmatprep.subr.bf16.mxu0 0
        %1074 = vmatpush2.bf16.msra.mxu0 0
        %1075 = vmatprep.subr.bf16.mxu0 0
        %1076 = vmatpush2.bf16.msra.mxu0 0
        %1077 = vmatprep.subr.bf16.mxu0 0
        %1078 = vmatpush2.bf16.msra.mxu0 0
        %1079 = vmatprep.subr.bf16.mxu0 0
        %1080 = vmatpush2.bf16.msra.mxu0 0
        %1081 = vmatprep.subr.bf16.mxu0 0
        %1082 = vmatpush2.bf16.msra.mxu0 0
        %1083 = vmatprep.subr.bf16.mxu0 0
        %1084 = vmatpush2.bf16.msra.mxu0 0
        %1085 = vmatprep.subr.bf16.mxu0 0
        %1086 = vmatpush2.bf16.msra.mxu0 0
        %1087 = vmatprep.mubr.bf16.mxu0 0
        %1088 = vmatmul.mubr.bf16.gmra.mxu0 %v1008
        %v1089 = vpop.f32.mrf.mxu0
        %v1090 = vadd.f32 %v981, %v1089
        %v1091 = vpop.f32.mrf.mxu0
        %v1092 = vpop.f32.mrf.mxu0
        %v1093 = vadd.f32 %v981, %v1092
        %v1094 = vpop.f32.mrf.mxu0
        %1095 = vmatprep.mubr.bf16.mxu0 0
        %1096 = vmatmul.mubr.bf16.gmra.mxu0 %v1011
        %v1097 = vpop.f32.mrf.mxu0
        %v1098 = vadd.f32 %v981, %v1097
        %v1099 = vpop.f32.mrf.mxu0
        %v1100 = vpop.f32.mrf.mxu0
        %v1101 = vadd.f32 %v981, %v1100
        %v1102 = vpop.f32.mrf.mxu0
        %1103 = vmatprep.mubr.bf16.mxu0 0
        %1104 = vmatmul.mubr.bf16.gmra.mxu0 %v1014
        %v1105 = vpop.f32.mrf.mxu0
        %v1106 = vadd.f32 %v981, %v1105
        %v1107 = vpop.f32.mrf.mxu0
        %v1108 = vpop.f32.mrf.mxu0
        %v1109 = vadd.f32 %v981, %v1108
        %v1110 = vpop.f32.mrf.mxu0
        %1111 = vmatprep.mubr.bf16.mxu0 0
        %1112 = vmatmul.mubr.bf16.gmra.mxu0 %v1017
        %v1113 = vpop.f32.mrf.mxu0
        %v1114 = vadd.f32 %v981, %v1113
        %v1115 = vpop.f32.mrf.mxu0
        %v1116 = vpop.f32.mrf.mxu0
        %v1117 = vadd.f32 %v981, %v1116
        %v1118 = vpop.f32.mrf.mxu0
        %1119 = vmatprep.mubr.bf16.mxu0 0
        %1120 = vmatmul.mubr.bf16.gmra.mxu0 %v1020
        %v1121 = vpop.f32.mrf.mxu0
        %v1122 = vadd.f32 %v981, %v1121
        %v1123 = vpop.f32.mrf.mxu0
        %v1124 = vpop.f32.mrf.mxu0
        %v1125 = vadd.f32 %v981, %v1124
        %v1126 = vpop.f32.mrf.mxu0
        %1127 = vmatprep.mubr.bf16.mxu0 0
        %1128 = vmatmul.mubr.bf16.gmra.mxu0 %v1023
        %v1129 = vpop.f32.mrf.mxu0
        %v1130 = vadd.f32 %v981, %v1129
        %v1131 = vpop.f32.mrf.mxu0
        %v1132 = vpop.f32.mrf.mxu0
        %v1133 = vadd.f32 %v981, %v1132
        %v1134 = vpop.f32.mrf.mxu0
        %1135 = vmatprep.mubr.bf16.mxu0 0
        %1136 = vmatmul.mubr.bf16.gmra.mxu0 %v1026
        %v1137 = vpop.f32.mrf.mxu0
        %v1138 = vadd.f32 %v981, %v1137
        %v1139 = vpop.f32.mrf.mxu0
        %v1140 = vpop.f32.mrf.mxu0
        %v1141 = vadd.f32 %v981, %v1140
        %v1142 = vpop.f32.mrf.mxu0
        %1143 = vmatprep.mubr.bf16.mxu0 0
        %1144 = vmatmul.mubr.bf16.gmra.mxu0 %v1029
        %v1145 = vpop.f32.mrf.mxu0
        %v1146 = vadd.f32 %v981, %v1145
        %v1147 = vpop.f32.mrf.mxu0
        %v1148 = vpop.f32.mrf.mxu0
        %v1149 = vadd.f32 %v981, %v1148
        %v1150 = vpop.f32.mrf.mxu0
        %1151 = vmatprep.mubr.bf16.mxu0 0
        %1152 = vmatmul.mubr.bf16.gmra.mxu0 %v1032
        %v1153 = vpop.f32.mrf.mxu0
        %v1154 = vadd.f32 %v981, %v1153
        %v1155 = vpop.f32.mrf.mxu0
        %v1156 = vpop.f32.mrf.mxu0
        %v1157 = vadd.f32 %v981, %v1156
        %v1158 = vpop.f32.mrf.mxu0
        %1159 = vmatprep.mubr.bf16.mxu0 0
        %1160 = vmatmul.mubr.bf16.gmra.mxu0 %v1035
        %v1161 = vpop.f32.mrf.mxu0
        %v1162 = vadd.f32 %v981, %v1161
        %v1163 = vpop.f32.mrf.mxu0
        %v1164 = vpop.f32.mrf.mxu0
        %v1165 = vadd.f32 %v981, %v1164
        %v1166 = vpop.f32.mrf.mxu0
        %1167 = vmatprep.mubr.bf16.mxu0 0
        %1168 = vmatmul.mubr.bf16.gmra.mxu0 %v1038
        %v1169 = vpop.f32.mrf.mxu0
        %v1170 = vadd.f32 %v981, %v1169
        %v1171 = vpop.f32.mrf.mxu0
        %v1172 = vpop.f32.mrf.mxu0
        %v1173 = vadd.f32 %v981, %v1172
        %v1174 = vpop.f32.mrf.mxu0
        %1175 = vmatprep.mubr.bf16.mxu0 0
        %1176 = vmatmul.mubr.bf16.gmra.mxu0 %v1041
        %v1177 = vpop.f32.mrf.mxu0
        %v1178 = vadd.f32 %v981, %v1177
        %v1179 = vpop.f32.mrf.mxu0
        %v1180 = vpop.f32.mrf.mxu0
        %v1181 = vadd.f32 %v981, %v1180
        %v1182 = vpop.f32.mrf.mxu0
        %1183 = vmatprep.mubr.bf16.mxu0 0
        %1184 = vmatmul.mubr.bf16.gmra.mxu0 %v1044
        %v1185 = vpop.f32.mrf.mxu0
        %v1186 = vadd.f32 %v981, %v1185
        %v1187 = vpop.f32.mrf.mxu0
        %v1188 = vpop.f32.mrf.mxu0
        %v1189 = vadd.f32 %v981, %v1188
        %v1190 = vpop.f32.mrf.mxu0
        %1191 = vmatprep.mubr.bf16.mxu0 0
        %1192 = vmatmul.mubr.bf16.gmra.mxu0 %v1047
        %v1193 = vpop.f32.mrf.mxu0
        %v1194 = vadd.f32 %v981, %v1193
        %v1195 = vpop.f32.mrf.mxu0
        %v1196 = vpop.f32.mrf.mxu0
        %v1197 = vadd.f32 %v981, %v1196
        %v1198 = vpop.f32.mrf.mxu0
        %1199 = vmatprep.mubr.bf16.mxu0 0
        %1200 = vmatmul.mubr.bf16.gmra.mxu0 %v1050
        %v1201 = vpop.f32.mrf.mxu0
        %v1202 = vadd.f32 %v981, %v1201
        %v1203 = vpop.f32.mrf.mxu0
        %v1204 = vpop.f32.mrf.mxu0
        %v1205 = vadd.f32 %v981, %v1204
        %v1206 = vpop.f32.mrf.mxu0
        %1207 = vmatprep.mubr.bf16.mxu0 0
        %1208 = vmatmul.mubr.bf16.gmra.mxu0 %v1053
        %v1209 = vpop.f32.mrf.mxu0
        %v1210 = vadd.f32 %v981, %v1209
        %v1211 = vpop.f32.mrf.mxu0
        %v1212 = vpop.f32.mrf.mxu0
        %v1213 = vadd.f32 %v981, %v1212
        %v1214 = vpop.f32.mrf.mxu0
        %1215 = vdwg.mxu0
        %v1216 = vsel %vm1006, %v1090, -inf
        %1217 = vmax.xlane.f32.xlu0 %v1216
        %v1218 = vpop.xlane.xlu0 %1217
        %v1219 = vsel %vm1006, %v1093, -inf
        %1220 = vmax.xlane.f32.xlu0 %v1219
        %v1221 = vpop.xlane.xlu0 %1220
        %v1222 = vsel %vm1006, %v1098, -inf
        %1223 = vmax.xlane.f32.xlu0 %v1222
        %v1224 = vpop.xlane.xlu0 %1223
        %v1225 = vsel %vm1006, %v1101, -inf
        %1226 = vmax.xlane.f32.xlu0 %v1225
        %v1227 = vpop.xlane.xlu0 %1226
        %v1228 = vsel %vm1006, %v1106, -inf
        %1229 = vmax.xlane.f32.xlu0 %v1228
        %v1230 = vpop.xlane.xlu0 %1229
        %v1231 = vsel %vm1006, %v1109, -inf
        %1232 = vmax.xlane.f32.xlu0 %v1231
        %v1233 = vpop.xlane.xlu0 %1232
        %v1234 = vsel %vm1006, %v1114, -inf
        %1235 = vmax.xlane.f32.xlu0 %v1234
        %v1236 = vpop.xlane.xlu0 %1235
        %v1237 = vsel %vm1006, %v1117, -inf
        %1238 = vmax.xlane.f32.xlu0 %v1237
        %v1239 = vpop.xlane.xlu0 %1238
        %v1240 = vsel %vm1006, %v1122, -inf
        %1241 = vmax.xlane.f32.xlu0 %v1240
        %v1242 = vpop.xlane.xlu0 %1241
        %v1243 = vsel %vm1006, %v1125, -inf
        %1244 = vmax.xlane.f32.xlu0 %v1243
        %v1245 = vpop.xlane.xlu0 %1244
        %v1246 = vsel %vm1006, %v1130, -inf
        %1247 = vmax.xlane.f32.xlu0 %v1246
        %v1248 = vpop.xlane.xlu0 %1247
        %v1249 = vsel %vm1006, %v1133, -inf
        %1250 = vmax.xlane.f32.xlu0 %v1249
        %v1251 = vpop.xlane.xlu0 %1250
        %v1252 = vsel %vm1006, %v1138, -inf
        %1253 = vmax.xlane.f32.xlu0 %v1252
        %v1254 = vpop.xlane.xlu0 %1253
        %v1255 = vsel %vm1006, %v1141, -inf
        %1256 = vmax.xlane.f32.xlu0 %v1255
        %v1257 = vpop.xlane.xlu0 %1256
        %v1258 = vsel %vm1006, %v1146, -inf
        %1259 = vmax.xlane.f32.xlu0 %v1258
        %v1260 = vpop.xlane.xlu0 %1259
        %v1261 = vsel %vm1006, %v1149, -inf
        %1262 = vmax.xlane.f32.xlu0 %v1261
        %v1263 = vpop.xlane.xlu0 %1262
        %v1264 = vsel %vm1006, %v1154, -inf
        %1265 = vmax.xlane.f32.xlu0 %v1264
        %v1266 = vpop.xlane.xlu0 %1265
        %v1267 = vsel %vm1006, %v1157, -inf
        %1268 = vmax.xlane.f32.xlu0 %v1267
        %v1269 = vpop.xlane.xlu0 %1268
        %v1270 = vsel %vm1006, %v1162, -inf
        %1271 = vmax.xlane.f32.xlu0 %v1270
        %v1272 = vpop.xlane.xlu0 %1271
        %v1273 = vsel %vm1006, %v1165, -inf
        %1274 = vmax.xlane.f32.xlu0 %v1273
        %v1275 = vpop.xlane.xlu0 %1274
        %v1276 = vsel %vm1006, %v1170, -inf
        %1277 = vmax.xlane.f32.xlu0 %v1276
        %v1278 = vpop.xlane.xlu0 %1277
        %v1279 = vsel %vm1006, %v1173, -inf
        %1280 = vmax.xlane.f32.xlu0 %v1279
        %v1281 = vpop.xlane.xlu0 %1280
        %v1282 = vsel %vm1006, %v1178, -inf
        %1283 = vmax.xlane.f32.xlu0 %v1282
        %v1284 = vpop.xlane.xlu0 %1283
        %v1285 = vsel %vm1006, %v1181, -inf
        %1286 = vmax.xlane.f32.xlu0 %v1285
        %v1287 = vpop.xlane.xlu0 %1286
        %v1288 = vsel %vm1006, %v1186, -inf
        %1289 = vmax.xlane.f32.xlu0 %v1288
        %v1290 = vpop.xlane.xlu0 %1289
        %v1291 = vsel %vm1006, %v1189, -inf
        %1292 = vmax.xlane.f32.xlu0 %v1291
        %v1293 = vpop.xlane.xlu0 %1292
        %v1294 = vsel %vm1006, %v1194, -inf
        %1295 = vmax.xlane.f32.xlu0 %v1294
        %v1296 = vpop.xlane.xlu0 %1295
        %v1297 = vsel %vm1006, %v1197, -inf
        %1298 = vmax.xlane.f32.xlu0 %v1297
        %v1299 = vpop.xlane.xlu0 %1298
        %v1300 = vsel %vm1006, %v1202, -inf
        %1301 = vmax.xlane.f32.xlu0 %v1300
        %v1302 = vpop.xlane.xlu0 %1301
        %v1303 = vsel %vm1006, %v1205, -inf
        %1304 = vmax.xlane.f32.xlu0 %v1303
        %v1305 = vpop.xlane.xlu0 %1304
        %v1306 = vsel %vm1006, %v1210, -inf
        %1307 = vmax.xlane.f32.xlu0 %v1306
        %v1308 = vpop.xlane.xlu0 %1307
        %v1309 = vsel %vm1006, %v1213, -inf
        %1310 = vmax.xlane.f32.xlu0 %v1309
        %v1311 = vpop.xlane.xlu0 %1310
        %v1312 = vsub.f32 %v1090, %v1218
        %v1313 = vsub.f32 %v1093, %v1221
        %v1314 = vsub.f32 %v1098, %v1224
        %v1315 = vsub.f32 %v1101, %v1227
        %v1316 = vsub.f32 %v1106, %v1230
        %v1317 = vsub.f32 %v1109, %v1233
        %v1318 = vsub.f32 %v1114, %v1236
        %v1319 = vsub.f32 %v1117, %v1239
        %v1320 = vsub.f32 %v1122, %v1242
        %v1321 = vsub.f32 %v1125, %v1245
        %v1322 = vsub.f32 %v1130, %v1248
        %v1323 = vsub.f32 %v1133, %v1251
        %v1324 = vsub.f32 %v1138, %v1254
        %v1325 = vsub.f32 %v1141, %v1257
        %v1326 = vsub.f32 %v1146, %v1260
        %v1327 = vsub.f32 %v1149, %v1263
        %v1328 = vsub.f32 %v1154, %v1266
        %v1329 = vsub.f32 %v1157, %v1269
        %v1330 = vsub.f32 %v1162, %v1272
        %v1331 = vsub.f32 %v1165, %v1275
        %v1332 = vsub.f32 %v1170, %v1278
        %v1333 = vsub.f32 %v1173, %v1281
        %v1334 = vsub.f32 %v1178, %v1284
        %v1335 = vsub.f32 %v1181, %v1287
        %v1336 = vsub.f32 %v1186, %v1290
        %v1337 = vsub.f32 %v1189, %v1293
        %v1338 = vsub.f32 %v1194, %v1296
        %v1339 = vsub.f32 %v1197, %v1299
        %v1340 = vsub.f32 %v1202, %v1302
        %v1341 = vsub.f32 %v1205, %v1305
        %v1342 = vsub.f32 %v1210, %v1308
        %v1343 = vsub.f32 %v1213, %v1311
        %v1344 = vmul.f32 %v1312, 1.442695
        %v1345 = vpow.pop %v1344
        %v1346 = vmul.f32 %v1313, 1.442695
        %v1347 = vpow.pop %v1346
        %v1348 = vmul.f32 %v1314, 1.442695
        %v1349 = vpow.pop %v1348
        %v1350 = vmul.f32 %v1315, 1.442695
        %v1351 = vpow.pop %v1350
        %v1352 = vmul.f32 %v1316, 1.442695
        %v1353 = vpow.pop %v1352
        %v1354 = vmul.f32 %v1317, 1.442695
        %v1355 = vpow.pop %v1354
        %v1356 = vmul.f32 %v1318, 1.442695
        %v1357 = vpow.pop %v1356
        %v1358 = vmul.f32 %v1319, 1.442695
        %v1359 = vpow.pop %v1358
        %v1360 = vmul.f32 %v1320, 1.442695
        %v1361 = vpow.pop %v1360
        %v1362 = vmul.f32 %v1321, 1.442695
        %v1363 = vpow.pop %v1362
        %v1364 = vmul.f32 %v1322, 1.442695
        %v1365 = vpow.pop %v1364
        %v1366 = vmul.f32 %v1323, 1.442695
        %v1367 = vpow.pop %v1366
        %v1368 = vmul.f32 %v1324, 1.442695
        %v1369 = vpow.pop %v1368
        %v1370 = vmul.f32 %v1325, 1.442695
        %v1371 = vpow.pop %v1370
        %v1372 = vmul.f32 %v1326, 1.442695
        %v1373 = vpow.pop %v1372
        %v1374 = vmul.f32 %v1327, 1.442695
        %v1375 = vpow.pop %v1374
        %v1376 = vmul.f32 %v1328, 1.442695
        %v1377 = vpow.pop %v1376
        %v1378 = vmul.f32 %v1329, 1.442695
        %v1379 = vpow.pop %v1378
        %v1380 = vmul.f32 %v1330, 1.442695
        %v1381 = vpow.pop %v1380
        %v1382 = vmul.f32 %v1331, 1.442695
        %v1383 = vpow.pop %v1382
        %v1384 = vmul.f32 %v1332, 1.442695
        %v1385 = vpow.pop %v1384
        %v1386 = vmul.f32 %v1333, 1.442695
        %v1387 = vpow.pop %v1386
        %v1388 = vmul.f32 %v1334, 1.442695
        %v1389 = vpow.pop %v1388
        %v1390 = vmul.f32 %v1335, 1.442695
        %v1391 = vpow.pop %v1390
        %v1392 = vmul.f32 %v1336, 1.442695
        %v1393 = vpow.pop %v1392
        %v1394 = vmul.f32 %v1337, 1.442695
        %v1395 = vpow.pop %v1394
        %v1396 = vmul.f32 %v1338, 1.442695
        %v1397 = vpow.pop %v1396
        %v1398 = vmul.f32 %v1339, 1.442695
        %v1399 = vpow.pop %v1398
        %v1400 = vmul.f32 %v1340, 1.442695
        %v1401 = vpow.pop %v1400
        %v1402 = vmul.f32 %v1341, 1.442695
        %v1403 = vpow.pop %v1402
        %v1404 = vmul.f32 %v1342, 1.442695
        %v1405 = vpow.pop %v1404
        %v1406 = vmul.f32 %v1343, 1.442695
        %v1407 = vpow.pop %v1406
        %v1408 = vsel %vm1006, %v1345, 0.0
        %1409 = vadd.xlane.f32.xlu0 %v1408
        %v1410 = vpop.xlane.xlu0 %1409
        %v1411 = vsel %vm1006, %v1347, 0.0
        %1412 = vadd.xlane.f32.xlu0 %v1411
        %v1413 = vpop.xlane.xlu0 %1412
        %v1414 = vsel %vm1006, %v1349, 0.0
        %1415 = vadd.xlane.f32.xlu0 %v1414
        %v1416 = vpop.xlane.xlu0 %1415
        %v1417 = vsel %vm1006, %v1351, 0.0
        %1418 = vadd.xlane.f32.xlu0 %v1417
        %v1419 = vpop.xlane.xlu0 %1418
        %v1420 = vsel %vm1006, %v1353, 0.0
        %1421 = vadd.xlane.f32.xlu0 %v1420
        %v1422 = vpop.xlane.xlu0 %1421
        %v1423 = vsel %vm1006, %v1355, 0.0
        %1424 = vadd.xlane.f32.xlu0 %v1423
        %v1425 = vpop.xlane.xlu0 %1424
        %v1426 = vsel %vm1006, %v1357, 0.0
        %1427 = vadd.xlane.f32.xlu0 %v1426
        %v1428 = vpop.xlane.xlu0 %1427
        %v1429 = vsel %vm1006, %v1359, 0.0
        %1430 = vadd.xlane.f32.xlu0 %v1429
        %v1431 = vpop.xlane.xlu0 %1430
        %v1432 = vsel %vm1006, %v1361, 0.0
        %1433 = vadd.xlane.f32.xlu0 %v1432
        %v1434 = vpop.xlane.xlu0 %1433
        %v1435 = vsel %vm1006, %v1363, 0.0
        %1436 = vadd.xlane.f32.xlu0 %v1435
        %v1437 = vpop.xlane.xlu0 %1436
        %v1438 = vsel %vm1006, %v1365, 0.0
        %1439 = vadd.xlane.f32.xlu0 %v1438
        %v1440 = vpop.xlane.xlu0 %1439
        %v1441 = vsel %vm1006, %v1367, 0.0
        %1442 = vadd.xlane.f32.xlu0 %v1441
        %v1443 = vpop.xlane.xlu0 %1442
        %v1444 = vsel %vm1006, %v1369, 0.0
        %1445 = vadd.xlane.f32.xlu0 %v1444
        %v1446 = vpop.xlane.xlu0 %1445
        %v1447 = vsel %vm1006, %v1371, 0.0
        %1448 = vadd.xlane.f32.xlu0 %v1447
        %v1449 = vpop.xlane.xlu0 %1448
        %v1450 = vsel %vm1006, %v1373, 0.0
        %1451 = vadd.xlane.f32.xlu0 %v1450
        %v1452 = vpop.xlane.xlu0 %1451
        %v1453 = vsel %vm1006, %v1375, 0.0
        %1454 = vadd.xlane.f32.xlu0 %v1453
        %v1455 = vpop.xlane.xlu0 %1454
        %v1456 = vsel %vm1006, %v1377, 0.0
        %1457 = vadd.xlane.f32.xlu0 %v1456
        %v1458 = vpop.xlane.xlu0 %1457
        %v1459 = vsel %vm1006, %v1379, 0.0
        %1460 = vadd.xlane.f32.xlu0 %v1459
        %v1461 = vpop.xlane.xlu0 %1460
        %v1462 = vsel %vm1006, %v1381, 0.0
        %1463 = vadd.xlane.f32.xlu0 %v1462
        %v1464 = vpop.xlane.xlu0 %1463
        %v1465 = vsel %vm1006, %v1383, 0.0
        %1466 = vadd.xlane.f32.xlu0 %v1465
        %v1467 = vpop.xlane.xlu0 %1466
        %v1468 = vsel %vm1006, %v1385, 0.0
        %1469 = vadd.xlane.f32.xlu0 %v1468
        %v1470 = vpop.xlane.xlu0 %1469
        %v1471 = vsel %vm1006, %v1387, 0.0
        %1472 = vadd.xlane.f32.xlu0 %v1471
        %v1473 = vpop.xlane.xlu0 %1472
        %v1474 = vsel %vm1006, %v1389, 0.0
        %1475 = vadd.xlane.f32.xlu0 %v1474
        %v1476 = vpop.xlane.xlu0 %1475
        %v1477 = vsel %vm1006, %v1391, 0.0
        %1478 = vadd.xlane.f32.xlu0 %v1477
        %v1479 = vpop.xlane.xlu0 %1478
        %v1480 = vsel %vm1006, %v1393, 0.0
        %1481 = vadd.xlane.f32.xlu0 %v1480
        %v1482 = vpop.xlane.xlu0 %1481
        %v1483 = vsel %vm1006, %v1395, 0.0
        %1484 = vadd.xlane.f32.xlu0 %v1483
        %v1485 = vpop.xlane.xlu0 %1484
        %v1486 = vsel %vm1006, %v1397, 0.0
        %1487 = vadd.xlane.f32.xlu0 %v1486
        %v1488 = vpop.xlane.xlu0 %1487
        %v1489 = vsel %vm1006, %v1399, 0.0
        %1490 = vadd.xlane.f32.xlu0 %v1489
        %v1491 = vpop.xlane.xlu0 %1490
        %v1492 = vsel %vm1006, %v1401, 0.0
        %1493 = vadd.xlane.f32.xlu0 %v1492
        %v1494 = vpop.xlane.xlu0 %1493
        %v1495 = vsel %vm1006, %v1403, 0.0
        %1496 = vadd.xlane.f32.xlu0 %v1495
        %v1497 = vpop.xlane.xlu0 %1496
        %v1498 = vsel %vm1006, %v1405, 0.0
        %1499 = vadd.xlane.f32.xlu0 %v1498
        %v1500 = vpop.xlane.xlu0 %1499
        %v1501 = vsel %vm1006, %v1407, 0.0
        %1502 = vadd.xlane.f32.xlu0 %v1501
        %v1503 = vpop.xlane.xlu0 %1502
        %v1504 = vrcp.pop %v1410
        %v1505 = vrcp.pop %v1413
        %v1506 = vrcp.pop %v1416
        %v1507 = vrcp.pop %v1419
        %v1508 = vrcp.pop %v1422
        %v1509 = vrcp.pop %v1425
        %v1510 = vrcp.pop %v1428
        %v1511 = vrcp.pop %v1431
        %v1512 = vrcp.pop %v1434
        %v1513 = vrcp.pop %v1437
        %v1514 = vrcp.pop %v1440
        %v1515 = vrcp.pop %v1443
        %v1516 = vrcp.pop %v1446
        %v1517 = vrcp.pop %v1449
        %v1518 = vrcp.pop %v1452
        %v1519 = vrcp.pop %v1455
        %v1520 = vrcp.pop %v1458
        %v1521 = vrcp.pop %v1461
        %v1522 = vrcp.pop %v1464
        %v1523 = vrcp.pop %v1467
        %v1524 = vrcp.pop %v1470
        %v1525 = vrcp.pop %v1473
        %v1526 = vrcp.pop %v1476
        %v1527 = vrcp.pop %v1479
        %v1528 = vrcp.pop %v1482
        %v1529 = vrcp.pop %v1485
        %v1530 = vrcp.pop %v1488
        %v1531 = vrcp.pop %v1491
        %v1532 = vrcp.pop %v1494
        %v1533 = vrcp.pop %v1497
        %v1534 = vrcp.pop %v1500
        %v1535 = vrcp.pop %v1503
        %v1536 = vmul.f32 %v1345, %v1504
        %v1537 = vmul.f32 %v1347, %v1505
        %v1538 = vmul.f32 %v1349, %v1506
        %v1539 = vmul.f32 %v1351, %v1507
        %v1540 = vmul.f32 %v1353, %v1508
        %v1541 = vmul.f32 %v1355, %v1509
        %v1542 = vmul.f32 %v1357, %v1510
        %v1543 = vmul.f32 %v1359, %v1511
        %v1544 = vmul.f32 %v1361, %v1512
        %v1545 = vmul.f32 %v1363, %v1513
        %v1546 = vmul.f32 %v1365, %v1514
        %v1547 = vmul.f32 %v1367, %v1515
        %v1548 = vmul.f32 %v1369, %v1516
        %v1549 = vmul.f32 %v1371, %v1517
        %v1550 = vmul.f32 %v1373, %v1518
        %v1551 = vmul.f32 %v1375, %v1519
        %v1552 = vmul.f32 %v1377, %v1520
        %v1553 = vmul.f32 %v1379, %v1521
        %v1554 = vmul.f32 %v1381, %v1522
        %v1555 = vmul.f32 %v1383, %v1523
        %v1556 = vmul.f32 %v1385, %v1524
        %v1557 = vmul.f32 %v1387, %v1525
        %v1558 = vmul.f32 %v1389, %v1526
        %v1559 = vmul.f32 %v1391, %v1527
        %v1560 = vmul.f32 %v1393, %v1528
        %v1561 = vmul.f32 %v1395, %v1529
        %v1562 = vmul.f32 %v1397, %v1530
        %v1563 = vmul.f32 %v1399, %v1531
        %v1564 = vmul.f32 %v1401, %v1532
        %v1565 = vmul.f32 %v1403, %v1533
        %v1566 = vmul.f32 %v1405, %v1534
        %v1567 = vmul.f32 %v1407, %v1535
        %1568 = vst.msk [vmem:[%s528] sm:$0xff] %vm1006, %v1536
        %1569 = vst.msk [vmem:[%s528 + $0x8] sm:$0xff] %vm1006, %v1537
        %1570 = vst.msk [vmem:[%s528 + $0x10] sm:$0xff] %vm1006, %v1538
        %1571 = vst.msk [vmem:[%s528 + $0x18] sm:$0xff] %vm1006, %v1539
        %1572 = vst.msk [vmem:[%s528 + $0x20] sm:$0xff] %vm1006, %v1540
        %1573 = vst.msk [vmem:[%s528 + $0x28] sm:$0xff] %vm1006, %v1541
        %1574 = vst.msk [vmem:[%s528 + $0x30] sm:$0xff] %vm1006, %v1542
        %1575 = vst.msk [vmem:[%s528 + $0x38] sm:$0xff] %vm1006, %v1543
        %1576 = vst.msk [vmem:[%s528 + $0x40] sm:$0xff] %vm1006, %v1544
        %1577 = vst.msk [vmem:[%s528 + $0x48] sm:$0xff] %vm1006, %v1545
        %1578 = vst.msk [vmem:[%s528 + $0x50] sm:$0xff] %vm1006, %v1546
        %1579 = vst.msk [vmem:[%s528 + $0x58] sm:$0xff] %vm1006, %v1547
        %1580 = vst.msk [vmem:[%s528 + $0x60] sm:$0xff] %vm1006, %v1548
        %1581 = vst.msk [vmem:[%s528 + $0x68] sm:$0xff] %vm1006, %v1549
        %1582 = vst.msk [vmem:[%s528 + $0x70] sm:$0xff] %vm1006, %v1550
        %1583 = vst.msk [vmem:[%s528 + $0x78] sm:$0xff] %vm1006, %v1551
        %1584 = vst.msk [vmem:[%s528 + $0x80] sm:$0xff] %vm1006, %v1552
        %1585 = vst.msk [vmem:[%s528 + $0x88] sm:$0xff] %vm1006, %v1553
        %1586 = vst.msk [vmem:[%s528 + $0x90] sm:$0xff] %vm1006, %v1554
        %1587 = vst.msk [vmem:[%s528 + $0x98] sm:$0xff] %vm1006, %v1555
        %1588 = vst.msk [vmem:[%s528 + $0xa0] sm:$0xff] %vm1006, %v1556
        %1589 = vst.msk [vmem:[%s528 + $0xa8] sm:$0xff] %vm1006, %v1557
        %1590 = vst.msk [vmem:[%s528 + $0xb0] sm:$0xff] %vm1006, %v1558
        %1591 = vst.msk [vmem:[%s528 + $0xb8] sm:$0xff] %vm1006, %v1559
        %1592 = vst.msk [vmem:[%s528 + $0xc0] sm:$0xff] %vm1006, %v1560
        %1593 = vst.msk [vmem:[%s528 + $0xc8] sm:$0xff] %vm1006, %v1561
        %1594 = vst.msk [vmem:[%s528 + $0xd0] sm:$0xff] %vm1006, %v1562
        %1595 = vst.msk [vmem:[%s528 + $0xd8] sm:$0xff] %vm1006, %v1563
        %1596 = vst.msk [vmem:[%s528 + $0xe0] sm:$0xff] %vm1006, %v1564
        %1597 = vst.msk [vmem:[%s528 + $0xe8] sm:$0xff] %vm1006, %v1565
        %1598 = vst.msk [vmem:[%s528 + $0xf0] sm:$0xff] %vm1006, %v1566
        %1599 = vst.msk [vmem:[%s528 + $0xf8] sm:$0xff] %vm1006, %v1567
        %v1600 = vlaneseq
        %v1601 = vand.u32 %v1600, 127
        %v1602 = vcvt.s32.f32 %v1601
        %v1603 = vmul.f32 %v1602, 0.15476191
        %v1604 = vadd.f32 %v1603, 0.25
        %v1605 = vmul.f32 %v1536, %v1604
        %v1606 = vmul.f32 %v1537, %v1604
        %v1607 = vmul.f32 %v1538, %v1604
        %v1608 = vmul.f32 %v1539, %v1604
        %v1609 = vmul.f32 %v1540, %v1604
        %v1610 = vmul.f32 %v1541, %v1604
        %v1611 = vmul.f32 %v1542, %v1604
        %v1612 = vmul.f32 %v1543, %v1604
        %v1613 = vmul.f32 %v1544, %v1604
        %v1614 = vmul.f32 %v1545, %v1604
        %v1615 = vmul.f32 %v1546, %v1604
        %v1616 = vmul.f32 %v1547, %v1604
        %v1617 = vmul.f32 %v1548, %v1604
        %v1618 = vmul.f32 %v1549, %v1604
        %v1619 = vmul.f32 %v1550, %v1604
        %v1620 = vmul.f32 %v1551, %v1604
        %v1621 = vmul.f32 %v1552, %v1604
        %v1622 = vmul.f32 %v1553, %v1604
        %v1623 = vmul.f32 %v1554, %v1604
        %v1624 = vmul.f32 %v1555, %v1604
        %v1625 = vmul.f32 %v1556, %v1604
        %v1626 = vmul.f32 %v1557, %v1604
        %v1627 = vmul.f32 %v1558, %v1604
        %v1628 = vmul.f32 %v1559, %v1604
        %v1629 = vmul.f32 %v1560, %v1604
        %v1630 = vmul.f32 %v1561, %v1604
        %v1631 = vmul.f32 %v1562, %v1604
        %v1632 = vmul.f32 %v1563, %v1604
        %v1633 = vmul.f32 %v1564, %v1604
        %v1634 = vmul.f32 %v1565, %v1604
        %v1635 = vmul.f32 %v1566, %v1604
        %v1636 = vmul.f32 %v1567, %v1604
        %v1637 = vsel %vm1006, %v1605, 0.0
        %1638 = vadd.xlane.f32.xlu0 %v1637
        %v1639 = vpop.xlane.xlu0 %1638
        %v1640 = vsel %vm1006, %v1606, 0.0
        %1641 = vadd.xlane.f32.xlu0 %v1640
        %v1642 = vpop.xlane.xlu0 %1641
        %v1643 = vsel %vm1006, %v1607, 0.0
        %1644 = vadd.xlane.f32.xlu0 %v1643
        %v1645 = vpop.xlane.xlu0 %1644
        %v1646 = vsel %vm1006, %v1608, 0.0
        %1647 = vadd.xlane.f32.xlu0 %v1646
        %v1648 = vpop.xlane.xlu0 %1647
        %v1649 = vsel %vm1006, %v1609, 0.0
        %1650 = vadd.xlane.f32.xlu0 %v1649
        %v1651 = vpop.xlane.xlu0 %1650
        %v1652 = vsel %vm1006, %v1610, 0.0
        %1653 = vadd.xlane.f32.xlu0 %v1652
        %v1654 = vpop.xlane.xlu0 %1653
        %v1655 = vsel %vm1006, %v1611, 0.0
        %1656 = vadd.xlane.f32.xlu0 %v1655
        %v1657 = vpop.xlane.xlu0 %1656
        %v1658 = vsel %vm1006, %v1612, 0.0
        %1659 = vadd.xlane.f32.xlu0 %v1658
        %v1660 = vpop.xlane.xlu0 %1659
        %v1661 = vsel %vm1006, %v1613, 0.0
        %1662 = vadd.xlane.f32.xlu0 %v1661
        %v1663 = vpop.xlane.xlu0 %1662
        %v1664 = vsel %vm1006, %v1614, 0.0
        %1665 = vadd.xlane.f32.xlu0 %v1664
        %v1666 = vpop.xlane.xlu0 %1665
        %v1667 = vsel %vm1006, %v1615, 0.0
        %1668 = vadd.xlane.f32.xlu0 %v1667
        %v1669 = vpop.xlane.xlu0 %1668
        %v1670 = vsel %vm1006, %v1616, 0.0
        %1671 = vadd.xlane.f32.xlu0 %v1670
        %v1672 = vpop.xlane.xlu0 %1671
        %v1673 = vsel %vm1006, %v1617, 0.0
        %1674 = vadd.xlane.f32.xlu0 %v1673
        %v1675 = vpop.xlane.xlu0 %1674
        %v1676 = vsel %vm1006, %v1618, 0.0
        %1677 = vadd.xlane.f32.xlu0 %v1676
        %v1678 = vpop.xlane.xlu0 %1677
        %v1679 = vsel %vm1006, %v1619, 0.0
        %1680 = vadd.xlane.f32.xlu0 %v1679
        %v1681 = vpop.xlane.xlu0 %1680
        %v1682 = vsel %vm1006, %v1620, 0.0
        %1683 = vadd.xlane.f32.xlu0 %v1682
        %v1684 = vpop.xlane.xlu0 %1683
        %v1685 = vsel %vm1006, %v1621, 0.0
        %1686 = vadd.xlane.f32.xlu0 %v1685
        %v1687 = vpop.xlane.xlu0 %1686
        %v1688 = vsel %vm1006, %v1622, 0.0
        %1689 = vadd.xlane.f32.xlu0 %v1688
        %v1690 = vpop.xlane.xlu0 %1689
        %v1691 = vsel %vm1006, %v1623, 0.0
        %1692 = vadd.xlane.f32.xlu0 %v1691
        %v1693 = vpop.xlane.xlu0 %1692
        %v1694 = vsel %vm1006, %v1624, 0.0
        %1695 = vadd.xlane.f32.xlu0 %v1694
        %v1696 = vpop.xlane.xlu0 %1695
        %v1697 = vsel %vm1006, %v1625, 0.0
        %1698 = vadd.xlane.f32.xlu0 %v1697
        %v1699 = vpop.xlane.xlu0 %1698
        %v1700 = vsel %vm1006, %v1626, 0.0
        %1701 = vadd.xlane.f32.xlu0 %v1700
        %v1702 = vpop.xlane.xlu0 %1701
        %v1703 = vsel %vm1006, %v1627, 0.0
        %1704 = vadd.xlane.f32.xlu0 %v1703
        %v1705 = vpop.xlane.xlu0 %1704
        %v1706 = vsel %vm1006, %v1628, 0.0
        %1707 = vadd.xlane.f32.xlu0 %v1706
        %v1708 = vpop.xlane.xlu0 %1707
        %v1709 = vsel %vm1006, %v1629, 0.0
        %1710 = vadd.xlane.f32.xlu0 %v1709
        %v1711 = vpop.xlane.xlu0 %1710
        %v1712 = vsel %vm1006, %v1630, 0.0
        %1713 = vadd.xlane.f32.xlu0 %v1712
        %v1714 = vpop.xlane.xlu0 %1713
        %v1715 = vsel %vm1006, %v1631, 0.0
        %1716 = vadd.xlane.f32.xlu0 %v1715
        %v1717 = vpop.xlane.xlu0 %1716
        %v1718 = vsel %vm1006, %v1632, 0.0
        %1719 = vadd.xlane.f32.xlu0 %v1718
        %v1720 = vpop.xlane.xlu0 %1719
        %v1721 = vsel %vm1006, %v1633, 0.0
        %1722 = vadd.xlane.f32.xlu0 %v1721
        %v1723 = vpop.xlane.xlu0 %1722
        %v1724 = vsel %vm1006, %v1634, 0.0
        %1725 = vadd.xlane.f32.xlu0 %v1724
        %v1726 = vpop.xlane.xlu0 %1725
        %v1727 = vsel %vm1006, %v1635, 0.0
        %1728 = vadd.xlane.f32.xlu0 %v1727
        %v1729 = vpop.xlane.xlu0 %1728
        %v1730 = vsel %vm1006, %v1636, 0.0
        %1731 = vadd.xlane.f32.xlu0 %v1730
        %v1732 = vpop.xlane.xlu0 %1731
        %v1733 = vld [vmem:[%s521] sm:$0xff]
        %v1734 = vld [vmem:[%s521 + $0x8] sm:$0xff]
        %v1735 = vld [vmem:[%s521 + $0x10] sm:$0xff]
        %v1736 = vld [vmem:[%s521 + $0x18] sm:$0xff]
        %v1737 = vld [vmem:[%s521 + $0x20] sm:$0xff]
        %v1738 = vld [vmem:[%s521 + $0x28] sm:$0xff]
        %v1739 = vld [vmem:[%s521 + $0x30] sm:$0xff]
        %v1740 = vld [vmem:[%s521 + $0x38] sm:$0xff]
        %v1741 = vld [vmem:[%s521 + $0x40] sm:$0xff]
        %v1742 = vld [vmem:[%s521 + $0x48] sm:$0xff]
        %v1743 = vld [vmem:[%s521 + $0x50] sm:$0xff]
        %v1744 = vld [vmem:[%s521 + $0x58] sm:$0xff]
        %v1745 = vld [vmem:[%s521 + $0x60] sm:$0xff]
        %v1746 = vld [vmem:[%s521 + $0x68] sm:$0xff]
        %v1747 = vld [vmem:[%s521 + $0x70] sm:$0xff]
        %v1748 = vld [vmem:[%s521 + $0x78] sm:$0xff]
        %v1749 = vld [vmem:[%s521 + $0x80] sm:$0xff]
        %v1750 = vld [vmem:[%s521 + $0x88] sm:$0xff]
        %v1751 = vld [vmem:[%s521 + $0x90] sm:$0xff]
        %v1752 = vld [vmem:[%s521 + $0x98] sm:$0xff]
        %v1753 = vld [vmem:[%s521 + $0xa0] sm:$0xff]
        %v1754 = vld [vmem:[%s521 + $0xa8] sm:$0xff]
        %v1755 = vld [vmem:[%s521 + $0xb0] sm:$0xff]
        %v1756 = vld [vmem:[%s521 + $0xb8] sm:$0xff]
        %v1757 = vld [vmem:[%s521 + $0xc0] sm:$0xff]
        %v1758 = vld [vmem:[%s521 + $0xc8] sm:$0xff]
        %v1759 = vld [vmem:[%s521 + $0xd0] sm:$0xff]
        %v1760 = vld [vmem:[%s521 + $0xd8] sm:$0xff]
        %v1761 = vld [vmem:[%s521 + $0xe0] sm:$0xff]
        %v1762 = vld [vmem:[%s521 + $0xe8] sm:$0xff]
        %v1763 = vld [vmem:[%s521 + $0xf0] sm:$0xff]
        %v1764 = vld [vmem:[%s521 + $0xf8] sm:$0xff]
        %v1765 = vld [vmem:[%s6] sm:$0xf]
        %v1766 = vmul.f32 %v1733, %v1639
        %v1767 = vmul.f32 %v1734, %v1642
        %v1768 = vmul.f32 %v1735, %v1645
        %v1769 = vmul.f32 %v1736, %v1648
        %v1770 = vmul.f32 %v1737, %v1651
        %v1771 = vmul.f32 %v1738, %v1654
        %v1772 = vmul.f32 %v1739, %v1657
        %v1773 = vmul.f32 %v1740, %v1660
        %v1774 = vmul.f32 %v1741, %v1663
        %v1775 = vmul.f32 %v1742, %v1666
        %v1776 = vmul.f32 %v1743, %v1669
        %v1777 = vmul.f32 %v1744, %v1672
        %v1778 = vmul.f32 %v1745, %v1675
        %v1779 = vmul.f32 %v1746, %v1678
        %v1780 = vmul.f32 %v1747, %v1681
        %v1781 = vmul.f32 %v1748, %v1684
        %v1782 = vmul.f32 %v1749, %v1687
        %v1783 = vmul.f32 %v1750, %v1690
        %v1784 = vmul.f32 %v1751, %v1693
        %v1785 = vmul.f32 %v1752, %v1696
        %v1786 = vmul.f32 %v1753, %v1699
        %v1787 = vmul.f32 %v1754, %v1702
        %v1788 = vmul.f32 %v1755, %v1705
        %v1789 = vmul.f32 %v1756, %v1708
        %v1790 = vmul.f32 %v1757, %v1711
        %v1791 = vmul.f32 %v1758, %v1714
        %v1792 = vmul.f32 %v1759, %v1717
        %v1793 = vmul.f32 %v1760, %v1720
        %v1794 = vmul.f32 %v1761, %v1723
        %v1795 = vmul.f32 %v1762, %v1726
        %v1796 = vmul.f32 %v1763, %v1729
        %v1797 = vmul.f32 %v1764, %v1732
        %1830 = vrot.lane.b32.xlu0 %v1733, 125
        %v1831 = vpop.permute.xlu0 %1830
        %1832 = vrot.lane.b32.xlu0 %v1734, 125
        %v1833 = vpop.permute.xlu0 %1832
        %1834 = vrot.lane.b32.xlu0 %v1735, 125
        %v1835 = vpop.permute.xlu0 %1834
        %1836 = vrot.lane.b32.xlu0 %v1736, 125
        %v1837 = vpop.permute.xlu0 %1836
        %1838 = vrot.lane.b32.xlu0 %v1737, 125
        %v1839 = vpop.permute.xlu0 %1838
        %1840 = vrot.lane.b32.xlu0 %v1738, 125
        %v1841 = vpop.permute.xlu0 %1840
        %1842 = vrot.lane.b32.xlu0 %v1739, 125
        %v1843 = vpop.permute.xlu0 %1842
        %1844 = vrot.lane.b32.xlu0 %v1740, 125
        %v1845 = vpop.permute.xlu0 %1844
        %1846 = vrot.lane.b32.xlu0 %v1741, 125
        %v1847 = vpop.permute.xlu0 %1846
        %1848 = vrot.lane.b32.xlu0 %v1742, 125
        %v1849 = vpop.permute.xlu0 %1848
        %1850 = vrot.lane.b32.xlu0 %v1743, 125
        %v1851 = vpop.permute.xlu0 %1850
        %1852 = vrot.lane.b32.xlu0 %v1744, 125
        %v1853 = vpop.permute.xlu0 %1852
        %1854 = vrot.lane.b32.xlu0 %v1745, 125
        %v1855 = vpop.permute.xlu0 %1854
        %1856 = vrot.lane.b32.xlu0 %v1746, 125
        %v1857 = vpop.permute.xlu0 %1856
        %1858 = vrot.lane.b32.xlu0 %v1747, 125
        %v1859 = vpop.permute.xlu0 %1858
        %1860 = vrot.lane.b32.xlu0 %v1748, 125
        %v1861 = vpop.permute.xlu0 %1860
        %1862 = vrot.lane.b32.xlu0 %v1749, 125
        %v1863 = vpop.permute.xlu0 %1862
        %1864 = vrot.lane.b32.xlu0 %v1750, 125
        %v1865 = vpop.permute.xlu0 %1864
        %1866 = vrot.lane.b32.xlu0 %v1751, 125
        %v1867 = vpop.permute.xlu0 %1866
        %1868 = vrot.lane.b32.xlu0 %v1752, 125
        %v1869 = vpop.permute.xlu0 %1868
        %1870 = vrot.lane.b32.xlu0 %v1753, 125
        %v1871 = vpop.permute.xlu0 %1870
        %1872 = vrot.lane.b32.xlu0 %v1754, 125
        %v1873 = vpop.permute.xlu0 %1872
        %1874 = vrot.lane.b32.xlu0 %v1755, 125
        %v1875 = vpop.permute.xlu0 %1874
        %1876 = vrot.lane.b32.xlu0 %v1756, 125
        %v1877 = vpop.permute.xlu0 %1876
        %1878 = vrot.lane.b32.xlu0 %v1757, 125
        %v1879 = vpop.permute.xlu0 %1878
        %1880 = vrot.lane.b32.xlu0 %v1758, 125
        %v1881 = vpop.permute.xlu0 %1880
        %1882 = vrot.lane.b32.xlu0 %v1759, 125
        %v1883 = vpop.permute.xlu0 %1882
        %1884 = vrot.lane.b32.xlu0 %v1760, 125
        %v1885 = vpop.permute.xlu0 %1884
        %1886 = vrot.lane.b32.xlu0 %v1761, 125
        %v1887 = vpop.permute.xlu0 %1886
        %1888 = vrot.lane.b32.xlu0 %v1762, 125
        %v1889 = vpop.permute.xlu0 %1888
        %1890 = vrot.lane.b32.xlu0 %v1763, 125
        %v1891 = vpop.permute.xlu0 %1890
        %1892 = vrot.lane.b32.xlu0 %v1764, 125
        %v1893 = vpop.permute.xlu0 %1892
        %v1926 = vadd.f32 %v1766, %v1831
        %v1927 = vadd.f32 %v1767, %v1833
        %v1928 = vadd.f32 %v1768, %v1835
        %v1929 = vadd.f32 %v1769, %v1837
        %v1930 = vadd.f32 %v1770, %v1839
        %v1931 = vadd.f32 %v1771, %v1841
        %v1932 = vadd.f32 %v1772, %v1843
        %v1933 = vadd.f32 %v1773, %v1845
        %v1934 = vadd.f32 %v1774, %v1847
        %v1935 = vadd.f32 %v1775, %v1849
        %v1936 = vadd.f32 %v1776, %v1851
        %v1937 = vadd.f32 %v1777, %v1853
        %v1938 = vadd.f32 %v1778, %v1855
        %v1939 = vadd.f32 %v1779, %v1857
        %v1940 = vadd.f32 %v1780, %v1859
        %v1941 = vadd.f32 %v1781, %v1861
        %v1942 = vadd.f32 %v1782, %v1863
        %v1943 = vadd.f32 %v1783, %v1865
        %v1944 = vadd.f32 %v1784, %v1867
        %v1945 = vadd.f32 %v1785, %v1869
        %v1946 = vadd.f32 %v1786, %v1871
        %v1947 = vadd.f32 %v1787, %v1873
        %v1948 = vadd.f32 %v1788, %v1875
        %v1949 = vadd.f32 %v1789, %v1877
        %v1950 = vadd.f32 %v1790, %v1879
        %v1951 = vadd.f32 %v1791, %v1881
        %v1952 = vadd.f32 %v1792, %v1883
        %v1953 = vadd.f32 %v1793, %v1885
        %v1954 = vadd.f32 %v1794, %v1887
        %v1955 = vadd.f32 %v1795, %v1889
        %v1956 = vadd.f32 %v1796, %v1891
        %v1957 = vadd.f32 %v1797, %v1893
        %1959 = vset.pattern.permute.xlu0 0
        %1960 = vperm.xlu0 %1959, %v1926
        %v1961 = vpop.permute.xlu0 %1960
        %1964 = vset.pattern.permute.xlu0 0
        %1965 = vperm.xlu0 %1964, %v1927
        %v1966 = vpop.permute.xlu0 %1965
        %1969 = vset.pattern.permute.xlu0 0
        %1970 = vperm.xlu0 %1969, %v1928
        %v1971 = vpop.permute.xlu0 %1970
        %1974 = vset.pattern.permute.xlu0 0
        %1975 = vperm.xlu0 %1974, %v1929
        %v1976 = vpop.permute.xlu0 %1975
        %1979 = vset.pattern.permute.xlu0 0
        %1980 = vperm.xlu0 %1979, %v1930
        %v1981 = vpop.permute.xlu0 %1980
        %1984 = vset.pattern.permute.xlu0 0
        %1985 = vperm.xlu0 %1984, %v1931
        %v1986 = vpop.permute.xlu0 %1985
        %1989 = vset.pattern.permute.xlu0 0
        %1990 = vperm.xlu0 %1989, %v1932
        %v1991 = vpop.permute.xlu0 %1990
        %1994 = vset.pattern.permute.xlu0 0
        %1995 = vperm.xlu0 %1994, %v1933
        %v1996 = vpop.permute.xlu0 %1995
        %1999 = vset.pattern.permute.xlu0 0
        %2000 = vperm.xlu0 %1999, %v1934
        %v2001 = vpop.permute.xlu0 %2000
        %2004 = vset.pattern.permute.xlu0 0
        %2005 = vperm.xlu0 %2004, %v1935
        %v2006 = vpop.permute.xlu0 %2005
        %2009 = vset.pattern.permute.xlu0 0
        %2010 = vperm.xlu0 %2009, %v1936
        %v2011 = vpop.permute.xlu0 %2010
        %2014 = vset.pattern.permute.xlu0 0
        %2015 = vperm.xlu0 %2014, %v1937
        %v2016 = vpop.permute.xlu0 %2015
        %2019 = vset.pattern.permute.xlu0 0
        %2020 = vperm.xlu0 %2019, %v1938
        %v2021 = vpop.permute.xlu0 %2020
        %2024 = vset.pattern.permute.xlu0 0
        %2025 = vperm.xlu0 %2024, %v1939
        %v2026 = vpop.permute.xlu0 %2025
        %2029 = vset.pattern.permute.xlu0 0
        %2030 = vperm.xlu0 %2029, %v1940
        %v2031 = vpop.permute.xlu0 %2030
        %2034 = vset.pattern.permute.xlu0 0
        %2035 = vperm.xlu0 %2034, %v1941
        %v2036 = vpop.permute.xlu0 %2035
        %2039 = vset.pattern.permute.xlu0 0
        %2040 = vperm.xlu0 %2039, %v1942
        %v2041 = vpop.permute.xlu0 %2040
        %2044 = vset.pattern.permute.xlu0 0
        %2045 = vperm.xlu0 %2044, %v1943
        %v2046 = vpop.permute.xlu0 %2045
        %2049 = vset.pattern.permute.xlu0 0
        %2050 = vperm.xlu0 %2049, %v1944
        %v2051 = vpop.permute.xlu0 %2050
        %2054 = vset.pattern.permute.xlu0 0
        %2055 = vperm.xlu0 %2054, %v1945
        %v2056 = vpop.permute.xlu0 %2055
        %2059 = vset.pattern.permute.xlu0 0
        %2060 = vperm.xlu0 %2059, %v1946
        %v2061 = vpop.permute.xlu0 %2060
        %2064 = vset.pattern.permute.xlu0 0
        %2065 = vperm.xlu0 %2064, %v1947
        %v2066 = vpop.permute.xlu0 %2065
        %2069 = vset.pattern.permute.xlu0 0
        %2070 = vperm.xlu0 %2069, %v1948
        %v2071 = vpop.permute.xlu0 %2070
        %2074 = vset.pattern.permute.xlu0 0
        %2075 = vperm.xlu0 %2074, %v1949
        %v2076 = vpop.permute.xlu0 %2075
        %2079 = vset.pattern.permute.xlu0 0
        %2080 = vperm.xlu0 %2079, %v1950
        %v2081 = vpop.permute.xlu0 %2080
        %2084 = vset.pattern.permute.xlu0 0
        %2085 = vperm.xlu0 %2084, %v1951
        %v2086 = vpop.permute.xlu0 %2085
        %2089 = vset.pattern.permute.xlu0 0
        %2090 = vperm.xlu0 %2089, %v1952
        %v2091 = vpop.permute.xlu0 %2090
        %2094 = vset.pattern.permute.xlu0 0
        %2095 = vperm.xlu0 %2094, %v1953
        %v2096 = vpop.permute.xlu0 %2095
        %2099 = vset.pattern.permute.xlu0 0
        %2100 = vperm.xlu0 %2099, %v1954
        %v2101 = vpop.permute.xlu0 %2100
        %2104 = vset.pattern.permute.xlu0 0
        %2105 = vperm.xlu0 %2104, %v1955
        %v2106 = vpop.permute.xlu0 %2105
        %2109 = vset.pattern.permute.xlu0 0
        %2110 = vperm.xlu0 %2109, %v1956
        %v2111 = vpop.permute.xlu0 %2110
        %2114 = vset.pattern.permute.xlu0 0
        %2115 = vperm.xlu0 %2114, %v1957
        %v2116 = vpop.permute.xlu0 %2115
        %v2118 = vlaneseq
        %v2119 = vshrl.u32 %v2118, 7
        %v2120 = vsub.s32 0, %v2119
        %v2121 = vrot.slane %v1765, %v2120
        %v2122 = vmul.f32 %v1961, %v2121
        %v2123 = vmul.f32 %v1966, %v2121
        %v2124 = vmul.f32 %v1971, %v2121
        %v2125 = vmul.f32 %v1976, %v2121
        %v2126 = vmul.f32 %v1981, %v2121
        %v2127 = vmul.f32 %v1986, %v2121
        %v2128 = vmul.f32 %v1991, %v2121
        %v2129 = vmul.f32 %v1996, %v2121
        %v2130 = vmul.f32 %v2001, %v2121
        %v2131 = vmul.f32 %v2006, %v2121
        %v2132 = vmul.f32 %v2011, %v2121
        %v2133 = vmul.f32 %v2016, %v2121
        %v2134 = vmul.f32 %v2021, %v2121
        %v2135 = vmul.f32 %v2026, %v2121
        %v2136 = vmul.f32 %v2031, %v2121
        %v2137 = vmul.f32 %v2036, %v2121
        %v2138 = vmul.f32 %v2041, %v2121
        %v2139 = vmul.f32 %v2046, %v2121
        %v2140 = vmul.f32 %v2051, %v2121
        %v2141 = vmul.f32 %v2056, %v2121
        %v2142 = vmul.f32 %v2061, %v2121
        %v2143 = vmul.f32 %v2066, %v2121
        %v2144 = vmul.f32 %v2071, %v2121
        %v2145 = vmul.f32 %v2076, %v2121
        %v2146 = vmul.f32 %v2081, %v2121
        %v2147 = vmul.f32 %v2086, %v2121
        %v2148 = vmul.f32 %v2091, %v2121
        %v2149 = vmul.f32 %v2096, %v2121
        %v2150 = vmul.f32 %v2101, %v2121
        %v2151 = vmul.f32 %v2106, %v2121
        %v2152 = vmul.f32 %v2111, %v2121
        %v2153 = vmul.f32 %v2116, %v2121
        %2154 = vset.pattern.permute.xlu0 1
        %2155 = vperm.xlu0 %2154, %v1926
        %v2156 = vpop.permute.xlu0 %2155
        %2158 = vset.pattern.permute.xlu0 1
        %2159 = vperm.xlu0 %2158, %v1927
        %v2160 = vpop.permute.xlu0 %2159
        %2162 = vset.pattern.permute.xlu0 1
        %2163 = vperm.xlu0 %2162, %v1928
        %v2164 = vpop.permute.xlu0 %2163
        %2166 = vset.pattern.permute.xlu0 1
        %2167 = vperm.xlu0 %2166, %v1929
        %v2168 = vpop.permute.xlu0 %2167
        %2170 = vset.pattern.permute.xlu0 1
        %2171 = vperm.xlu0 %2170, %v1930
        %v2172 = vpop.permute.xlu0 %2171
        %2174 = vset.pattern.permute.xlu0 1
        %2175 = vperm.xlu0 %2174, %v1931
        %v2176 = vpop.permute.xlu0 %2175
        %2178 = vset.pattern.permute.xlu0 1
        %2179 = vperm.xlu0 %2178, %v1932
        %v2180 = vpop.permute.xlu0 %2179
        %2182 = vset.pattern.permute.xlu0 1
        %2183 = vperm.xlu0 %2182, %v1933
        %v2184 = vpop.permute.xlu0 %2183
        %2186 = vset.pattern.permute.xlu0 1
        %2187 = vperm.xlu0 %2186, %v1934
        %v2188 = vpop.permute.xlu0 %2187
        %2190 = vset.pattern.permute.xlu0 1
        %2191 = vperm.xlu0 %2190, %v1935
        %v2192 = vpop.permute.xlu0 %2191
        %2194 = vset.pattern.permute.xlu0 1
        %2195 = vperm.xlu0 %2194, %v1936
        %v2196 = vpop.permute.xlu0 %2195
        %2198 = vset.pattern.permute.xlu0 1
        %2199 = vperm.xlu0 %2198, %v1937
        %v2200 = vpop.permute.xlu0 %2199
        %2202 = vset.pattern.permute.xlu0 1
        %2203 = vperm.xlu0 %2202, %v1938
        %v2204 = vpop.permute.xlu0 %2203
        %2206 = vset.pattern.permute.xlu0 1
        %2207 = vperm.xlu0 %2206, %v1939
        %v2208 = vpop.permute.xlu0 %2207
        %2210 = vset.pattern.permute.xlu0 1
        %2211 = vperm.xlu0 %2210, %v1940
        %v2212 = vpop.permute.xlu0 %2211
        %2214 = vset.pattern.permute.xlu0 1
        %2215 = vperm.xlu0 %2214, %v1941
        %v2216 = vpop.permute.xlu0 %2215
        %2218 = vset.pattern.permute.xlu0 1
        %2219 = vperm.xlu0 %2218, %v1942
        %v2220 = vpop.permute.xlu0 %2219
        %2222 = vset.pattern.permute.xlu0 1
        %2223 = vperm.xlu0 %2222, %v1943
        %v2224 = vpop.permute.xlu0 %2223
        %2226 = vset.pattern.permute.xlu0 1
        %2227 = vperm.xlu0 %2226, %v1944
        %v2228 = vpop.permute.xlu0 %2227
        %2230 = vset.pattern.permute.xlu0 1
        %2231 = vperm.xlu0 %2230, %v1945
        %v2232 = vpop.permute.xlu0 %2231
        %2234 = vset.pattern.permute.xlu0 1
        %2235 = vperm.xlu0 %2234, %v1946
        %v2236 = vpop.permute.xlu0 %2235
        %2238 = vset.pattern.permute.xlu0 1
        %2239 = vperm.xlu0 %2238, %v1947
        %v2240 = vpop.permute.xlu0 %2239
        %2242 = vset.pattern.permute.xlu0 1
        %2243 = vperm.xlu0 %2242, %v1948
        %v2244 = vpop.permute.xlu0 %2243
        %2246 = vset.pattern.permute.xlu0 1
        %2247 = vperm.xlu0 %2246, %v1949
        %v2248 = vpop.permute.xlu0 %2247
        %2250 = vset.pattern.permute.xlu0 1
        %2251 = vperm.xlu0 %2250, %v1950
        %v2252 = vpop.permute.xlu0 %2251
        %2254 = vset.pattern.permute.xlu0 1
        %2255 = vperm.xlu0 %2254, %v1951
        %v2256 = vpop.permute.xlu0 %2255
        %2258 = vset.pattern.permute.xlu0 1
        %2259 = vperm.xlu0 %2258, %v1952
        %v2260 = vpop.permute.xlu0 %2259
        %2262 = vset.pattern.permute.xlu0 1
        %2263 = vperm.xlu0 %2262, %v1953
        %v2264 = vpop.permute.xlu0 %2263
        %2266 = vset.pattern.permute.xlu0 1
        %2267 = vperm.xlu0 %2266, %v1954
        %v2268 = vpop.permute.xlu0 %2267
        %2270 = vset.pattern.permute.xlu0 1
        %2271 = vperm.xlu0 %2270, %v1955
        %v2272 = vpop.permute.xlu0 %2271
        %2274 = vset.pattern.permute.xlu0 1
        %2275 = vperm.xlu0 %2274, %v1956
        %v2276 = vpop.permute.xlu0 %2275
        %2278 = vset.pattern.permute.xlu0 1
        %2279 = vperm.xlu0 %2278, %v1957
        %v2280 = vpop.permute.xlu0 %2279
        %v2282 = vlaneseq
        %v2283 = vshrl.u32 %v2282, 7
        %v2284 = vsub.s32 1, %v2283
        %v2285 = vrot.slane %v1765, %v2284
        %v2286 = vmul.f32 %v2156, %v2285
        %v2287 = vmul.f32 %v2160, %v2285
        %v2288 = vmul.f32 %v2164, %v2285
        %v2289 = vmul.f32 %v2168, %v2285
        %v2290 = vmul.f32 %v2172, %v2285
        %v2291 = vmul.f32 %v2176, %v2285
        %v2292 = vmul.f32 %v2180, %v2285
        %v2293 = vmul.f32 %v2184, %v2285
        %v2294 = vmul.f32 %v2188, %v2285
        %v2295 = vmul.f32 %v2192, %v2285
        %v2296 = vmul.f32 %v2196, %v2285
        %v2297 = vmul.f32 %v2200, %v2285
        %v2298 = vmul.f32 %v2204, %v2285
        %v2299 = vmul.f32 %v2208, %v2285
        %v2300 = vmul.f32 %v2212, %v2285
        %v2301 = vmul.f32 %v2216, %v2285
        %v2302 = vmul.f32 %v2220, %v2285
        %v2303 = vmul.f32 %v2224, %v2285
        %v2304 = vmul.f32 %v2228, %v2285
        %v2305 = vmul.f32 %v2232, %v2285
        %v2306 = vmul.f32 %v2236, %v2285
        %v2307 = vmul.f32 %v2240, %v2285
        %v2308 = vmul.f32 %v2244, %v2285
        %v2309 = vmul.f32 %v2248, %v2285
        %v2310 = vmul.f32 %v2252, %v2285
        %v2311 = vmul.f32 %v2256, %v2285
        %v2312 = vmul.f32 %v2260, %v2285
        %v2313 = vmul.f32 %v2264, %v2285
        %v2314 = vmul.f32 %v2268, %v2285
        %v2315 = vmul.f32 %v2272, %v2285
        %v2316 = vmul.f32 %v2276, %v2285
        %v2317 = vmul.f32 %v2280, %v2285
        %v2318 = vadd.f32 %v2122, %v2286
        %v2319 = vadd.f32 %v2123, %v2287
        %v2320 = vadd.f32 %v2124, %v2288
        %v2321 = vadd.f32 %v2125, %v2289
        %v2322 = vadd.f32 %v2126, %v2290
        %v2323 = vadd.f32 %v2127, %v2291
        %v2324 = vadd.f32 %v2128, %v2292
        %v2325 = vadd.f32 %v2129, %v2293
        %v2326 = vadd.f32 %v2130, %v2294
        %v2327 = vadd.f32 %v2131, %v2295
        %v2328 = vadd.f32 %v2132, %v2296
        %v2329 = vadd.f32 %v2133, %v2297
        %v2330 = vadd.f32 %v2134, %v2298
        %v2331 = vadd.f32 %v2135, %v2299
        %v2332 = vadd.f32 %v2136, %v2300
        %v2333 = vadd.f32 %v2137, %v2301
        %v2334 = vadd.f32 %v2138, %v2302
        %v2335 = vadd.f32 %v2139, %v2303
        %v2336 = vadd.f32 %v2140, %v2304
        %v2337 = vadd.f32 %v2141, %v2305
        %v2338 = vadd.f32 %v2142, %v2306
        %v2339 = vadd.f32 %v2143, %v2307
        %v2340 = vadd.f32 %v2144, %v2308
        %v2341 = vadd.f32 %v2145, %v2309
        %v2342 = vadd.f32 %v2146, %v2310
        %v2343 = vadd.f32 %v2147, %v2311
        %v2344 = vadd.f32 %v2148, %v2312
        %v2345 = vadd.f32 %v2149, %v2313
        %v2346 = vadd.f32 %v2150, %v2314
        %v2347 = vadd.f32 %v2151, %v2315
        %v2348 = vadd.f32 %v2152, %v2316
        %v2349 = vadd.f32 %v2153, %v2317
        %2350 = vset.pattern.permute.xlu0 2
        %2351 = vperm.xlu0 %2350, %v1926
        %v2352 = vpop.permute.xlu0 %2351
        %2354 = vset.pattern.permute.xlu0 2
        %2355 = vperm.xlu0 %2354, %v1927
        %v2356 = vpop.permute.xlu0 %2355
        %2358 = vset.pattern.permute.xlu0 2
        %2359 = vperm.xlu0 %2358, %v1928
        %v2360 = vpop.permute.xlu0 %2359
        %2362 = vset.pattern.permute.xlu0 2
        %2363 = vperm.xlu0 %2362, %v1929
        %v2364 = vpop.permute.xlu0 %2363
        %2366 = vset.pattern.permute.xlu0 2
        %2367 = vperm.xlu0 %2366, %v1930
        %v2368 = vpop.permute.xlu0 %2367
        %2370 = vset.pattern.permute.xlu0 2
        %2371 = vperm.xlu0 %2370, %v1931
        %v2372 = vpop.permute.xlu0 %2371
        %2374 = vset.pattern.permute.xlu0 2
        %2375 = vperm.xlu0 %2374, %v1932
        %v2376 = vpop.permute.xlu0 %2375
        %2378 = vset.pattern.permute.xlu0 2
        %2379 = vperm.xlu0 %2378, %v1933
        %v2380 = vpop.permute.xlu0 %2379
        %2382 = vset.pattern.permute.xlu0 2
        %2383 = vperm.xlu0 %2382, %v1934
        %v2384 = vpop.permute.xlu0 %2383
        %2386 = vset.pattern.permute.xlu0 2
        %2387 = vperm.xlu0 %2386, %v1935
        %v2388 = vpop.permute.xlu0 %2387
        %2390 = vset.pattern.permute.xlu0 2
        %2391 = vperm.xlu0 %2390, %v1936
        %v2392 = vpop.permute.xlu0 %2391
        %2394 = vset.pattern.permute.xlu0 2
        %2395 = vperm.xlu0 %2394, %v1937
        %v2396 = vpop.permute.xlu0 %2395
        %2398 = vset.pattern.permute.xlu0 2
        %2399 = vperm.xlu0 %2398, %v1938
        %v2400 = vpop.permute.xlu0 %2399
        %2402 = vset.pattern.permute.xlu0 2
        %2403 = vperm.xlu0 %2402, %v1939
        %v2404 = vpop.permute.xlu0 %2403
        %2406 = vset.pattern.permute.xlu0 2
        %2407 = vperm.xlu0 %2406, %v1940
        %v2408 = vpop.permute.xlu0 %2407
        %2410 = vset.pattern.permute.xlu0 2
        %2411 = vperm.xlu0 %2410, %v1941
        %v2412 = vpop.permute.xlu0 %2411
        %2414 = vset.pattern.permute.xlu0 2
        %2415 = vperm.xlu0 %2414, %v1942
        %v2416 = vpop.permute.xlu0 %2415
        %2418 = vset.pattern.permute.xlu0 2
        %2419 = vperm.xlu0 %2418, %v1943
        %v2420 = vpop.permute.xlu0 %2419
        %2422 = vset.pattern.permute.xlu0 2
        %2423 = vperm.xlu0 %2422, %v1944
        %v2424 = vpop.permute.xlu0 %2423
        %2426 = vset.pattern.permute.xlu0 2
        %2427 = vperm.xlu0 %2426, %v1945
        %v2428 = vpop.permute.xlu0 %2427
        %2430 = vset.pattern.permute.xlu0 2
        %2431 = vperm.xlu0 %2430, %v1946
        %v2432 = vpop.permute.xlu0 %2431
        %2434 = vset.pattern.permute.xlu0 2
        %2435 = vperm.xlu0 %2434, %v1947
        %v2436 = vpop.permute.xlu0 %2435
        %2438 = vset.pattern.permute.xlu0 2
        %2439 = vperm.xlu0 %2438, %v1948
        %v2440 = vpop.permute.xlu0 %2439
        %2442 = vset.pattern.permute.xlu0 2
        %2443 = vperm.xlu0 %2442, %v1949
        %v2444 = vpop.permute.xlu0 %2443
        %2446 = vset.pattern.permute.xlu0 2
        %2447 = vperm.xlu0 %2446, %v1950
        %v2448 = vpop.permute.xlu0 %2447
        %2450 = vset.pattern.permute.xlu0 2
        %2451 = vperm.xlu0 %2450, %v1951
        %v2452 = vpop.permute.xlu0 %2451
        %2454 = vset.pattern.permute.xlu0 2
        %2455 = vperm.xlu0 %2454, %v1952
        %v2456 = vpop.permute.xlu0 %2455
        %2458 = vset.pattern.permute.xlu0 2
        %2459 = vperm.xlu0 %2458, %v1953
        %v2460 = vpop.permute.xlu0 %2459
        %2462 = vset.pattern.permute.xlu0 2
        %2463 = vperm.xlu0 %2462, %v1954
        %v2464 = vpop.permute.xlu0 %2463
        %2466 = vset.pattern.permute.xlu0 2
        %2467 = vperm.xlu0 %2466, %v1955
        %v2468 = vpop.permute.xlu0 %2467
        %2470 = vset.pattern.permute.xlu0 2
        %2471 = vperm.xlu0 %2470, %v1956
        %v2472 = vpop.permute.xlu0 %2471
        %2474 = vset.pattern.permute.xlu0 2
        %2475 = vperm.xlu0 %2474, %v1957
        %v2476 = vpop.permute.xlu0 %2475
        %v2478 = vlaneseq
        %v2479 = vshrl.u32 %v2478, 7
        %v2480 = vsub.s32 2, %v2479
        %v2481 = vrot.slane %v1765, %v2480
        %v2482 = vmul.f32 %v2352, %v2481
        %v2483 = vmul.f32 %v2356, %v2481
        %v2484 = vmul.f32 %v2360, %v2481
        %v2485 = vmul.f32 %v2364, %v2481
        %v2486 = vmul.f32 %v2368, %v2481
        %v2487 = vmul.f32 %v2372, %v2481
        %v2488 = vmul.f32 %v2376, %v2481
        %v2489 = vmul.f32 %v2380, %v2481
        %v2490 = vmul.f32 %v2384, %v2481
        %v2491 = vmul.f32 %v2388, %v2481
        %v2492 = vmul.f32 %v2392, %v2481
        %v2493 = vmul.f32 %v2396, %v2481
        %v2494 = vmul.f32 %v2400, %v2481
        %v2495 = vmul.f32 %v2404, %v2481
        %v2496 = vmul.f32 %v2408, %v2481
        %v2497 = vmul.f32 %v2412, %v2481
        %v2498 = vmul.f32 %v2416, %v2481
        %v2499 = vmul.f32 %v2420, %v2481
        %v2500 = vmul.f32 %v2424, %v2481
        %v2501 = vmul.f32 %v2428, %v2481
        %v2502 = vmul.f32 %v2432, %v2481
        %v2503 = vmul.f32 %v2436, %v2481
        %v2504 = vmul.f32 %v2440, %v2481
        %v2505 = vmul.f32 %v2444, %v2481
        %v2506 = vmul.f32 %v2448, %v2481
        %v2507 = vmul.f32 %v2452, %v2481
        %v2508 = vmul.f32 %v2456, %v2481
        %v2509 = vmul.f32 %v2460, %v2481
        %v2510 = vmul.f32 %v2464, %v2481
        %v2511 = vmul.f32 %v2468, %v2481
        %v2512 = vmul.f32 %v2472, %v2481
        %v2513 = vmul.f32 %v2476, %v2481
        %v2514 = vadd.f32 %v2318, %v2482
        %v2515 = vadd.f32 %v2319, %v2483
        %v2516 = vadd.f32 %v2320, %v2484
        %v2517 = vadd.f32 %v2321, %v2485
        %v2518 = vadd.f32 %v2322, %v2486
        %v2519 = vadd.f32 %v2323, %v2487
        %v2520 = vadd.f32 %v2324, %v2488
        %v2521 = vadd.f32 %v2325, %v2489
        %v2522 = vadd.f32 %v2326, %v2490
        %v2523 = vadd.f32 %v2327, %v2491
        %v2524 = vadd.f32 %v2328, %v2492
        %v2525 = vadd.f32 %v2329, %v2493
        %v2526 = vadd.f32 %v2330, %v2494
        %v2527 = vadd.f32 %v2331, %v2495
        %v2528 = vadd.f32 %v2332, %v2496
        %v2529 = vadd.f32 %v2333, %v2497
        %v2530 = vadd.f32 %v2334, %v2498
        %v2531 = vadd.f32 %v2335, %v2499
        %v2532 = vadd.f32 %v2336, %v2500
        %v2533 = vadd.f32 %v2337, %v2501
        %v2534 = vadd.f32 %v2338, %v2502
        %v2535 = vadd.f32 %v2339, %v2503
        %v2536 = vadd.f32 %v2340, %v2504
        %v2537 = vadd.f32 %v2341, %v2505
        %v2538 = vadd.f32 %v2342, %v2506
        %v2539 = vadd.f32 %v2343, %v2507
        %v2540 = vadd.f32 %v2344, %v2508
        %v2541 = vadd.f32 %v2345, %v2509
        %v2542 = vadd.f32 %v2346, %v2510
        %v2543 = vadd.f32 %v2347, %v2511
        %v2544 = vadd.f32 %v2348, %v2512
        %v2545 = vadd.f32 %v2349, %v2513
        %v2546 = vlaneseq
        %v2547 = vshrl.u32 %v2546, 7
        %v2548 = vsub.s32 3, %v2547
        %v2549 = vrot.slane %v1765, %v2548
        %v2550 = vadd.f32 %v2514, %v2549
        %v2551 = vadd.f32 %v2515, %v2549
        %v2552 = vadd.f32 %v2516, %v2549
        %v2553 = vadd.f32 %v2517, %v2549
        %v2554 = vadd.f32 %v2518, %v2549
        %v2555 = vadd.f32 %v2519, %v2549
        %v2556 = vadd.f32 %v2520, %v2549
        %v2557 = vadd.f32 %v2521, %v2549
        %v2558 = vadd.f32 %v2522, %v2549
        %v2559 = vadd.f32 %v2523, %v2549
        %v2560 = vadd.f32 %v2524, %v2549
        %v2561 = vadd.f32 %v2525, %v2549
        %v2562 = vadd.f32 %v2526, %v2549
        %v2563 = vadd.f32 %v2527, %v2549
        %v2564 = vadd.f32 %v2528, %v2549
        %v2565 = vadd.f32 %v2529, %v2549
        %v2566 = vadd.f32 %v2530, %v2549
        %v2567 = vadd.f32 %v2531, %v2549
        %v2568 = vadd.f32 %v2532, %v2549
        %v2569 = vadd.f32 %v2533, %v2549
        %v2570 = vadd.f32 %v2534, %v2549
        %v2571 = vadd.f32 %v2535, %v2549
        %v2572 = vadd.f32 %v2536, %v2549
        %v2573 = vadd.f32 %v2537, %v2549
        %v2574 = vadd.f32 %v2538, %v2549
        %v2575 = vadd.f32 %v2539, %v2549
        %v2576 = vadd.f32 %v2540, %v2549
        %v2577 = vadd.f32 %v2541, %v2549
        %v2578 = vadd.f32 %v2542, %v2549
        %v2579 = vadd.f32 %v2543, %v2549
        %v2580 = vadd.f32 %v2544, %v2549
        %v2581 = vadd.f32 %v2545, %v2549
        %2614 = vrot.lane.b32.xlu0 %v2550, 32
        %v2615 = vpop.permute.xlu0 %2614
        %2616 = vrot.lane.b32.xlu0 %v2551, 32
        %v2617 = vpop.permute.xlu0 %2616
        %2618 = vrot.lane.b32.xlu0 %v2552, 32
        %v2619 = vpop.permute.xlu0 %2618
        %2620 = vrot.lane.b32.xlu0 %v2553, 32
        %v2621 = vpop.permute.xlu0 %2620
        %2622 = vrot.lane.b32.xlu0 %v2554, 32
        %v2623 = vpop.permute.xlu0 %2622
        %2624 = vrot.lane.b32.xlu0 %v2555, 32
        %v2625 = vpop.permute.xlu0 %2624
        %2626 = vrot.lane.b32.xlu0 %v2556, 32
        %v2627 = vpop.permute.xlu0 %2626
        %2628 = vrot.lane.b32.xlu0 %v2557, 32
        %v2629 = vpop.permute.xlu0 %2628
        %2630 = vrot.lane.b32.xlu0 %v2558, 32
        %v2631 = vpop.permute.xlu0 %2630
        %2632 = vrot.lane.b32.xlu0 %v2559, 32
        %v2633 = vpop.permute.xlu0 %2632
        %2634 = vrot.lane.b32.xlu0 %v2560, 32
        %v2635 = vpop.permute.xlu0 %2634
        %2636 = vrot.lane.b32.xlu0 %v2561, 32
        %v2637 = vpop.permute.xlu0 %2636
        %2638 = vrot.lane.b32.xlu0 %v2562, 32
        %v2639 = vpop.permute.xlu0 %2638
        %2640 = vrot.lane.b32.xlu0 %v2563, 32
        %v2641 = vpop.permute.xlu0 %2640
        %2642 = vrot.lane.b32.xlu0 %v2564, 32
        %v2643 = vpop.permute.xlu0 %2642
        %2644 = vrot.lane.b32.xlu0 %v2565, 32
        %v2645 = vpop.permute.xlu0 %2644
        %2646 = vrot.lane.b32.xlu0 %v2566, 32
        %v2647 = vpop.permute.xlu0 %2646
        %2648 = vrot.lane.b32.xlu0 %v2567, 32
        %v2649 = vpop.permute.xlu0 %2648
        %2650 = vrot.lane.b32.xlu0 %v2568, 32
        %v2651 = vpop.permute.xlu0 %2650
        %2652 = vrot.lane.b32.xlu0 %v2569, 32
        %v2653 = vpop.permute.xlu0 %2652
        %2654 = vrot.lane.b32.xlu0 %v2570, 32
        %v2655 = vpop.permute.xlu0 %2654
        %2656 = vrot.lane.b32.xlu0 %v2571, 32
        %v2657 = vpop.permute.xlu0 %2656
        %2658 = vrot.lane.b32.xlu0 %v2572, 32
        %v2659 = vpop.permute.xlu0 %2658
        %2660 = vrot.lane.b32.xlu0 %v2573, 32
        %v2661 = vpop.permute.xlu0 %2660
        %2662 = vrot.lane.b32.xlu0 %v2574, 32
        %v2663 = vpop.permute.xlu0 %2662
        %2664 = vrot.lane.b32.xlu0 %v2575, 32
        %v2665 = vpop.permute.xlu0 %2664
        %2666 = vrot.lane.b32.xlu0 %v2576, 32
        %v2667 = vpop.permute.xlu0 %2666
        %2668 = vrot.lane.b32.xlu0 %v2577, 32
        %v2669 = vpop.permute.xlu0 %2668
        %2670 = vrot.lane.b32.xlu0 %v2578, 32
        %v2671 = vpop.permute.xlu0 %2670
        %2672 = vrot.lane.b32.xlu0 %v2579, 32
        %v2673 = vpop.permute.xlu0 %2672
        %2674 = vrot.lane.b32.xlu0 %v2580, 32
        %v2675 = vpop.permute.xlu0 %2674
        %2676 = vrot.lane.b32.xlu0 %v2581, 32
        %v2677 = vpop.permute.xlu0 %2676
        %v2710 = vsel %vm712, %v563, %v2615
        %v2711 = vsel %vm712, %v564, %v2617
        %v2712 = vsel %vm712, %v565, %v2619
        %v2713 = vsel %vm712, %v566, %v2621
        %v2714 = vsel %vm712, %v567, %v2623
        %v2715 = vsel %vm712, %v568, %v2625
        %v2716 = vsel %vm712, %v569, %v2627
        %v2717 = vsel %vm712, %v570, %v2629
        %v2718 = vsel %vm712, %v571, %v2631
        %v2719 = vsel %vm712, %v572, %v2633
        %v2720 = vsel %vm712, %v573, %v2635
        %v2721 = vsel %vm712, %v574, %v2637
        %v2722 = vsel %vm712, %v575, %v2639
        %v2723 = vsel %vm712, %v576, %v2641
        %v2724 = vsel %vm712, %v577, %v2643
        %v2725 = vsel %vm712, %v578, %v2645
        %v2726 = vsel %vm712, %v579, %v2647
        %v2727 = vsel %vm712, %v580, %v2649
        %v2728 = vsel %vm712, %v581, %v2651
        %v2729 = vsel %vm712, %v582, %v2653
        %v2730 = vsel %vm712, %v583, %v2655
        %v2731 = vsel %vm712, %v584, %v2657
        %v2732 = vsel %vm712, %v585, %v2659
        %v2733 = vsel %vm712, %v586, %v2661
        %v2734 = vsel %vm712, %v587, %v2663
        %v2735 = vsel %vm712, %v588, %v2665
        %v2736 = vsel %vm712, %v589, %v2667
        %v2737 = vsel %vm712, %v590, %v2669
        %v2738 = vsel %vm712, %v591, %v2671
        %v2739 = vsel %vm712, %v592, %v2673
        %v2740 = vsel %vm712, %v593, %v2675
        %v2741 = vsel %vm712, %v594, %v2677
        %v2742 = vpack.c.bf16 %v2711, %v2710
        %v2743 = vpack.c.bf16 %v2713, %v2712
        %v2744 = vpack.c.bf16 %v2715, %v2714
        %v2745 = vpack.c.bf16 %v2717, %v2716
        %v2746 = vpack.c.bf16 %v2719, %v2718
        %v2747 = vpack.c.bf16 %v2721, %v2720
        %v2748 = vpack.c.bf16 %v2723, %v2722
        %v2749 = vpack.c.bf16 %v2725, %v2724
        %v2750 = vpack.c.bf16 %v2727, %v2726
        %v2751 = vpack.c.bf16 %v2729, %v2728
        %v2752 = vpack.c.bf16 %v2731, %v2730
        %v2753 = vpack.c.bf16 %v2733, %v2732
        %v2754 = vpack.c.bf16 %v2735, %v2734
        %v2755 = vpack.c.bf16 %v2737, %v2736
        %v2756 = vpack.c.bf16 %v2739, %v2738
        %v2757 = vpack.c.bf16 %v2741, %v2740
        %v2758 = vld [vmem:[%s7] sm:$0xff]
        %v2759 = vld [vmem:[%s7 + $0x8] sm:$0xff]
        %v2760 = vld [vmem:[%s7 + $0x10] sm:$0xff]
        %v2761 = vld [vmem:[%s7 + $0x18] sm:$0xff]
        %v2762 = vld [vmem:[%s7 + $0x20] sm:$0xff]
        %v2763 = vld [vmem:[%s7 + $0x28] sm:$0xff]
        %v2764 = vld [vmem:[%s7 + $0x30] sm:$0xff]
        %v2765 = vld [vmem:[%s7 + $0x38] sm:$0xff]
        %v2766 = vld [vmem:[%s7 + $0x40] sm:$0xff]
        %v2767 = vld [vmem:[%s7 + $0x48] sm:$0xff]
        %v2768 = vld [vmem:[%s7 + $0x50] sm:$0xff]
        %v2769 = vld [vmem:[%s7 + $0x58] sm:$0xff]
        %v2770 = vld [vmem:[%s7 + $0x60] sm:$0xff]
        %v2771 = vld [vmem:[%s7 + $0x68] sm:$0xff]
        %v2772 = vld [vmem:[%s7 + $0x70] sm:$0xff]
        %v2773 = vld [vmem:[%s7 + $0x78] sm:$0xff]
        %v2774 = vld [vmem:[%s7 + $0x80] sm:$0xff]
        %v2775 = vld [vmem:[%s7 + $0x88] sm:$0xff]
        %v2776 = vld [vmem:[%s7 + $0x90] sm:$0xff]
        %v2777 = vld [vmem:[%s7 + $0x98] sm:$0xff]
        %v2778 = vld [vmem:[%s7 + $0xa0] sm:$0xff]
        %v2779 = vld [vmem:[%s7 + $0xa8] sm:$0xff]
        %v2780 = vld [vmem:[%s7 + $0xb0] sm:$0xff]
        %v2781 = vld [vmem:[%s7 + $0xb8] sm:$0xff]
        %v2782 = vld [vmem:[%s7 + $0xc0] sm:$0xff]
        %v2783 = vld [vmem:[%s7 + $0xc8] sm:$0xff]
        %v2784 = vld [vmem:[%s7 + $0xd0] sm:$0xff]
        %v2785 = vld [vmem:[%s7 + $0xd8] sm:$0xff]
        %v2786 = vld [vmem:[%s7 + $0xe0] sm:$0xff]
        %v2787 = vld [vmem:[%s7 + $0xe8] sm:$0xff]
        %v2788 = vld [vmem:[%s7 + $0xf0] sm:$0xff]
        %v2789 = vld [vmem:[%s7 + $0xf8] sm:$0xff]
        %v2790 = vld [vmem:[%s7 + $0x100] sm:$0xff]
        %v2791 = vld [vmem:[%s7 + $0x108] sm:$0xff]
        %v2792 = vld [vmem:[%s7 + $0x110] sm:$0xff]
        %v2793 = vld [vmem:[%s7 + $0x118] sm:$0xff]
        %v2794 = vld [vmem:[%s7 + $0x120] sm:$0xff]
        %v2795 = vld [vmem:[%s7 + $0x128] sm:$0xff]
        %v2796 = vld [vmem:[%s7 + $0x130] sm:$0xff]
        %v2797 = vld [vmem:[%s7 + $0x138] sm:$0xff]
        %v2798 = vld [vmem:[%s7 + $0x140] sm:$0xff]
        %v2799 = vld [vmem:[%s7 + $0x148] sm:$0xff]
        %v2800 = vld [vmem:[%s7 + $0x150] sm:$0xff]
        %v2801 = vld [vmem:[%s7 + $0x158] sm:$0xff]
        %v2802 = vld [vmem:[%s7 + $0x160] sm:$0xff]
        %v2803 = vld [vmem:[%s7 + $0x168] sm:$0xff]
        %v2804 = vld [vmem:[%s7 + $0x170] sm:$0xff]
        %v2805 = vld [vmem:[%s7 + $0x178] sm:$0xff]
        %v2806 = vld [vmem:[%s7 + $0x180] sm:$0xff]
        %v2807 = vld [vmem:[%s7 + $0x188] sm:$0xff]
        %v2808 = vld [vmem:[%s7 + $0x190] sm:$0xff]
        %v2809 = vld [vmem:[%s7 + $0x198] sm:$0xff]
        %v2810 = vld [vmem:[%s7 + $0x1a0] sm:$0xff]
        %v2811 = vld [vmem:[%s7 + $0x1a8] sm:$0xff]
        %v2812 = vld [vmem:[%s7 + $0x1b0] sm:$0xff]
        %v2813 = vld [vmem:[%s7 + $0x1b8] sm:$0xff]
        %v2814 = vld [vmem:[%s7 + $0x1c0] sm:$0xff]
        %v2815 = vld [vmem:[%s7 + $0x1c8] sm:$0xff]
        %v2816 = vld [vmem:[%s7 + $0x1d0] sm:$0xff]
        %v2817 = vld [vmem:[%s7 + $0x1d8] sm:$0xff]
        %v2818 = vld [vmem:[%s7 + $0x1e0] sm:$0xff]
        %v2819 = vld [vmem:[%s7 + $0x1e8] sm:$0xff]
        %v2820 = vld [vmem:[%s7 + $0x1f0] sm:$0xff]
        %v2821 = vld [vmem:[%s7 + $0x1f8] sm:$0xff]
        %v2822 = vld [vmem:[%s7 + $0x200] sm:$0xff]
        %v2823 = vld [vmem:[%s7 + $0x208] sm:$0xff]
        %v2824 = vld [vmem:[%s7 + $0x210] sm:$0xff]
        %v2825 = vld [vmem:[%s7 + $0x218] sm:$0xff]
        %v2826 = vld [vmem:[%s7 + $0x220] sm:$0xff]
        %v2827 = vld [vmem:[%s7 + $0x228] sm:$0xff]
        %v2828 = vld [vmem:[%s7 + $0x230] sm:$0xff]
        %v2829 = vld [vmem:[%s7 + $0x238] sm:$0xff]
        %v2830 = vld [vmem:[%s7 + $0x240] sm:$0xff]
        %v2831 = vld [vmem:[%s7 + $0x248] sm:$0xff]
        %v2832 = vld [vmem:[%s7 + $0x250] sm:$0xff]
        %v2833 = vld [vmem:[%s7 + $0x258] sm:$0xff]
        %v2834 = vld [vmem:[%s7 + $0x260] sm:$0xff]
        %v2835 = vld [vmem:[%s7 + $0x268] sm:$0xff]
        %v2836 = vld [vmem:[%s7 + $0x270] sm:$0xff]
        %v2837 = vld [vmem:[%s7 + $0x278] sm:$0xff]
        %v2838 = vld [vmem:[%s7 + $0x280] sm:$0xff]
        %v2839 = vld [vmem:[%s7 + $0x288] sm:$0xff]
        %v2840 = vld [vmem:[%s7 + $0x290] sm:$0xff]
        %v2841 = vld [vmem:[%s7 + $0x298] sm:$0xff]
        %v2842 = vld [vmem:[%s7 + $0x2a0] sm:$0xff]
        %v2843 = vld [vmem:[%s7 + $0x2a8] sm:$0xff]
        %v2844 = vld [vmem:[%s7 + $0x2b0] sm:$0xff]
        %v2845 = vld [vmem:[%s7 + $0x2b8] sm:$0xff]
        %v2846 = vld [vmem:[%s7 + $0x2c0] sm:$0xff]
        %v2847 = vld [vmem:[%s7 + $0x2c8] sm:$0xff]
        %v2848 = vld [vmem:[%s7 + $0x2d0] sm:$0xff]
        %v2849 = vld [vmem:[%s7 + $0x2d8] sm:$0xff]
        %v2850 = vld [vmem:[%s7 + $0x2e0] sm:$0xff]
        %v2851 = vld [vmem:[%s7 + $0x2e8] sm:$0xff]
        %v2852 = vld [vmem:[%s7 + $0x2f0] sm:$0xff]
        %v2853 = vld [vmem:[%s7 + $0x2f8] sm:$0xff]
        %v2854 = vld [vmem:[%s8] sm:$0xff]
        %v2856 = vlaneseq
        %v2857 = vshrl.u32 %v2856, 7
        %v2858 = vsub.s32 0, %v2857
        %v2859 = vrot.slane %v2854, %v2858
        %v2860 = vlaneseq
        %v2861 = vshrl.u32 %v2860, 7
        %v2862 = vsub.s32 1, %v2861
        %v2863 = vrot.slane %v2854, %v2862
        %v2864 = vlaneseq
        %v2865 = vshrl.u32 %v2864, 7
        %v2866 = vsub.s32 2, %v2865
        %v2867 = vrot.slane %v2854, %v2866
        %v2868 = vlaneseq
        %v2869 = vshrl.u32 %v2868, 7
        %v2870 = vsub.s32 3, %v2869
        %v2871 = vrot.slane %v2854, %v2870
        %v2872 = vlaneseq
        %v2873 = vshrl.u32 %v2872, 7
        %v2874 = vsub.s32 4, %v2873
        %v2875 = vrot.slane %v2854, %v2874
        %v2876 = vlaneseq
        %v2877 = vshrl.u32 %v2876, 7
        %v2878 = vsub.s32 5, %v2877
        %v2879 = vrot.slane %v2854, %v2878
        %v2880 = vlaneseq
        %v2881 = vshrl.u32 %v2880, 7
        %v2882 = vsub.s32 6, %v2881
        %v2883 = vrot.slane %v2854, %v2882
        %v2884 = vlaneseq
        %v2885 = vshrl.u32 %v2884, 7
        %v2886 = vsub.s32 7, %v2885
        %v2887 = vrot.slane %v2854, %v2886
        %v2992 = vunpack.c.l.b16 %v2758
        %v2993 = vunpack.c.h.b16 %v2758
        %v2994 = vunpack.c.l.b16 %v2759
        %v2995 = vunpack.c.h.b16 %v2759
        %v2996 = vunpack.c.l.b16 %v2760
        %v2997 = vunpack.c.h.b16 %v2760
        %v2998 = vunpack.c.l.b16 %v2761
        %v2999 = vunpack.c.h.b16 %v2761
        %v3000 = vunpack.c.l.b16 %v2762
        %v3001 = vunpack.c.h.b16 %v2762
        %v3002 = vunpack.c.l.b16 %v2763
        %v3003 = vunpack.c.h.b16 %v2763
        %v3004 = vunpack.c.l.b16 %v2764
        %v3005 = vunpack.c.h.b16 %v2764
        %v3006 = vunpack.c.l.b16 %v2765
        %v3007 = vunpack.c.h.b16 %v2765
        %v3008 = vunpack.c.l.b16 %v2766
        %v3009 = vunpack.c.h.b16 %v2766
        %v3010 = vunpack.c.l.b16 %v2767
        %v3011 = vunpack.c.h.b16 %v2767
        %v3012 = vunpack.c.l.b16 %v2768
        %v3013 = vunpack.c.h.b16 %v2768
        %v3014 = vunpack.c.l.b16 %v2769
        %v3015 = vunpack.c.h.b16 %v2769
        %v3016 = vunpack.c.l.b16 %v2770
        %v3017 = vunpack.c.h.b16 %v2770
        %v3018 = vunpack.c.l.b16 %v2771
        %v3019 = vunpack.c.h.b16 %v2771
        %v3020 = vunpack.c.l.b16 %v2772
        %v3021 = vunpack.c.h.b16 %v2772
        %v3022 = vunpack.c.l.b16 %v2773
        %v3023 = vunpack.c.h.b16 %v2773
        %v3024 = vunpack.c.l.b16 %v2774
        %v3025 = vunpack.c.h.b16 %v2774
        %v3026 = vunpack.c.l.b16 %v2775
        %v3027 = vunpack.c.h.b16 %v2775
        %v3028 = vunpack.c.l.b16 %v2776
        %v3029 = vunpack.c.h.b16 %v2776
        %v3030 = vunpack.c.l.b16 %v2777
        %v3031 = vunpack.c.h.b16 %v2777
        %v3032 = vunpack.c.l.b16 %v2778
        %v3033 = vunpack.c.h.b16 %v2778
        %v3034 = vunpack.c.l.b16 %v2779
        %v3035 = vunpack.c.h.b16 %v2779
        %v3036 = vunpack.c.l.b16 %v2780
        %v3037 = vunpack.c.h.b16 %v2780
        %v3038 = vunpack.c.l.b16 %v2781
        %v3039 = vunpack.c.h.b16 %v2781
        %v3040 = vunpack.c.l.b16 %v2782
        %v3041 = vunpack.c.h.b16 %v2782
        %v3042 = vunpack.c.l.b16 %v2783
        %v3043 = vunpack.c.h.b16 %v2783
        %v3044 = vunpack.c.l.b16 %v2784
        %v3045 = vunpack.c.h.b16 %v2784
        %v3046 = vunpack.c.l.b16 %v2785
        %v3047 = vunpack.c.h.b16 %v2785
        %v3048 = vunpack.c.l.b16 %v2786
        %v3049 = vunpack.c.h.b16 %v2786
        %v3050 = vunpack.c.l.b16 %v2787
        %v3051 = vunpack.c.h.b16 %v2787
        %v3052 = vunpack.c.l.b16 %v2788
        %v3053 = vunpack.c.h.b16 %v2788
        %v3054 = vunpack.c.l.b16 %v2789
        %v3055 = vunpack.c.h.b16 %v2789
        %v3056 = vunpack.c.l.b16 %v2790
        %v3057 = vunpack.c.h.b16 %v2790
        %v3058 = vunpack.c.l.b16 %v2791
        %v3059 = vunpack.c.h.b16 %v2791
        %v3060 = vunpack.c.l.b16 %v2792
        %v3061 = vunpack.c.h.b16 %v2792
        %v3062 = vunpack.c.l.b16 %v2793
        %v3063 = vunpack.c.h.b16 %v2793
        %v3064 = vunpack.c.l.b16 %v2794
        %v3065 = vunpack.c.h.b16 %v2794
        %v3066 = vunpack.c.l.b16 %v2795
        %v3067 = vunpack.c.h.b16 %v2795
        %v3068 = vunpack.c.l.b16 %v2796
        %v3069 = vunpack.c.h.b16 %v2796
        %v3070 = vunpack.c.l.b16 %v2797
        %v3071 = vunpack.c.h.b16 %v2797
        %v3072 = vunpack.c.l.b16 %v2798
        %v3073 = vunpack.c.h.b16 %v2798
        %v3074 = vunpack.c.l.b16 %v2799
        %v3075 = vunpack.c.h.b16 %v2799
        %v3076 = vunpack.c.l.b16 %v2800
        %v3077 = vunpack.c.h.b16 %v2800
        %v3078 = vunpack.c.l.b16 %v2801
        %v3079 = vunpack.c.h.b16 %v2801
        %v3080 = vunpack.c.l.b16 %v2802
        %v3081 = vunpack.c.h.b16 %v2802
        %v3082 = vunpack.c.l.b16 %v2803
        %v3083 = vunpack.c.h.b16 %v2803
        %v3084 = vunpack.c.l.b16 %v2804
        %v3085 = vunpack.c.h.b16 %v2804
        %v3086 = vunpack.c.l.b16 %v2805
        %v3087 = vunpack.c.h.b16 %v2805
        %v3088 = vunpack.c.l.b16 %v2806
        %v3089 = vunpack.c.h.b16 %v2806
        %v3090 = vunpack.c.l.b16 %v2807
        %v3091 = vunpack.c.h.b16 %v2807
        %v3092 = vunpack.c.l.b16 %v2808
        %v3093 = vunpack.c.h.b16 %v2808
        %v3094 = vunpack.c.l.b16 %v2809
        %v3095 = vunpack.c.h.b16 %v2809
        %v3096 = vunpack.c.l.b16 %v2810
        %v3097 = vunpack.c.h.b16 %v2810
        %v3098 = vunpack.c.l.b16 %v2811
        %v3099 = vunpack.c.h.b16 %v2811
        %v3100 = vunpack.c.l.b16 %v2812
        %v3101 = vunpack.c.h.b16 %v2812
        %v3102 = vunpack.c.l.b16 %v2813
        %v3103 = vunpack.c.h.b16 %v2813
        %v3104 = vunpack.c.l.b16 %v2814
        %v3105 = vunpack.c.h.b16 %v2814
        %v3106 = vunpack.c.l.b16 %v2815
        %v3107 = vunpack.c.h.b16 %v2815
        %v3108 = vunpack.c.l.b16 %v2816
        %v3109 = vunpack.c.h.b16 %v2816
        %v3110 = vunpack.c.l.b16 %v2817
        %v3111 = vunpack.c.h.b16 %v2817
        %v3112 = vunpack.c.l.b16 %v2818
        %v3113 = vunpack.c.h.b16 %v2818
        %v3114 = vunpack.c.l.b16 %v2819
        %v3115 = vunpack.c.h.b16 %v2819
        %v3116 = vunpack.c.l.b16 %v2820
        %v3117 = vunpack.c.h.b16 %v2820
        %v3118 = vunpack.c.l.b16 %v2821
        %v3119 = vunpack.c.h.b16 %v2821
        %v3120 = vunpack.c.l.b16 %v2822
        %v3121 = vunpack.c.h.b16 %v2822
        %v3122 = vunpack.c.l.b16 %v2823
        %v3123 = vunpack.c.h.b16 %v2823
        %v3124 = vunpack.c.l.b16 %v2824
        %v3125 = vunpack.c.h.b16 %v2824
        %v3126 = vunpack.c.l.b16 %v2825
        %v3127 = vunpack.c.h.b16 %v2825
        %v3128 = vunpack.c.l.b16 %v2826
        %v3129 = vunpack.c.h.b16 %v2826
        %v3130 = vunpack.c.l.b16 %v2827
        %v3131 = vunpack.c.h.b16 %v2827
        %v3132 = vunpack.c.l.b16 %v2828
        %v3133 = vunpack.c.h.b16 %v2828
        %v3134 = vunpack.c.l.b16 %v2829
        %v3135 = vunpack.c.h.b16 %v2829
        %v3136 = vunpack.c.l.b16 %v2830
        %v3137 = vunpack.c.h.b16 %v2830
        %v3138 = vunpack.c.l.b16 %v2831
        %v3139 = vunpack.c.h.b16 %v2831
        %v3140 = vunpack.c.l.b16 %v2832
        %v3141 = vunpack.c.h.b16 %v2832
        %v3142 = vunpack.c.l.b16 %v2833
        %v3143 = vunpack.c.h.b16 %v2833
        %v3144 = vunpack.c.l.b16 %v2834
        %v3145 = vunpack.c.h.b16 %v2834
        %v3146 = vunpack.c.l.b16 %v2835
        %v3147 = vunpack.c.h.b16 %v2835
        %v3148 = vunpack.c.l.b16 %v2836
        %v3149 = vunpack.c.h.b16 %v2836
        %v3150 = vunpack.c.l.b16 %v2837
        %v3151 = vunpack.c.h.b16 %v2837
        %v3152 = vunpack.c.l.b16 %v2838
        %v3153 = vunpack.c.h.b16 %v2838
        %v3154 = vunpack.c.l.b16 %v2839
        %v3155 = vunpack.c.h.b16 %v2839
        %v3156 = vunpack.c.l.b16 %v2840
        %v3157 = vunpack.c.h.b16 %v2840
        %v3158 = vunpack.c.l.b16 %v2841
        %v3159 = vunpack.c.h.b16 %v2841
        %v3160 = vunpack.c.l.b16 %v2842
        %v3161 = vunpack.c.h.b16 %v2842
        %v3162 = vunpack.c.l.b16 %v2843
        %v3163 = vunpack.c.h.b16 %v2843
        %v3164 = vunpack.c.l.b16 %v2844
        %v3165 = vunpack.c.h.b16 %v2844
        %v3166 = vunpack.c.l.b16 %v2845
        %v3167 = vunpack.c.h.b16 %v2845
        %v3168 = vunpack.c.l.b16 %v2846
        %v3169 = vunpack.c.h.b16 %v2846
        %v3170 = vunpack.c.l.b16 %v2847
        %v3171 = vunpack.c.h.b16 %v2847
        %v3172 = vunpack.c.l.b16 %v2848
        %v3173 = vunpack.c.h.b16 %v2848
        %v3174 = vunpack.c.l.b16 %v2849
        %v3175 = vunpack.c.h.b16 %v2849
        %v3176 = vunpack.c.l.b16 %v2850
        %v3177 = vunpack.c.h.b16 %v2850
        %v3178 = vunpack.c.l.b16 %v2851
        %v3179 = vunpack.c.h.b16 %v2851
        %v3180 = vunpack.c.l.b16 %v2852
        %v3181 = vunpack.c.h.b16 %v2852
        %v3182 = vunpack.c.l.b16 %v2853
        %v3183 = vunpack.c.h.b16 %v2853
        %v3184 = vpack.c.b16 %v3000, %v2992
        %v3185 = vpack.c.b16 %v3001, %v2993
        %v3186 = vpack.c.b16 %v3002, %v2994
        %v3187 = vpack.c.b16 %v3003, %v2995
        %v3188 = vpack.c.b16 %v3004, %v2996
        %v3189 = vpack.c.b16 %v3005, %v2997
        %v3190 = vpack.c.b16 %v3006, %v2998
        %v3191 = vpack.c.b16 %v3007, %v2999
        %v3192 = vpack.c.b16 %v3016, %v3008
        %v3193 = vpack.c.b16 %v3017, %v3009
        %v3194 = vpack.c.b16 %v3018, %v3010
        %v3195 = vpack.c.b16 %v3019, %v3011
        %v3196 = vpack.c.b16 %v3020, %v3012
        %v3197 = vpack.c.b16 %v3021, %v3013
        %v3198 = vpack.c.b16 %v3022, %v3014
        %v3199 = vpack.c.b16 %v3023, %v3015
        %v3200 = vpack.c.b16 %v3032, %v3024
        %v3201 = vpack.c.b16 %v3033, %v3025
        %v3202 = vpack.c.b16 %v3034, %v3026
        %v3203 = vpack.c.b16 %v3035, %v3027
        %v3204 = vpack.c.b16 %v3036, %v3028
        %v3205 = vpack.c.b16 %v3037, %v3029
        %v3206 = vpack.c.b16 %v3038, %v3030
        %v3207 = vpack.c.b16 %v3039, %v3031
        %v3208 = vpack.c.b16 %v3048, %v3040
        %v3209 = vpack.c.b16 %v3049, %v3041
        %v3210 = vpack.c.b16 %v3050, %v3042
        %v3211 = vpack.c.b16 %v3051, %v3043
        %v3212 = vpack.c.b16 %v3052, %v3044
        %v3213 = vpack.c.b16 %v3053, %v3045
        %v3214 = vpack.c.b16 %v3054, %v3046
        %v3215 = vpack.c.b16 %v3055, %v3047
        %v3216 = vpack.c.b16 %v3064, %v3056
        %v3217 = vpack.c.b16 %v3065, %v3057
        %v3218 = vpack.c.b16 %v3066, %v3058
        %v3219 = vpack.c.b16 %v3067, %v3059
        %v3220 = vpack.c.b16 %v3068, %v3060
        %v3221 = vpack.c.b16 %v3069, %v3061
        %v3222 = vpack.c.b16 %v3070, %v3062
        %v3223 = vpack.c.b16 %v3071, %v3063
        %v3224 = vpack.c.b16 %v3080, %v3072
        %v3225 = vpack.c.b16 %v3081, %v3073
        %v3226 = vpack.c.b16 %v3082, %v3074
        %v3227 = vpack.c.b16 %v3083, %v3075
        %v3228 = vpack.c.b16 %v3084, %v3076
        %v3229 = vpack.c.b16 %v3085, %v3077
        %v3230 = vpack.c.b16 %v3086, %v3078
        %v3231 = vpack.c.b16 %v3087, %v3079
        %v3232 = vpack.c.b16 %v3096, %v3088
        %v3233 = vpack.c.b16 %v3097, %v3089
        %v3234 = vpack.c.b16 %v3098, %v3090
        %v3235 = vpack.c.b16 %v3099, %v3091
        %v3236 = vpack.c.b16 %v3100, %v3092
        %v3237 = vpack.c.b16 %v3101, %v3093
        %v3238 = vpack.c.b16 %v3102, %v3094
        %v3239 = vpack.c.b16 %v3103, %v3095
        %v3240 = vpack.c.b16 %v3112, %v3104
        %v3241 = vpack.c.b16 %v3113, %v3105
        %v3242 = vpack.c.b16 %v3114, %v3106
        %v3243 = vpack.c.b16 %v3115, %v3107
        %v3244 = vpack.c.b16 %v3116, %v3108
        %v3245 = vpack.c.b16 %v3117, %v3109
        %v3246 = vpack.c.b16 %v3118, %v3110
        %v3247 = vpack.c.b16 %v3119, %v3111
        %v3248 = vpack.c.b16 %v3128, %v3120
        %v3249 = vpack.c.b16 %v3129, %v3121
        %v3250 = vpack.c.b16 %v3130, %v3122
        %v3251 = vpack.c.b16 %v3131, %v3123
        %v3252 = vpack.c.b16 %v3132, %v3124
        %v3253 = vpack.c.b16 %v3133, %v3125
        %v3254 = vpack.c.b16 %v3134, %v3126
        %v3255 = vpack.c.b16 %v3135, %v3127
        %v3256 = vpack.c.b16 %v3144, %v3136
        %v3257 = vpack.c.b16 %v3145, %v3137
        %v3258 = vpack.c.b16 %v3146, %v3138
        %v3259 = vpack.c.b16 %v3147, %v3139
        %v3260 = vpack.c.b16 %v3148, %v3140
        %v3261 = vpack.c.b16 %v3149, %v3141
        %v3262 = vpack.c.b16 %v3150, %v3142
        %v3263 = vpack.c.b16 %v3151, %v3143
        %v3264 = vpack.c.b16 %v3160, %v3152
        %v3265 = vpack.c.b16 %v3161, %v3153
        %v3266 = vpack.c.b16 %v3162, %v3154
        %v3267 = vpack.c.b16 %v3163, %v3155
        %v3268 = vpack.c.b16 %v3164, %v3156
        %v3269 = vpack.c.b16 %v3165, %v3157
        %v3270 = vpack.c.b16 %v3166, %v3158
        %v3271 = vpack.c.b16 %v3167, %v3159
        %v3272 = vpack.c.b16 %v3176, %v3168
        %v3273 = vpack.c.b16 %v3177, %v3169
        %v3274 = vpack.c.b16 %v3178, %v3170
        %v3275 = vpack.c.b16 %v3179, %v3171
        %v3276 = vpack.c.b16 %v3180, %v3172
        %v3277 = vpack.c.b16 %v3181, %v3173
        %v3278 = vpack.c.b16 %v3182, %v3174
        %v3279 = vpack.c.b16 %v3183, %v3175
        %v3377 = vsel %vm1006, %v2742, 0
        %v3380 = vsel %vm1006, %v2743, 0
        %v3383 = vsel %vm1006, %v2744, 0
        %v3386 = vsel %vm1006, %v2745, 0
        %v3389 = vsel %vm1006, %v2746, 0
        %v3392 = vsel %vm1006, %v2747, 0
        %v3395 = vsel %vm1006, %v2748, 0
        %v3398 = vsel %vm1006, %v2749, 0
        %v3401 = vsel %vm1006, %v2750, 0
        %v3404 = vsel %vm1006, %v2751, 0
        %v3407 = vsel %vm1006, %v2752, 0
        %v3410 = vsel %vm1006, %v2753, 0
        %v3413 = vsel %vm1006, %v2754, 0
        %v3416 = vsel %vm1006, %v2755, 0
        %v3419 = vsel %vm1006, %v2756, 0
        %v3422 = vsel %vm1006, %v2757, 0
        %3424 = vmatprep.subr.bf16.mxu0 %v3241
        %3425 = vmatpush1.bf16.msra.mxu0 %v3240
        %3426 = vmatprep.subr.bf16.mxu0 %v3233
        %3427 = vmatpush1.bf16.msra.mxu0 %v3232
        %3428 = vmatprep.subr.bf16.mxu0 %v3225
        %3429 = vmatpush1.bf16.msra.mxu0 %v3224
        %3430 = vmatprep.subr.bf16.mxu0 %v3217
        %3431 = vmatpush1.bf16.msra.mxu0 %v3216
        %3432 = vmatprep.subr.bf16.mxu0 %v3209
        %3433 = vmatpush1.bf16.msra.mxu0 %v3208
        %3434 = vmatprep.subr.bf16.mxu0 %v3201
        %3435 = vmatpush1.bf16.msra.mxu0 %v3200
        %3436 = vmatprep.subr.bf16.mxu0 %v3193
        %3437 = vmatpush1.bf16.msra.mxu0 %v3192
        %3438 = vmatprep.subr.bf16.mxu0 %v3185
        %3439 = vmatpush1.bf16.msra.mxu0 %v3184
        %3440 = vmatprep.subr.bf16.mxu0 0
        %3441 = vmatpush2.bf16.msra.mxu0 0
        %3442 = vmatprep.subr.bf16.mxu0 0
        %3443 = vmatpush2.bf16.msra.mxu0 0
        %3444 = vmatprep.subr.bf16.mxu0 0
        %3445 = vmatpush2.bf16.msra.mxu0 0
        %3446 = vmatprep.subr.bf16.mxu0 0
        %3447 = vmatpush2.bf16.msra.mxu0 0
        %3448 = vmatprep.subr.bf16.mxu0 %v3273
        %3449 = vmatpush2.bf16.msra.mxu0 %v3272
        %3450 = vmatprep.subr.bf16.mxu0 %v3265
        %3451 = vmatpush2.bf16.msra.mxu0 %v3264
        %3452 = vmatprep.subr.bf16.mxu0 %v3257
        %3453 = vmatpush2.bf16.msra.mxu0 %v3256
        %3454 = vmatprep.subr.bf16.mxu0 %v3249
        %3455 = vmatpush2.bf16.msra.mxu0 %v3248
        %3456 = vmatprep.mubr.bf16.mxu0 %v3377
        %3457 = vmatmul.mubr.bf16.gmra.mxu0 %v595
        %v3458 = vpop.f32.mrf.mxu0
        %v3459 = vadd.f32 %v2859, %v3458
        %v3460 = vpop.f32.mrf.mxu0
        %v3461 = vadd.f32 %v2863, %v3460
        %v3462 = vpop.f32.mrf.mxu0
        %v3463 = vadd.f32 %v2859, %v3462
        %v3464 = vpop.f32.mrf.mxu0
        %v3465 = vadd.f32 %v2863, %v3464
        %3466 = vmatprep.mubr.bf16.mxu0 %v3380
        %3467 = vmatmul.mubr.bf16.gmra.mxu0 %v597
        %v3468 = vpop.f32.mrf.mxu0
        %v3469 = vadd.f32 %v2859, %v3468
        %v3470 = vpop.f32.mrf.mxu0
        %v3471 = vadd.f32 %v2863, %v3470
        %v3472 = vpop.f32.mrf.mxu0
        %v3473 = vadd.f32 %v2859, %v3472
        %v3474 = vpop.f32.mrf.mxu0
        %v3475 = vadd.f32 %v2863, %v3474
        %3476 = vmatprep.mubr.bf16.mxu0 %v3383
        %3477 = vmatmul.mubr.bf16.gmra.mxu0 %v599
        %v3478 = vpop.f32.mrf.mxu0
        %v3479 = vadd.f32 %v2859, %v3478
        %v3480 = vpop.f32.mrf.mxu0
        %v3481 = vadd.f32 %v2863, %v3480
        %v3482 = vpop.f32.mrf.mxu0
        %v3483 = vadd.f32 %v2859, %v3482
        %v3484 = vpop.f32.mrf.mxu0
        %v3485 = vadd.f32 %v2863, %v3484
        %3486 = vmatprep.mubr.bf16.mxu0 %v3386
        %3487 = vmatmul.mubr.bf16.gmra.mxu0 %v601
        %v3488 = vpop.f32.mrf.mxu0
        %v3489 = vadd.f32 %v2859, %v3488
        %v3490 = vpop.f32.mrf.mxu0
        %v3491 = vadd.f32 %v2863, %v3490
        %v3492 = vpop.f32.mrf.mxu0
        %v3493 = vadd.f32 %v2859, %v3492
        %v3494 = vpop.f32.mrf.mxu0
        %v3495 = vadd.f32 %v2863, %v3494
        %3496 = vmatprep.mubr.bf16.mxu0 %v3389
        %3497 = vmatmul.mubr.bf16.gmra.mxu0 %v603
        %v3498 = vpop.f32.mrf.mxu0
        %v3499 = vadd.f32 %v2859, %v3498
        %v3500 = vpop.f32.mrf.mxu0
        %v3501 = vadd.f32 %v2863, %v3500
        %v3502 = vpop.f32.mrf.mxu0
        %v3503 = vadd.f32 %v2859, %v3502
        %v3504 = vpop.f32.mrf.mxu0
        %v3505 = vadd.f32 %v2863, %v3504
        %3506 = vmatprep.mubr.bf16.mxu0 %v3392
        %3507 = vmatmul.mubr.bf16.gmra.mxu0 %v605
        %v3508 = vpop.f32.mrf.mxu0
        %v3509 = vadd.f32 %v2859, %v3508
        %v3510 = vpop.f32.mrf.mxu0
        %v3511 = vadd.f32 %v2863, %v3510
        %v3512 = vpop.f32.mrf.mxu0
        %v3513 = vadd.f32 %v2859, %v3512
        %v3514 = vpop.f32.mrf.mxu0
        %v3515 = vadd.f32 %v2863, %v3514
        %3516 = vmatprep.mubr.bf16.mxu0 %v3395
        %3517 = vmatmul.mubr.bf16.gmra.mxu0 %v607
        %v3518 = vpop.f32.mrf.mxu0
        %v3519 = vadd.f32 %v2859, %v3518
        %v3520 = vpop.f32.mrf.mxu0
        %v3521 = vadd.f32 %v2863, %v3520
        %v3522 = vpop.f32.mrf.mxu0
        %v3523 = vadd.f32 %v2859, %v3522
        %v3524 = vpop.f32.mrf.mxu0
        %v3525 = vadd.f32 %v2863, %v3524
        %3526 = vmatprep.mubr.bf16.mxu0 %v3398
        %3527 = vmatmul.mubr.bf16.gmra.mxu0 %v609
        %v3528 = vpop.f32.mrf.mxu0
        %v3529 = vadd.f32 %v2859, %v3528
        %v3530 = vpop.f32.mrf.mxu0
        %v3531 = vadd.f32 %v2863, %v3530
        %v3532 = vpop.f32.mrf.mxu0
        %v3533 = vadd.f32 %v2859, %v3532
        %v3534 = vpop.f32.mrf.mxu0
        %v3535 = vadd.f32 %v2863, %v3534
        %3536 = vmatprep.mubr.bf16.mxu0 %v3401
        %3537 = vmatmul.mubr.bf16.gmra.mxu0 %v611
        %v3538 = vpop.f32.mrf.mxu0
        %v3539 = vadd.f32 %v2859, %v3538
        %v3540 = vpop.f32.mrf.mxu0
        %v3541 = vadd.f32 %v2863, %v3540
        %v3542 = vpop.f32.mrf.mxu0
        %v3543 = vadd.f32 %v2859, %v3542
        %v3544 = vpop.f32.mrf.mxu0
        %v3545 = vadd.f32 %v2863, %v3544
        %3546 = vmatprep.mubr.bf16.mxu0 %v3404
        %3547 = vmatmul.mubr.bf16.gmra.mxu0 %v613
        %v3548 = vpop.f32.mrf.mxu0
        %v3549 = vadd.f32 %v2859, %v3548
        %v3550 = vpop.f32.mrf.mxu0
        %v3551 = vadd.f32 %v2863, %v3550
        %v3552 = vpop.f32.mrf.mxu0
        %v3553 = vadd.f32 %v2859, %v3552
        %v3554 = vpop.f32.mrf.mxu0
        %v3555 = vadd.f32 %v2863, %v3554
        %3556 = vmatprep.mubr.bf16.mxu0 %v3407
        %3557 = vmatmul.mubr.bf16.gmra.mxu0 %v615
        %v3558 = vpop.f32.mrf.mxu0
        %v3559 = vadd.f32 %v2859, %v3558
        %v3560 = vpop.f32.mrf.mxu0
        %v3561 = vadd.f32 %v2863, %v3560
        %v3562 = vpop.f32.mrf.mxu0
        %v3563 = vadd.f32 %v2859, %v3562
        %v3564 = vpop.f32.mrf.mxu0
        %v3565 = vadd.f32 %v2863, %v3564
        %3566 = vmatprep.mubr.bf16.mxu0 %v3410
        %3567 = vmatmul.mubr.bf16.gmra.mxu0 %v617
        %v3568 = vpop.f32.mrf.mxu0
        %v3569 = vadd.f32 %v2859, %v3568
        %v3570 = vpop.f32.mrf.mxu0
        %v3571 = vadd.f32 %v2863, %v3570
        %v3572 = vpop.f32.mrf.mxu0
        %v3573 = vadd.f32 %v2859, %v3572
        %v3574 = vpop.f32.mrf.mxu0
        %v3575 = vadd.f32 %v2863, %v3574
        %3576 = vmatprep.mubr.bf16.mxu0 %v3413
        %3577 = vmatmul.mubr.bf16.gmra.mxu0 %v619
        %v3578 = vpop.f32.mrf.mxu0
        %v3579 = vadd.f32 %v2859, %v3578
        %v3580 = vpop.f32.mrf.mxu0
        %v3581 = vadd.f32 %v2863, %v3580
        %v3582 = vpop.f32.mrf.mxu0
        %v3583 = vadd.f32 %v2859, %v3582
        %v3584 = vpop.f32.mrf.mxu0
        %v3585 = vadd.f32 %v2863, %v3584
        %3586 = vmatprep.mubr.bf16.mxu0 %v3416
        %3587 = vmatmul.mubr.bf16.gmra.mxu0 %v621
        %v3588 = vpop.f32.mrf.mxu0
        %v3589 = vadd.f32 %v2859, %v3588
        %v3590 = vpop.f32.mrf.mxu0
        %v3591 = vadd.f32 %v2863, %v3590
        %v3592 = vpop.f32.mrf.mxu0
        %v3593 = vadd.f32 %v2859, %v3592
        %v3594 = vpop.f32.mrf.mxu0
        %v3595 = vadd.f32 %v2863, %v3594
        %3596 = vmatprep.mubr.bf16.mxu0 %v3419
        %3597 = vmatmul.mubr.bf16.gmra.mxu0 %v623
        %v3598 = vpop.f32.mrf.mxu0
        %v3599 = vadd.f32 %v2859, %v3598
        %v3600 = vpop.f32.mrf.mxu0
        %v3601 = vadd.f32 %v2863, %v3600
        %v3602 = vpop.f32.mrf.mxu0
        %v3603 = vadd.f32 %v2859, %v3602
        %v3604 = vpop.f32.mrf.mxu0
        %v3605 = vadd.f32 %v2863, %v3604
        %3606 = vmatprep.mubr.bf16.mxu0 %v3422
        %3607 = vmatmul.mubr.bf16.gmra.mxu0 %v625
        %v3608 = vpop.f32.mrf.mxu0
        %v3609 = vadd.f32 %v2859, %v3608
        %v3610 = vpop.f32.mrf.mxu0
        %v3611 = vadd.f32 %v2863, %v3610
        %v3612 = vpop.f32.mrf.mxu0
        %v3613 = vadd.f32 %v2859, %v3612
        %v3614 = vpop.f32.mrf.mxu0
        %v3615 = vadd.f32 %v2863, %v3614
        %3616 = vdwg.mxu0
        %3617 = vmatprep.subr.bf16.mxu0 %v3243
        %3618 = vmatpush1.bf16.msra.mxu0 %v3242
        %3619 = vmatprep.subr.bf16.mxu0 %v3235
        %3620 = vmatpush1.bf16.msra.mxu0 %v3234
        %3621 = vmatprep.subr.bf16.mxu0 %v3227
        %3622 = vmatpush1.bf16.msra.mxu0 %v3226
        %3623 = vmatprep.subr.bf16.mxu0 %v3219
        %3624 = vmatpush1.bf16.msra.mxu0 %v3218
        %3625 = vmatprep.subr.bf16.mxu0 %v3211
        %3626 = vmatpush1.bf16.msra.mxu0 %v3210
        %3627 = vmatprep.subr.bf16.mxu0 %v3203
        %3628 = vmatpush1.bf16.msra.mxu0 %v3202
        %3629 = vmatprep.subr.bf16.mxu0 %v3195
        %3630 = vmatpush1.bf16.msra.mxu0 %v3194
        %3631 = vmatprep.subr.bf16.mxu0 %v3187
        %3632 = vmatpush1.bf16.msra.mxu0 %v3186
        %3633 = vmatprep.subr.bf16.mxu0 0
        %3634 = vmatpush2.bf16.msra.mxu0 0
        %3635 = vmatprep.subr.bf16.mxu0 0
        %3636 = vmatpush2.bf16.msra.mxu0 0
        %3637 = vmatprep.subr.bf16.mxu0 0
        %3638 = vmatpush2.bf16.msra.mxu0 0
        %3639 = vmatprep.subr.bf16.mxu0 0
        %3640 = vmatpush2.bf16.msra.mxu0 0
        %3641 = vmatprep.subr.bf16.mxu0 %v3275
        %3642 = vmatpush2.bf16.msra.mxu0 %v3274
        %3643 = vmatprep.subr.bf16.mxu0 %v3267
        %3644 = vmatpush2.bf16.msra.mxu0 %v3266
        %3645 = vmatprep.subr.bf16.mxu0 %v3259
        %3646 = vmatpush2.bf16.msra.mxu0 %v3258
        %3647 = vmatprep.subr.bf16.mxu0 %v3251
        %3648 = vmatpush2.bf16.msra.mxu0 %v3250
        %3649 = vmatprep.mubr.bf16.mxu0 %v3377
        %3650 = vmatmul.mubr.bf16.gmra.mxu0 %v595
        %v3651 = vpop.f32.mrf.mxu0
        %v3652 = vadd.f32 %v2867, %v3651
        %v3653 = vpop.f32.mrf.mxu0
        %v3654 = vadd.f32 %v2871, %v3653
        %v3655 = vpop.f32.mrf.mxu0
        %v3656 = vadd.f32 %v2867, %v3655
        %v3657 = vpop.f32.mrf.mxu0
        %v3658 = vadd.f32 %v2871, %v3657
        %3659 = vmatprep.mubr.bf16.mxu0 %v3380
        %3660 = vmatmul.mubr.bf16.gmra.mxu0 %v597
        %v3661 = vpop.f32.mrf.mxu0
        %v3662 = vadd.f32 %v2867, %v3661
        %v3663 = vpop.f32.mrf.mxu0
        %v3664 = vadd.f32 %v2871, %v3663
        %v3665 = vpop.f32.mrf.mxu0
        %v3666 = vadd.f32 %v2867, %v3665
        %v3667 = vpop.f32.mrf.mxu0
        %v3668 = vadd.f32 %v2871, %v3667
        %3669 = vmatprep.mubr.bf16.mxu0 %v3383
        %3670 = vmatmul.mubr.bf16.gmra.mxu0 %v599
        %v3671 = vpop.f32.mrf.mxu0
        %v3672 = vadd.f32 %v2867, %v3671
        %v3673 = vpop.f32.mrf.mxu0
        %v3674 = vadd.f32 %v2871, %v3673
        %v3675 = vpop.f32.mrf.mxu0
        %v3676 = vadd.f32 %v2867, %v3675
        %v3677 = vpop.f32.mrf.mxu0
        %v3678 = vadd.f32 %v2871, %v3677
        %3679 = vmatprep.mubr.bf16.mxu0 %v3386
        %3680 = vmatmul.mubr.bf16.gmra.mxu0 %v601
        %v3681 = vpop.f32.mrf.mxu0
        %v3682 = vadd.f32 %v2867, %v3681
        %v3683 = vpop.f32.mrf.mxu0
        %v3684 = vadd.f32 %v2871, %v3683
        %v3685 = vpop.f32.mrf.mxu0
        %v3686 = vadd.f32 %v2867, %v3685
        %v3687 = vpop.f32.mrf.mxu0
        %v3688 = vadd.f32 %v2871, %v3687
        %3689 = vmatprep.mubr.bf16.mxu0 %v3389
        %3690 = vmatmul.mubr.bf16.gmra.mxu0 %v603
        %v3691 = vpop.f32.mrf.mxu0
        %v3692 = vadd.f32 %v2867, %v3691
        %v3693 = vpop.f32.mrf.mxu0
        %v3694 = vadd.f32 %v2871, %v3693
        %v3695 = vpop.f32.mrf.mxu0
        %v3696 = vadd.f32 %v2867, %v3695
        %v3697 = vpop.f32.mrf.mxu0
        %v3698 = vadd.f32 %v2871, %v3697
        %3699 = vmatprep.mubr.bf16.mxu0 %v3392
        %3700 = vmatmul.mubr.bf16.gmra.mxu0 %v605
        %v3701 = vpop.f32.mrf.mxu0
        %v3702 = vadd.f32 %v2867, %v3701
        %v3703 = vpop.f32.mrf.mxu0
        %v3704 = vadd.f32 %v2871, %v3703
        %v3705 = vpop.f32.mrf.mxu0
        %v3706 = vadd.f32 %v2867, %v3705
        %v3707 = vpop.f32.mrf.mxu0
        %v3708 = vadd.f32 %v2871, %v3707
        %3709 = vmatprep.mubr.bf16.mxu0 %v3395
        %3710 = vmatmul.mubr.bf16.gmra.mxu0 %v607
        %v3711 = vpop.f32.mrf.mxu0
        %v3712 = vadd.f32 %v2867, %v3711
        %v3713 = vpop.f32.mrf.mxu0
        %v3714 = vadd.f32 %v2871, %v3713
        %v3715 = vpop.f32.mrf.mxu0
        %v3716 = vadd.f32 %v2867, %v3715
        %v3717 = vpop.f32.mrf.mxu0
        %v3718 = vadd.f32 %v2871, %v3717
        %3719 = vmatprep.mubr.bf16.mxu0 %v3398
        %3720 = vmatmul.mubr.bf16.gmra.mxu0 %v609
        %v3721 = vpop.f32.mrf.mxu0
        %v3722 = vadd.f32 %v2867, %v3721
        %v3723 = vpop.f32.mrf.mxu0
        %v3724 = vadd.f32 %v2871, %v3723
        %v3725 = vpop.f32.mrf.mxu0
        %v3726 = vadd.f32 %v2867, %v3725
        %v3727 = vpop.f32.mrf.mxu0
        %v3728 = vadd.f32 %v2871, %v3727
        %3729 = vmatprep.mubr.bf16.mxu0 %v3401
        %3730 = vmatmul.mubr.bf16.gmra.mxu0 %v611
        %v3731 = vpop.f32.mrf.mxu0
        %v3732 = vadd.f32 %v2867, %v3731
        %v3733 = vpop.f32.mrf.mxu0
        %v3734 = vadd.f32 %v2871, %v3733
        %v3735 = vpop.f32.mrf.mxu0
        %v3736 = vadd.f32 %v2867, %v3735
        %v3737 = vpop.f32.mrf.mxu0
        %v3738 = vadd.f32 %v2871, %v3737
        %3739 = vmatprep.mubr.bf16.mxu0 %v3404
        %3740 = vmatmul.mubr.bf16.gmra.mxu0 %v613
        %v3741 = vpop.f32.mrf.mxu0
        %v3742 = vadd.f32 %v2867, %v3741
        %v3743 = vpop.f32.mrf.mxu0
        %v3744 = vadd.f32 %v2871, %v3743
        %v3745 = vpop.f32.mrf.mxu0
        %v3746 = vadd.f32 %v2867, %v3745
        %v3747 = vpop.f32.mrf.mxu0
        %v3748 = vadd.f32 %v2871, %v3747
        %3749 = vmatprep.mubr.bf16.mxu0 %v3407
        %3750 = vmatmul.mubr.bf16.gmra.mxu0 %v615
        %v3751 = vpop.f32.mrf.mxu0
        %v3752 = vadd.f32 %v2867, %v3751
        %v3753 = vpop.f32.mrf.mxu0
        %v3754 = vadd.f32 %v2871, %v3753
        %v3755 = vpop.f32.mrf.mxu0
        %v3756 = vadd.f32 %v2867, %v3755
        %v3757 = vpop.f32.mrf.mxu0
        %v3758 = vadd.f32 %v2871, %v3757
        %3759 = vmatprep.mubr.bf16.mxu0 %v3410
        %3760 = vmatmul.mubr.bf16.gmra.mxu0 %v617
        %v3761 = vpop.f32.mrf.mxu0
        %v3762 = vadd.f32 %v2867, %v3761
        %v3763 = vpop.f32.mrf.mxu0
        %v3764 = vadd.f32 %v2871, %v3763
        %v3765 = vpop.f32.mrf.mxu0
        %v3766 = vadd.f32 %v2867, %v3765
        %v3767 = vpop.f32.mrf.mxu0
        %v3768 = vadd.f32 %v2871, %v3767
        %3769 = vmatprep.mubr.bf16.mxu0 %v3413
        %3770 = vmatmul.mubr.bf16.gmra.mxu0 %v619
        %v3771 = vpop.f32.mrf.mxu0
        %v3772 = vadd.f32 %v2867, %v3771
        %v3773 = vpop.f32.mrf.mxu0
        %v3774 = vadd.f32 %v2871, %v3773
        %v3775 = vpop.f32.mrf.mxu0
        %v3776 = vadd.f32 %v2867, %v3775
        %v3777 = vpop.f32.mrf.mxu0
        %v3778 = vadd.f32 %v2871, %v3777
        %3779 = vmatprep.mubr.bf16.mxu0 %v3416
        %3780 = vmatmul.mubr.bf16.gmra.mxu0 %v621
        %v3781 = vpop.f32.mrf.mxu0
        %v3782 = vadd.f32 %v2867, %v3781
        %v3783 = vpop.f32.mrf.mxu0
        %v3784 = vadd.f32 %v2871, %v3783
        %v3785 = vpop.f32.mrf.mxu0
        %v3786 = vadd.f32 %v2867, %v3785
        %v3787 = vpop.f32.mrf.mxu0
        %v3788 = vadd.f32 %v2871, %v3787
        %3789 = vmatprep.mubr.bf16.mxu0 %v3419
        %3790 = vmatmul.mubr.bf16.gmra.mxu0 %v623
        %v3791 = vpop.f32.mrf.mxu0
        %v3792 = vadd.f32 %v2867, %v3791
        %v3793 = vpop.f32.mrf.mxu0
        %v3794 = vadd.f32 %v2871, %v3793
        %v3795 = vpop.f32.mrf.mxu0
        %v3796 = vadd.f32 %v2867, %v3795
        %v3797 = vpop.f32.mrf.mxu0
        %v3798 = vadd.f32 %v2871, %v3797
        %3799 = vmatprep.mubr.bf16.mxu0 %v3422
        %3800 = vmatmul.mubr.bf16.gmra.mxu0 %v625
        %v3801 = vpop.f32.mrf.mxu0
        %v3802 = vadd.f32 %v2867, %v3801
        %v3803 = vpop.f32.mrf.mxu0
        %v3804 = vadd.f32 %v2871, %v3803
        %v3805 = vpop.f32.mrf.mxu0
        %v3806 = vadd.f32 %v2867, %v3805
        %v3807 = vpop.f32.mrf.mxu0
        %v3808 = vadd.f32 %v2871, %v3807
        %3809 = vdwg.mxu0
        %3810 = vmatprep.subr.bf16.mxu0 %v3245
        %3811 = vmatpush1.bf16.msra.mxu0 %v3244
        %3812 = vmatprep.subr.bf16.mxu0 %v3237
        %3813 = vmatpush1.bf16.msra.mxu0 %v3236
        %3814 = vmatprep.subr.bf16.mxu0 %v3229
        %3815 = vmatpush1.bf16.msra.mxu0 %v3228
        %3816 = vmatprep.subr.bf16.mxu0 %v3221
        %3817 = vmatpush1.bf16.msra.mxu0 %v3220
        %3818 = vmatprep.subr.bf16.mxu0 %v3213
        %3819 = vmatpush1.bf16.msra.mxu0 %v3212
        %3820 = vmatprep.subr.bf16.mxu0 %v3205
        %3821 = vmatpush1.bf16.msra.mxu0 %v3204
        %3822 = vmatprep.subr.bf16.mxu0 %v3197
        %3823 = vmatpush1.bf16.msra.mxu0 %v3196
        %3824 = vmatprep.subr.bf16.mxu0 %v3189
        %3825 = vmatpush1.bf16.msra.mxu0 %v3188
        %3826 = vmatprep.subr.bf16.mxu0 0
        %3827 = vmatpush2.bf16.msra.mxu0 0
        %3828 = vmatprep.subr.bf16.mxu0 0
        %3829 = vmatpush2.bf16.msra.mxu0 0
        %3830 = vmatprep.subr.bf16.mxu0 0
        %3831 = vmatpush2.bf16.msra.mxu0 0
        %3832 = vmatprep.subr.bf16.mxu0 0
        %3833 = vmatpush2.bf16.msra.mxu0 0
        %3834 = vmatprep.subr.bf16.mxu0 %v3277
        %3835 = vmatpush2.bf16.msra.mxu0 %v3276
        %3836 = vmatprep.subr.bf16.mxu0 %v3269
        %3837 = vmatpush2.bf16.msra.mxu0 %v3268
        %3838 = vmatprep.subr.bf16.mxu0 %v3261
        %3839 = vmatpush2.bf16.msra.mxu0 %v3260
        %3840 = vmatprep.subr.bf16.mxu0 %v3253
        %3841 = vmatpush2.bf16.msra.mxu0 %v3252
        %3842 = vmatprep.mubr.bf16.mxu0 %v3377
        %3843 = vmatmul.mubr.bf16.gmra.mxu0 %v595
        %v3844 = vpop.f32.mrf.mxu0
        %v3845 = vadd.f32 %v2875, %v3844
        %v3846 = vpop.f32.mrf.mxu0
        %v3847 = vadd.f32 %v2879, %v3846
        %v3848 = vpop.f32.mrf.mxu0
        %v3849 = vadd.f32 %v2875, %v3848
        %v3850 = vpop.f32.mrf.mxu0
        %v3851 = vadd.f32 %v2879, %v3850
        %3852 = vmatprep.mubr.bf16.mxu0 %v3380
        %3853 = vmatmul.mubr.bf16.gmra.mxu0 %v597
        %v3854 = vpop.f32.mrf.mxu0
        %v3855 = vadd.f32 %v2875, %v3854
        %v3856 = vpop.f32.mrf.mxu0
        %v3857 = vadd.f32 %v2879, %v3856
        %v3858 = vpop.f32.mrf.mxu0
        %v3859 = vadd.f32 %v2875, %v3858
        %v3860 = vpop.f32.mrf.mxu0
        %v3861 = vadd.f32 %v2879, %v3860
        %3862 = vmatprep.mubr.bf16.mxu0 %v3383
        %3863 = vmatmul.mubr.bf16.gmra.mxu0 %v599
        %v3864 = vpop.f32.mrf.mxu0
        %v3865 = vadd.f32 %v2875, %v3864
        %v3866 = vpop.f32.mrf.mxu0
        %v3867 = vadd.f32 %v2879, %v3866
        %v3868 = vpop.f32.mrf.mxu0
        %v3869 = vadd.f32 %v2875, %v3868
        %v3870 = vpop.f32.mrf.mxu0
        %v3871 = vadd.f32 %v2879, %v3870
        %3872 = vmatprep.mubr.bf16.mxu0 %v3386
        %3873 = vmatmul.mubr.bf16.gmra.mxu0 %v601
        %v3874 = vpop.f32.mrf.mxu0
        %v3875 = vadd.f32 %v2875, %v3874
        %v3876 = vpop.f32.mrf.mxu0
        %v3877 = vadd.f32 %v2879, %v3876
        %v3878 = vpop.f32.mrf.mxu0
        %v3879 = vadd.f32 %v2875, %v3878
        %v3880 = vpop.f32.mrf.mxu0
        %v3881 = vadd.f32 %v2879, %v3880
        %3882 = vmatprep.mubr.bf16.mxu0 %v3389
        %3883 = vmatmul.mubr.bf16.gmra.mxu0 %v603
        %v3884 = vpop.f32.mrf.mxu0
        %v3885 = vadd.f32 %v2875, %v3884
        %v3886 = vpop.f32.mrf.mxu0
        %v3887 = vadd.f32 %v2879, %v3886
        %v3888 = vpop.f32.mrf.mxu0
        %v3889 = vadd.f32 %v2875, %v3888
        %v3890 = vpop.f32.mrf.mxu0
        %v3891 = vadd.f32 %v2879, %v3890
        %3892 = vmatprep.mubr.bf16.mxu0 %v3392
        %3893 = vmatmul.mubr.bf16.gmra.mxu0 %v605
        %v3894 = vpop.f32.mrf.mxu0
        %v3895 = vadd.f32 %v2875, %v3894
        %v3896 = vpop.f32.mrf.mxu0
        %v3897 = vadd.f32 %v2879, %v3896
        %v3898 = vpop.f32.mrf.mxu0
        %v3899 = vadd.f32 %v2875, %v3898
        %v3900 = vpop.f32.mrf.mxu0
        %v3901 = vadd.f32 %v2879, %v3900
        %3902 = vmatprep.mubr.bf16.mxu0 %v3395
        %3903 = vmatmul.mubr.bf16.gmra.mxu0 %v607
        %v3904 = vpop.f32.mrf.mxu0
        %v3905 = vadd.f32 %v2875, %v3904
        %v3906 = vpop.f32.mrf.mxu0
        %v3907 = vadd.f32 %v2879, %v3906
        %v3908 = vpop.f32.mrf.mxu0
        %v3909 = vadd.f32 %v2875, %v3908
        %v3910 = vpop.f32.mrf.mxu0
        %v3911 = vadd.f32 %v2879, %v3910
        %3912 = vmatprep.mubr.bf16.mxu0 %v3398
        %3913 = vmatmul.mubr.bf16.gmra.mxu0 %v609
        %v3914 = vpop.f32.mrf.mxu0
        %v3915 = vadd.f32 %v2875, %v3914
        %v3916 = vpop.f32.mrf.mxu0
        %v3917 = vadd.f32 %v2879, %v3916
        %v3918 = vpop.f32.mrf.mxu0
        %v3919 = vadd.f32 %v2875, %v3918
        %v3920 = vpop.f32.mrf.mxu0
        %v3921 = vadd.f32 %v2879, %v3920
        %3922 = vmatprep.mubr.bf16.mxu0 %v3401
        %3923 = vmatmul.mubr.bf16.gmra.mxu0 %v611
        %v3924 = vpop.f32.mrf.mxu0
        %v3925 = vadd.f32 %v2875, %v3924
        %v3926 = vpop.f32.mrf.mxu0
        %v3927 = vadd.f32 %v2879, %v3926
        %v3928 = vpop.f32.mrf.mxu0
        %v3929 = vadd.f32 %v2875, %v3928
        %v3930 = vpop.f32.mrf.mxu0
        %v3931 = vadd.f32 %v2879, %v3930
        %3932 = vmatprep.mubr.bf16.mxu0 %v3404
        %3933 = vmatmul.mubr.bf16.gmra.mxu0 %v613
        %v3934 = vpop.f32.mrf.mxu0
        %v3935 = vadd.f32 %v2875, %v3934
        %v3936 = vpop.f32.mrf.mxu0
        %v3937 = vadd.f32 %v2879, %v3936
        %v3938 = vpop.f32.mrf.mxu0
        %v3939 = vadd.f32 %v2875, %v3938
        %v3940 = vpop.f32.mrf.mxu0
        %v3941 = vadd.f32 %v2879, %v3940
        %3942 = vmatprep.mubr.bf16.mxu0 %v3407
        %3943 = vmatmul.mubr.bf16.gmra.mxu0 %v615
        %v3944 = vpop.f32.mrf.mxu0
        %v3945 = vadd.f32 %v2875, %v3944
        %v3946 = vpop.f32.mrf.mxu0
        %v3947 = vadd.f32 %v2879, %v3946
        %v3948 = vpop.f32.mrf.mxu0
        %v3949 = vadd.f32 %v2875, %v3948
        %v3950 = vpop.f32.mrf.mxu0
        %v3951 = vadd.f32 %v2879, %v3950
        %3952 = vmatprep.mubr.bf16.mxu0 %v3410
        %3953 = vmatmul.mubr.bf16.gmra.mxu0 %v617
        %v3954 = vpop.f32.mrf.mxu0
        %v3955 = vadd.f32 %v2875, %v3954
        %v3956 = vpop.f32.mrf.mxu0
        %v3957 = vadd.f32 %v2879, %v3956
        %v3958 = vpop.f32.mrf.mxu0
        %v3959 = vadd.f32 %v2875, %v3958
        %v3960 = vpop.f32.mrf.mxu0
        %v3961 = vadd.f32 %v2879, %v3960
        %3962 = vmatprep.mubr.bf16.mxu0 %v3413
        %3963 = vmatmul.mubr.bf16.gmra.mxu0 %v619
        %v3964 = vpop.f32.mrf.mxu0
        %v3965 = vadd.f32 %v2875, %v3964
        %v3966 = vpop.f32.mrf.mxu0
        %v3967 = vadd.f32 %v2879, %v3966
        %v3968 = vpop.f32.mrf.mxu0
        %v3969 = vadd.f32 %v2875, %v3968
        %v3970 = vpop.f32.mrf.mxu0
        %v3971 = vadd.f32 %v2879, %v3970
        %3972 = vmatprep.mubr.bf16.mxu0 %v3416
        %3973 = vmatmul.mubr.bf16.gmra.mxu0 %v621
        %v3974 = vpop.f32.mrf.mxu0
        %v3975 = vadd.f32 %v2875, %v3974
        %v3976 = vpop.f32.mrf.mxu0
        %v3977 = vadd.f32 %v2879, %v3976
        %v3978 = vpop.f32.mrf.mxu0
        %v3979 = vadd.f32 %v2875, %v3978
        %v3980 = vpop.f32.mrf.mxu0
        %v3981 = vadd.f32 %v2879, %v3980
        %3982 = vmatprep.mubr.bf16.mxu0 %v3419
        %3983 = vmatmul.mubr.bf16.gmra.mxu0 %v623
        %v3984 = vpop.f32.mrf.mxu0
        %v3985 = vadd.f32 %v2875, %v3984
        %v3986 = vpop.f32.mrf.mxu0
        %v3987 = vadd.f32 %v2879, %v3986
        %v3988 = vpop.f32.mrf.mxu0
        %v3989 = vadd.f32 %v2875, %v3988
        %v3990 = vpop.f32.mrf.mxu0
        %v3991 = vadd.f32 %v2879, %v3990
        %3992 = vmatprep.mubr.bf16.mxu0 %v3422
        %3993 = vmatmul.mubr.bf16.gmra.mxu0 %v625
        %v3994 = vpop.f32.mrf.mxu0
        %v3995 = vadd.f32 %v2875, %v3994
        %v3996 = vpop.f32.mrf.mxu0
        %v3997 = vadd.f32 %v2879, %v3996
        %v3998 = vpop.f32.mrf.mxu0
        %v3999 = vadd.f32 %v2875, %v3998
        %v4000 = vpop.f32.mrf.mxu0
        %v4001 = vadd.f32 %v2879, %v4000
        %4002 = vdwg.mxu0
        %4003 = vmatprep.subr.bf16.mxu0 %v3247
        %4004 = vmatpush1.bf16.msra.mxu0 %v3246
        %4005 = vmatprep.subr.bf16.mxu0 %v3239
        %4006 = vmatpush1.bf16.msra.mxu0 %v3238
        %4007 = vmatprep.subr.bf16.mxu0 %v3231
        %4008 = vmatpush1.bf16.msra.mxu0 %v3230
        %4009 = vmatprep.subr.bf16.mxu0 %v3223
        %4010 = vmatpush1.bf16.msra.mxu0 %v3222
        %4011 = vmatprep.subr.bf16.mxu0 %v3215
        %4012 = vmatpush1.bf16.msra.mxu0 %v3214
        %4013 = vmatprep.subr.bf16.mxu0 %v3207
        %4014 = vmatpush1.bf16.msra.mxu0 %v3206
        %4015 = vmatprep.subr.bf16.mxu0 %v3199
        %4016 = vmatpush1.bf16.msra.mxu0 %v3198
        %4017 = vmatprep.subr.bf16.mxu0 %v3191
        %4018 = vmatpush1.bf16.msra.mxu0 %v3190
        %4019 = vmatprep.subr.bf16.mxu0 0
        %4020 = vmatpush2.bf16.msra.mxu0 0
        %4021 = vmatprep.subr.bf16.mxu0 0
        %4022 = vmatpush2.bf16.msra.mxu0 0
        %4023 = vmatprep.subr.bf16.mxu0 0
        %4024 = vmatpush2.bf16.msra.mxu0 0
        %4025 = vmatprep.subr.bf16.mxu0 0
        %4026 = vmatpush2.bf16.msra.mxu0 0
        %4027 = vmatprep.subr.bf16.mxu0 %v3279
        %4028 = vmatpush2.bf16.msra.mxu0 %v3278
        %4029 = vmatprep.subr.bf16.mxu0 %v3271
        %4030 = vmatpush2.bf16.msra.mxu0 %v3270
        %4031 = vmatprep.subr.bf16.mxu0 %v3263
        %4032 = vmatpush2.bf16.msra.mxu0 %v3262
        %4033 = vmatprep.subr.bf16.mxu0 %v3255
        %4034 = vmatpush2.bf16.msra.mxu0 %v3254
        %4035 = vmatprep.mubr.bf16.mxu0 %v3377
        %4036 = vmatmul.mubr.bf16.gmra.mxu0 %v595
        %v4037 = vpop.f32.mrf.mxu0
        %v4038 = vadd.f32 %v2883, %v4037
        %v4039 = vpop.f32.mrf.mxu0
        %v4040 = vadd.f32 %v2887, %v4039
        %v4041 = vpop.f32.mrf.mxu0
        %v4042 = vadd.f32 %v2883, %v4041
        %v4043 = vpop.f32.mrf.mxu0
        %v4044 = vadd.f32 %v2887, %v4043
        %4045 = vmatprep.mubr.bf16.mxu0 %v3380
        %4046 = vmatmul.mubr.bf16.gmra.mxu0 %v597
        %v4047 = vpop.f32.mrf.mxu0
        %v4048 = vadd.f32 %v2883, %v4047
        %v4049 = vpop.f32.mrf.mxu0
        %v4050 = vadd.f32 %v2887, %v4049
        %v4051 = vpop.f32.mrf.mxu0
        %v4052 = vadd.f32 %v2883, %v4051
        %v4053 = vpop.f32.mrf.mxu0
        %v4054 = vadd.f32 %v2887, %v4053
        %4055 = vmatprep.mubr.bf16.mxu0 %v3383
        %4056 = vmatmul.mubr.bf16.gmra.mxu0 %v599
        %v4057 = vpop.f32.mrf.mxu0
        %v4058 = vadd.f32 %v2883, %v4057
        %v4059 = vpop.f32.mrf.mxu0
        %v4060 = vadd.f32 %v2887, %v4059
        %v4061 = vpop.f32.mrf.mxu0
        %v4062 = vadd.f32 %v2883, %v4061
        %v4063 = vpop.f32.mrf.mxu0
        %v4064 = vadd.f32 %v2887, %v4063
        %4065 = vmatprep.mubr.bf16.mxu0 %v3386
        %4066 = vmatmul.mubr.bf16.gmra.mxu0 %v601
        %v4067 = vpop.f32.mrf.mxu0
        %v4068 = vadd.f32 %v2883, %v4067
        %v4069 = vpop.f32.mrf.mxu0
        %v4070 = vadd.f32 %v2887, %v4069
        %v4071 = vpop.f32.mrf.mxu0
        %v4072 = vadd.f32 %v2883, %v4071
        %v4073 = vpop.f32.mrf.mxu0
        %v4074 = vadd.f32 %v2887, %v4073
        %4075 = vmatprep.mubr.bf16.mxu0 %v3389
        %4076 = vmatmul.mubr.bf16.gmra.mxu0 %v603
        %v4077 = vpop.f32.mrf.mxu0
        %v4078 = vadd.f32 %v2883, %v4077
        %v4079 = vpop.f32.mrf.mxu0
        %v4080 = vadd.f32 %v2887, %v4079
        %v4081 = vpop.f32.mrf.mxu0
        %v4082 = vadd.f32 %v2883, %v4081
        %v4083 = vpop.f32.mrf.mxu0
        %v4084 = vadd.f32 %v2887, %v4083
        %4085 = vmatprep.mubr.bf16.mxu0 %v3392
        %4086 = vmatmul.mubr.bf16.gmra.mxu0 %v605
        %v4087 = vpop.f32.mrf.mxu0
        %v4088 = vadd.f32 %v2883, %v4087
        %v4089 = vpop.f32.mrf.mxu0
        %v4090 = vadd.f32 %v2887, %v4089
        %v4091 = vpop.f32.mrf.mxu0
        %v4092 = vadd.f32 %v2883, %v4091
        %v4093 = vpop.f32.mrf.mxu0
        %v4094 = vadd.f32 %v2887, %v4093
        %4095 = vmatprep.mubr.bf16.mxu0 %v3395
        %4096 = vmatmul.mubr.bf16.gmra.mxu0 %v607
        %v4097 = vpop.f32.mrf.mxu0
        %v4098 = vadd.f32 %v2883, %v4097
        %v4099 = vpop.f32.mrf.mxu0
        %v4100 = vadd.f32 %v2887, %v4099
        %v4101 = vpop.f32.mrf.mxu0
        %v4102 = vadd.f32 %v2883, %v4101
        %v4103 = vpop.f32.mrf.mxu0
        %v4104 = vadd.f32 %v2887, %v4103
        %4105 = vmatprep.mubr.bf16.mxu0 %v3398
        %4106 = vmatmul.mubr.bf16.gmra.mxu0 %v609
        %v4107 = vpop.f32.mrf.mxu0
        %v4108 = vadd.f32 %v2883, %v4107
        %v4109 = vpop.f32.mrf.mxu0
        %v4110 = vadd.f32 %v2887, %v4109
        %v4111 = vpop.f32.mrf.mxu0
        %v4112 = vadd.f32 %v2883, %v4111
        %v4113 = vpop.f32.mrf.mxu0
        %v4114 = vadd.f32 %v2887, %v4113
        %4115 = vmatprep.mubr.bf16.mxu0 %v3401
        %4116 = vmatmul.mubr.bf16.gmra.mxu0 %v611
        %v4117 = vpop.f32.mrf.mxu0
        %v4118 = vadd.f32 %v2883, %v4117
        %v4119 = vpop.f32.mrf.mxu0
        %v4120 = vadd.f32 %v2887, %v4119
        %v4121 = vpop.f32.mrf.mxu0
        %v4122 = vadd.f32 %v2883, %v4121
        %v4123 = vpop.f32.mrf.mxu0
        %v4124 = vadd.f32 %v2887, %v4123
        %4125 = vmatprep.mubr.bf16.mxu0 %v3404
        %4126 = vmatmul.mubr.bf16.gmra.mxu0 %v613
        %v4127 = vpop.f32.mrf.mxu0
        %v4128 = vadd.f32 %v2883, %v4127
        %v4129 = vpop.f32.mrf.mxu0
        %v4130 = vadd.f32 %v2887, %v4129
        %v4131 = vpop.f32.mrf.mxu0
        %v4132 = vadd.f32 %v2883, %v4131
        %v4133 = vpop.f32.mrf.mxu0
        %v4134 = vadd.f32 %v2887, %v4133
        %4135 = vmatprep.mubr.bf16.mxu0 %v3407
        %4136 = vmatmul.mubr.bf16.gmra.mxu0 %v615
        %v4137 = vpop.f32.mrf.mxu0
        %v4138 = vadd.f32 %v2883, %v4137
        %v4139 = vpop.f32.mrf.mxu0
        %v4140 = vadd.f32 %v2887, %v4139
        %v4141 = vpop.f32.mrf.mxu0
        %v4142 = vadd.f32 %v2883, %v4141
        %v4143 = vpop.f32.mrf.mxu0
        %v4144 = vadd.f32 %v2887, %v4143
        %4145 = vmatprep.mubr.bf16.mxu0 %v3410
        %4146 = vmatmul.mubr.bf16.gmra.mxu0 %v617
        %v4147 = vpop.f32.mrf.mxu0
        %v4148 = vadd.f32 %v2883, %v4147
        %v4149 = vpop.f32.mrf.mxu0
        %v4150 = vadd.f32 %v2887, %v4149
        %v4151 = vpop.f32.mrf.mxu0
        %v4152 = vadd.f32 %v2883, %v4151
        %v4153 = vpop.f32.mrf.mxu0
        %v4154 = vadd.f32 %v2887, %v4153
        %4155 = vmatprep.mubr.bf16.mxu0 %v3413
        %4156 = vmatmul.mubr.bf16.gmra.mxu0 %v619
        %v4157 = vpop.f32.mrf.mxu0
        %v4158 = vadd.f32 %v2883, %v4157
        %v4159 = vpop.f32.mrf.mxu0
        %v4160 = vadd.f32 %v2887, %v4159
        %v4161 = vpop.f32.mrf.mxu0
        %v4162 = vadd.f32 %v2883, %v4161
        %v4163 = vpop.f32.mrf.mxu0
        %v4164 = vadd.f32 %v2887, %v4163
        %4165 = vmatprep.mubr.bf16.mxu0 %v3416
        %4166 = vmatmul.mubr.bf16.gmra.mxu0 %v621
        %v4167 = vpop.f32.mrf.mxu0
        %v4168 = vadd.f32 %v2883, %v4167
        %v4169 = vpop.f32.mrf.mxu0
        %v4170 = vadd.f32 %v2887, %v4169
        %v4171 = vpop.f32.mrf.mxu0
        %v4172 = vadd.f32 %v2883, %v4171
        %v4173 = vpop.f32.mrf.mxu0
        %v4174 = vadd.f32 %v2887, %v4173
        %4175 = vmatprep.mubr.bf16.mxu0 %v3419
        %4176 = vmatmul.mubr.bf16.gmra.mxu0 %v623
        %v4177 = vpop.f32.mrf.mxu0
        %v4178 = vadd.f32 %v2883, %v4177
        %v4179 = vpop.f32.mrf.mxu0
        %v4180 = vadd.f32 %v2887, %v4179
        %v4181 = vpop.f32.mrf.mxu0
        %v4182 = vadd.f32 %v2883, %v4181
        %v4183 = vpop.f32.mrf.mxu0
        %v4184 = vadd.f32 %v2887, %v4183
        %4185 = vmatprep.mubr.bf16.mxu0 %v3422
        %4186 = vmatmul.mubr.bf16.gmra.mxu0 %v625
        %v4187 = vpop.f32.mrf.mxu0
        %v4188 = vadd.f32 %v2883, %v4187
        %v4189 = vpop.f32.mrf.mxu0
        %v4190 = vadd.f32 %v2887, %v4189
        %v4191 = vpop.f32.mrf.mxu0
        %v4192 = vadd.f32 %v2883, %v4191
        %v4193 = vpop.f32.mrf.mxu0
        %v4194 = vadd.f32 %v2887, %v4193
        %4195 = vdwg.mxu0
        %v4196 = vmax.f32 %v3459, 0.0
        %v4197 = vmax.f32 %v3461, 0.0
        %v4198 = vmax.f32 %v3652, 0.0
        %v4199 = vmax.f32 %v3654, 0.0
        %v4200 = vmax.f32 %v3845, 0.0
        %v4201 = vmax.f32 %v3847, 0.0
        %v4202 = vmax.f32 %v4038, 0.0
        %v4203 = vmax.f32 %v4040, 0.0
        %v4204 = vmax.f32 %v3463, 0.0
        %v4205 = vmax.f32 %v3465, 0.0
        %v4206 = vmax.f32 %v3656, 0.0
        %v4207 = vmax.f32 %v3658, 0.0
        %v4208 = vmax.f32 %v3849, 0.0
        %v4209 = vmax.f32 %v3851, 0.0
        %v4210 = vmax.f32 %v4042, 0.0
        %v4211 = vmax.f32 %v4044, 0.0
        %v4212 = vmax.f32 %v3469, 0.0
        %v4213 = vmax.f32 %v3471, 0.0
        %v4214 = vmax.f32 %v3662, 0.0
        %v4215 = vmax.f32 %v3664, 0.0
        %v4216 = vmax.f32 %v3855, 0.0
        %v4217 = vmax.f32 %v3857, 0.0
        %v4218 = vmax.f32 %v4048, 0.0
        %v4219 = vmax.f32 %v4050, 0.0
        %v4220 = vmax.f32 %v3473, 0.0
        %v4221 = vmax.f32 %v3475, 0.0
        %v4222 = vmax.f32 %v3666, 0.0
        %v4223 = vmax.f32 %v3668, 0.0
        %v4224 = vmax.f32 %v3859, 0.0
        %v4225 = vmax.f32 %v3861, 0.0
        %v4226 = vmax.f32 %v4052, 0.0
        %v4227 = vmax.f32 %v4054, 0.0
        %v4228 = vmax.f32 %v3479, 0.0
        %v4229 = vmax.f32 %v3481, 0.0
        %v4230 = vmax.f32 %v3672, 0.0
        %v4231 = vmax.f32 %v3674, 0.0
        %v4232 = vmax.f32 %v3865, 0.0
        %v4233 = vmax.f32 %v3867, 0.0
        %v4234 = vmax.f32 %v4058, 0.0
        %v4235 = vmax.f32 %v4060, 0.0
        %v4236 = vmax.f32 %v3483, 0.0
        %v4237 = vmax.f32 %v3485, 0.0
        %v4238 = vmax.f32 %v3676, 0.0
        %v4239 = vmax.f32 %v3678, 0.0
        %v4240 = vmax.f32 %v3869, 0.0
        %v4241 = vmax.f32 %v3871, 0.0
        %v4242 = vmax.f32 %v4062, 0.0
        %v4243 = vmax.f32 %v4064, 0.0
        %v4244 = vmax.f32 %v3489, 0.0
        %v4245 = vmax.f32 %v3491, 0.0
        %v4246 = vmax.f32 %v3682, 0.0
        %v4247 = vmax.f32 %v3684, 0.0
        %v4248 = vmax.f32 %v3875, 0.0
        %v4249 = vmax.f32 %v3877, 0.0
        %v4250 = vmax.f32 %v4068, 0.0
        %v4251 = vmax.f32 %v4070, 0.0
        %v4252 = vmax.f32 %v3493, 0.0
        %v4253 = vmax.f32 %v3495, 0.0
        %v4254 = vmax.f32 %v3686, 0.0
        %v4255 = vmax.f32 %v3688, 0.0
        %v4256 = vmax.f32 %v3879, 0.0
        %v4257 = vmax.f32 %v3881, 0.0
        %v4258 = vmax.f32 %v4072, 0.0
        %v4259 = vmax.f32 %v4074, 0.0
        %v4260 = vmax.f32 %v3499, 0.0
        %v4261 = vmax.f32 %v3501, 0.0
        %v4262 = vmax.f32 %v3692, 0.0
        %v4263 = vmax.f32 %v3694, 0.0
        %v4264 = vmax.f32 %v3885, 0.0
        %v4265 = vmax.f32 %v3887, 0.0
        %v4266 = vmax.f32 %v4078, 0.0
        %v4267 = vmax.f32 %v4080, 0.0
        %v4268 = vmax.f32 %v3503, 0.0
        %v4269 = vmax.f32 %v3505, 0.0
        %v4270 = vmax.f32 %v3696, 0.0
        %v4271 = vmax.f32 %v3698, 0.0
        %v4272 = vmax.f32 %v3889, 0.0
        %v4273 = vmax.f32 %v3891, 0.0
        %v4274 = vmax.f32 %v4082, 0.0
        %v4275 = vmax.f32 %v4084, 0.0
        %v4276 = vmax.f32 %v3509, 0.0
        %v4277 = vmax.f32 %v3511, 0.0
        %v4278 = vmax.f32 %v3702, 0.0
        %v4279 = vmax.f32 %v3704, 0.0
        %v4280 = vmax.f32 %v3895, 0.0
        %v4281 = vmax.f32 %v3897, 0.0
        %v4282 = vmax.f32 %v4088, 0.0
        %v4283 = vmax.f32 %v4090, 0.0
        %v4284 = vmax.f32 %v3513, 0.0
        %v4285 = vmax.f32 %v3515, 0.0
        %v4286 = vmax.f32 %v3706, 0.0
        %v4287 = vmax.f32 %v3708, 0.0
        %v4288 = vmax.f32 %v3899, 0.0
        %v4289 = vmax.f32 %v3901, 0.0
        %v4290 = vmax.f32 %v4092, 0.0
        %v4291 = vmax.f32 %v4094, 0.0
        %v4292 = vmax.f32 %v3519, 0.0
        %v4293 = vmax.f32 %v3521, 0.0
        %v4294 = vmax.f32 %v3712, 0.0
        %v4295 = vmax.f32 %v3714, 0.0
        %v4296 = vmax.f32 %v3905, 0.0
        %v4297 = vmax.f32 %v3907, 0.0
        %v4298 = vmax.f32 %v4098, 0.0
        %v4299 = vmax.f32 %v4100, 0.0
        %v4300 = vmax.f32 %v3523, 0.0
        %v4301 = vmax.f32 %v3525, 0.0
        %v4302 = vmax.f32 %v3716, 0.0
        %v4303 = vmax.f32 %v3718, 0.0
        %v4304 = vmax.f32 %v3909, 0.0
        %v4305 = vmax.f32 %v3911, 0.0
        %v4306 = vmax.f32 %v4102, 0.0
        %v4307 = vmax.f32 %v4104, 0.0
        %v4308 = vmax.f32 %v3529, 0.0
        %v4309 = vmax.f32 %v3531, 0.0
        %v4310 = vmax.f32 %v3722, 0.0
        %v4311 = vmax.f32 %v3724, 0.0
        %v4312 = vmax.f32 %v3915, 0.0
        %v4313 = vmax.f32 %v3917, 0.0
        %v4314 = vmax.f32 %v4108, 0.0
        %v4315 = vmax.f32 %v4110, 0.0
        %v4316 = vmax.f32 %v3533, 0.0
        %v4317 = vmax.f32 %v3535, 0.0
        %v4318 = vmax.f32 %v3726, 0.0
        %v4319 = vmax.f32 %v3728, 0.0
        %v4320 = vmax.f32 %v3919, 0.0
        %v4321 = vmax.f32 %v3921, 0.0
        %v4322 = vmax.f32 %v4112, 0.0
        %v4323 = vmax.f32 %v4114, 0.0
        %v4324 = vmax.f32 %v3539, 0.0
        %v4325 = vmax.f32 %v3541, 0.0
        %v4326 = vmax.f32 %v3732, 0.0
        %v4327 = vmax.f32 %v3734, 0.0
        %v4328 = vmax.f32 %v3925, 0.0
        %v4329 = vmax.f32 %v3927, 0.0
        %v4330 = vmax.f32 %v4118, 0.0
        %v4331 = vmax.f32 %v4120, 0.0
        %v4332 = vmax.f32 %v3543, 0.0
        %v4333 = vmax.f32 %v3545, 0.0
        %v4334 = vmax.f32 %v3736, 0.0
        %v4335 = vmax.f32 %v3738, 0.0
        %v4336 = vmax.f32 %v3929, 0.0
        %v4337 = vmax.f32 %v3931, 0.0
        %v4338 = vmax.f32 %v4122, 0.0
        %v4339 = vmax.f32 %v4124, 0.0
        %v4340 = vmax.f32 %v3549, 0.0
        %v4341 = vmax.f32 %v3551, 0.0
        %v4342 = vmax.f32 %v3742, 0.0
        %v4343 = vmax.f32 %v3744, 0.0
        %v4344 = vmax.f32 %v3935, 0.0
        %v4345 = vmax.f32 %v3937, 0.0
        %v4346 = vmax.f32 %v4128, 0.0
        %v4347 = vmax.f32 %v4130, 0.0
        %v4348 = vmax.f32 %v3553, 0.0
        %v4349 = vmax.f32 %v3555, 0.0
        %v4350 = vmax.f32 %v3746, 0.0
        %v4351 = vmax.f32 %v3748, 0.0
        %v4352 = vmax.f32 %v3939, 0.0
        %v4353 = vmax.f32 %v3941, 0.0
        %v4354 = vmax.f32 %v4132, 0.0
        %v4355 = vmax.f32 %v4134, 0.0
        %v4356 = vmax.f32 %v3559, 0.0
        %v4357 = vmax.f32 %v3561, 0.0
        %v4358 = vmax.f32 %v3752, 0.0
        %v4359 = vmax.f32 %v3754, 0.0
        %v4360 = vmax.f32 %v3945, 0.0
        %v4361 = vmax.f32 %v3947, 0.0
        %v4362 = vmax.f32 %v4138, 0.0
        %v4363 = vmax.f32 %v4140, 0.0
        %v4364 = vmax.f32 %v3563, 0.0
        %v4365 = vmax.f32 %v3565, 0.0
        %v4366 = vmax.f32 %v3756, 0.0
        %v4367 = vmax.f32 %v3758, 0.0
        %v4368 = vmax.f32 %v3949, 0.0
        %v4369 = vmax.f32 %v3951, 0.0
        %v4370 = vmax.f32 %v4142, 0.0
        %v4371 = vmax.f32 %v4144, 0.0
        %v4372 = vmax.f32 %v3569, 0.0
        %v4373 = vmax.f32 %v3571, 0.0
        %v4374 = vmax.f32 %v3762, 0.0
        %v4375 = vmax.f32 %v3764, 0.0
        %v4376 = vmax.f32 %v3955, 0.0
        %v4377 = vmax.f32 %v3957, 0.0
        %v4378 = vmax.f32 %v4148, 0.0
        %v4379 = vmax.f32 %v4150, 0.0
        %v4380 = vmax.f32 %v3573, 0.0
        %v4381 = vmax.f32 %v3575, 0.0
        %v4382 = vmax.f32 %v3766, 0.0
        %v4383 = vmax.f32 %v3768, 0.0
        %v4384 = vmax.f32 %v3959, 0.0
        %v4385 = vmax.f32 %v3961, 0.0
        %v4386 = vmax.f32 %v4152, 0.0
        %v4387 = vmax.f32 %v4154, 0.0
        %v4388 = vmax.f32 %v3579, 0.0
        %v4389 = vmax.f32 %v3581, 0.0
        %v4390 = vmax.f32 %v3772, 0.0
        %v4391 = vmax.f32 %v3774, 0.0
        %v4392 = vmax.f32 %v3965, 0.0
        %v4393 = vmax.f32 %v3967, 0.0
        %v4394 = vmax.f32 %v4158, 0.0
        %v4395 = vmax.f32 %v4160, 0.0
        %v4396 = vmax.f32 %v3583, 0.0
        %v4397 = vmax.f32 %v3585, 0.0
        %v4398 = vmax.f32 %v3776, 0.0
        %v4399 = vmax.f32 %v3778, 0.0
        %v4400 = vmax.f32 %v3969, 0.0
        %v4401 = vmax.f32 %v3971, 0.0
        %v4402 = vmax.f32 %v4162, 0.0
        %v4403 = vmax.f32 %v4164, 0.0
        %v4404 = vmax.f32 %v3589, 0.0
        %v4405 = vmax.f32 %v3591, 0.0
        %v4406 = vmax.f32 %v3782, 0.0
        %v4407 = vmax.f32 %v3784, 0.0
        %v4408 = vmax.f32 %v3975, 0.0
        %v4409 = vmax.f32 %v3977, 0.0
        %v4410 = vmax.f32 %v4168, 0.0
        %v4411 = vmax.f32 %v4170, 0.0
        %v4412 = vmax.f32 %v3593, 0.0
        %v4413 = vmax.f32 %v3595, 0.0
        %v4414 = vmax.f32 %v3786, 0.0
        %v4415 = vmax.f32 %v3788, 0.0
        %v4416 = vmax.f32 %v3979, 0.0
        %v4417 = vmax.f32 %v3981, 0.0
        %v4418 = vmax.f32 %v4172, 0.0
        %v4419 = vmax.f32 %v4174, 0.0
        %v4420 = vmax.f32 %v3599, 0.0
        %v4421 = vmax.f32 %v3601, 0.0
        %v4422 = vmax.f32 %v3792, 0.0
        %v4423 = vmax.f32 %v3794, 0.0
        %v4424 = vmax.f32 %v3985, 0.0
        %v4425 = vmax.f32 %v3987, 0.0
        %v4426 = vmax.f32 %v4178, 0.0
        %v4427 = vmax.f32 %v4180, 0.0
        %v4428 = vmax.f32 %v3603, 0.0
        %v4429 = vmax.f32 %v3605, 0.0
        %v4430 = vmax.f32 %v3796, 0.0
        %v4431 = vmax.f32 %v3798, 0.0
        %v4432 = vmax.f32 %v3989, 0.0
        %v4433 = vmax.f32 %v3991, 0.0
        %v4434 = vmax.f32 %v4182, 0.0
        %v4435 = vmax.f32 %v4184, 0.0
        %v4436 = vmax.f32 %v3609, 0.0
        %v4437 = vmax.f32 %v3611, 0.0
        %v4438 = vmax.f32 %v3802, 0.0
        %v4439 = vmax.f32 %v3804, 0.0
        %v4440 = vmax.f32 %v3995, 0.0
        %v4441 = vmax.f32 %v3997, 0.0
        %v4442 = vmax.f32 %v4188, 0.0
        %v4443 = vmax.f32 %v4190, 0.0
        %v4444 = vmax.f32 %v3613, 0.0
        %v4445 = vmax.f32 %v3615, 0.0
        %v4446 = vmax.f32 %v3806, 0.0
        %v4447 = vmax.f32 %v3808, 0.0
        %v4448 = vmax.f32 %v3999, 0.0
        %v4449 = vmax.f32 %v4001, 0.0
        %v4450 = vmax.f32 %v4192, 0.0
        %v4451 = vmax.f32 %v4194, 0.0
        %v4452 = vpack.c.bf16 %v4204, %v4196
        %v4453 = vpack.c.bf16 %v4205, %v4197
        %v4454 = vpack.c.bf16 %v4206, %v4198
        %v4455 = vpack.c.bf16 %v4207, %v4199
        %v4456 = vpack.c.bf16 %v4208, %v4200
        %v4457 = vpack.c.bf16 %v4209, %v4201
        %v4458 = vpack.c.bf16 %v4210, %v4202
        %v4459 = vpack.c.bf16 %v4211, %v4203
        %v4460 = vpack.c.bf16 %v4220, %v4212
        %v4461 = vpack.c.bf16 %v4221, %v4213
        %v4462 = vpack.c.bf16 %v4222, %v4214
        %v4463 = vpack.c.bf16 %v4223, %v4215
        %v4464 = vpack.c.bf16 %v4224, %v4216
        %v4465 = vpack.c.bf16 %v4225, %v4217
        %v4466 = vpack.c.bf16 %v4226, %v4218
        %v4467 = vpack.c.bf16 %v4227, %v4219
        %v4468 = vpack.c.bf16 %v4236, %v4228
        %v4469 = vpack.c.bf16 %v4237, %v4229
        %v4470 = vpack.c.bf16 %v4238, %v4230
        %v4471 = vpack.c.bf16 %v4239, %v4231
        %v4472 = vpack.c.bf16 %v4240, %v4232
        %v4473 = vpack.c.bf16 %v4241, %v4233
        %v4474 = vpack.c.bf16 %v4242, %v4234
        %v4475 = vpack.c.bf16 %v4243, %v4235
        %v4476 = vpack.c.bf16 %v4252, %v4244
        %v4477 = vpack.c.bf16 %v4253, %v4245
        %v4478 = vpack.c.bf16 %v4254, %v4246
        %v4479 = vpack.c.bf16 %v4255, %v4247
        %v4480 = vpack.c.bf16 %v4256, %v4248
        %v4481 = vpack.c.bf16 %v4257, %v4249
        %v4482 = vpack.c.bf16 %v4258, %v4250
        %v4483 = vpack.c.bf16 %v4259, %v4251
        %v4484 = vpack.c.bf16 %v4268, %v4260
        %v4485 = vpack.c.bf16 %v4269, %v4261
        %v4486 = vpack.c.bf16 %v4270, %v4262
        %v4487 = vpack.c.bf16 %v4271, %v4263
        %v4488 = vpack.c.bf16 %v4272, %v4264
        %v4489 = vpack.c.bf16 %v4273, %v4265
        %v4490 = vpack.c.bf16 %v4274, %v4266
        %v4491 = vpack.c.bf16 %v4275, %v4267
        %v4492 = vpack.c.bf16 %v4284, %v4276
        %v4493 = vpack.c.bf16 %v4285, %v4277
        %v4494 = vpack.c.bf16 %v4286, %v4278
        %v4495 = vpack.c.bf16 %v4287, %v4279
        %v4496 = vpack.c.bf16 %v4288, %v4280
        %v4497 = vpack.c.bf16 %v4289, %v4281
        %v4498 = vpack.c.bf16 %v4290, %v4282
        %v4499 = vpack.c.bf16 %v4291, %v4283
        %v4500 = vpack.c.bf16 %v4300, %v4292
        %v4501 = vpack.c.bf16 %v4301, %v4293
        %v4502 = vpack.c.bf16 %v4302, %v4294
        %v4503 = vpack.c.bf16 %v4303, %v4295
        %v4504 = vpack.c.bf16 %v4304, %v4296
        %v4505 = vpack.c.bf16 %v4305, %v4297
        %v4506 = vpack.c.bf16 %v4306, %v4298
        %v4507 = vpack.c.bf16 %v4307, %v4299
        %v4508 = vpack.c.bf16 %v4316, %v4308
        %v4509 = vpack.c.bf16 %v4317, %v4309
        %v4510 = vpack.c.bf16 %v4318, %v4310
        %v4511 = vpack.c.bf16 %v4319, %v4311
        %v4512 = vpack.c.bf16 %v4320, %v4312
        %v4513 = vpack.c.bf16 %v4321, %v4313
        %v4514 = vpack.c.bf16 %v4322, %v4314
        %v4515 = vpack.c.bf16 %v4323, %v4315
        %v4516 = vpack.c.bf16 %v4332, %v4324
        %v4517 = vpack.c.bf16 %v4333, %v4325
        %v4518 = vpack.c.bf16 %v4334, %v4326
        %v4519 = vpack.c.bf16 %v4335, %v4327
        %v4520 = vpack.c.bf16 %v4336, %v4328
        %v4521 = vpack.c.bf16 %v4337, %v4329
        %v4522 = vpack.c.bf16 %v4338, %v4330
        %v4523 = vpack.c.bf16 %v4339, %v4331
        %v4524 = vpack.c.bf16 %v4348, %v4340
        %v4525 = vpack.c.bf16 %v4349, %v4341
        %v4526 = vpack.c.bf16 %v4350, %v4342
        %v4527 = vpack.c.bf16 %v4351, %v4343
        %v4528 = vpack.c.bf16 %v4352, %v4344
        %v4529 = vpack.c.bf16 %v4353, %v4345
        %v4530 = vpack.c.bf16 %v4354, %v4346
        %v4531 = vpack.c.bf16 %v4355, %v4347
        %v4532 = vpack.c.bf16 %v4364, %v4356
        %v4533 = vpack.c.bf16 %v4365, %v4357
        %v4534 = vpack.c.bf16 %v4366, %v4358
        %v4535 = vpack.c.bf16 %v4367, %v4359
        %v4536 = vpack.c.bf16 %v4368, %v4360
        %v4537 = vpack.c.bf16 %v4369, %v4361
        %v4538 = vpack.c.bf16 %v4370, %v4362
        %v4539 = vpack.c.bf16 %v4371, %v4363
        %v4540 = vpack.c.bf16 %v4380, %v4372
        %v4541 = vpack.c.bf16 %v4381, %v4373
        %v4542 = vpack.c.bf16 %v4382, %v4374
        %v4543 = vpack.c.bf16 %v4383, %v4375
        %v4544 = vpack.c.bf16 %v4384, %v4376
        %v4545 = vpack.c.bf16 %v4385, %v4377
        %v4546 = vpack.c.bf16 %v4386, %v4378
        %v4547 = vpack.c.bf16 %v4387, %v4379
        %v4548 = vpack.c.bf16 %v4396, %v4388
        %v4549 = vpack.c.bf16 %v4397, %v4389
        %v4550 = vpack.c.bf16 %v4398, %v4390
        %v4551 = vpack.c.bf16 %v4399, %v4391
        %v4552 = vpack.c.bf16 %v4400, %v4392
        %v4553 = vpack.c.bf16 %v4401, %v4393
        %v4554 = vpack.c.bf16 %v4402, %v4394
        %v4555 = vpack.c.bf16 %v4403, %v4395
        %v4556 = vpack.c.bf16 %v4412, %v4404
        %v4557 = vpack.c.bf16 %v4413, %v4405
        %v4558 = vpack.c.bf16 %v4414, %v4406
        %v4559 = vpack.c.bf16 %v4415, %v4407
        %v4560 = vpack.c.bf16 %v4416, %v4408
        %v4561 = vpack.c.bf16 %v4417, %v4409
        %v4562 = vpack.c.bf16 %v4418, %v4410
        %v4563 = vpack.c.bf16 %v4419, %v4411
        %v4564 = vpack.c.bf16 %v4428, %v4420
        %v4565 = vpack.c.bf16 %v4429, %v4421
        %v4566 = vpack.c.bf16 %v4430, %v4422
        %v4567 = vpack.c.bf16 %v4431, %v4423
        %v4568 = vpack.c.bf16 %v4432, %v4424
        %v4569 = vpack.c.bf16 %v4433, %v4425
        %v4570 = vpack.c.bf16 %v4434, %v4426
        %v4571 = vpack.c.bf16 %v4435, %v4427
        %v4572 = vpack.c.bf16 %v4444, %v4436
        %v4573 = vpack.c.bf16 %v4445, %v4437
        %v4574 = vpack.c.bf16 %v4446, %v4438
        %v4575 = vpack.c.bf16 %v4447, %v4439
        %v4576 = vpack.c.bf16 %v4448, %v4440
        %v4577 = vpack.c.bf16 %v4449, %v4441
        %v4578 = vpack.c.bf16 %v4450, %v4442
        %v4579 = vpack.c.bf16 %v4451, %v4443
        %v4580 = vld [vmem:[%s11] sm:$0x7]
        %v4581 = vld [vmem:[#allocation5] sm:$0xf]
        %v4582 = vld [vmem:[#allocation5 + $0x4] sm:$0xf]
        %v4583 = vld [vmem:[#allocation5 + $0x8] sm:$0xf]
        %v4584 = vld [vmem:[#allocation5 + $0xc] sm:$0xf]
        %v4585 = vld [vmem:[#allocation5 + $0x10] sm:$0xf]
        %v4586 = vld [vmem:[#allocation5 + $0x14] sm:$0xf]
        %v4587 = vld [vmem:[#allocation5 + $0x18] sm:$0xf]
        %v4588 = vld [vmem:[#allocation5 + $0x1c] sm:$0xf]
        %v4589 = vld [vmem:[#allocation5 + $0x20] sm:$0xf]
        %v4590 = vld [vmem:[#allocation5 + $0x24] sm:$0xf]
        %v4591 = vld [vmem:[#allocation5 + $0x28] sm:$0xf]
        %v4592 = vld [vmem:[#allocation5 + $0x2c] sm:$0xf]
        %v4593 = vld [vmem:[#allocation5 + $0x30] sm:$0xf]
        %v4594 = vld [vmem:[#allocation5 + $0x34] sm:$0xf]
        %v4595 = vld [vmem:[#allocation5 + $0x38] sm:$0xf]
        %v4596 = vld [vmem:[#allocation5 + $0x3c] sm:$0xf]
        %v4597 = vld [vmem:[#allocation5 + $0x40] sm:$0xf]
        %v4598 = vld [vmem:[#allocation5 + $0x44] sm:$0xf]
        %v4599 = vld [vmem:[#allocation5 + $0x48] sm:$0xf]
        %v4600 = vld [vmem:[#allocation5 + $0x4c] sm:$0xf]
        %v4601 = vld [vmem:[#allocation5 + $0x50] sm:$0xf]
        %v4602 = vld [vmem:[#allocation5 + $0x54] sm:$0xf]
        %v4603 = vld [vmem:[#allocation5 + $0x58] sm:$0xf]
        %v4604 = vld [vmem:[#allocation5 + $0x5c] sm:$0xf]
        %v4605 = vld [vmem:[#allocation2] sm:$0xf]
        %v4606 = vld [vmem:[#allocation2 + $0x4] sm:$0xf]
        %v4607 = vld [vmem:[#allocation2 + $0x8] sm:$0xf]
        %v4608 = vld [vmem:[#allocation2 + $0xc] sm:$0xf]
        %v4609 = vld [vmem:[#allocation2 + $0x10] sm:$0xf]
        %v4610 = vld [vmem:[#allocation2 + $0x14] sm:$0xf]
        %v4611 = vld [vmem:[#allocation2 + $0x18] sm:$0xf]
        %v4612 = vld [vmem:[#allocation2 + $0x1c] sm:$0xf]
        %v4613 = vld [vmem:[#allocation2 + $0x20] sm:$0xf]
        %v4614 = vld [vmem:[#allocation2 + $0x24] sm:$0xf]
        %v4615 = vld [vmem:[#allocation2 + $0x28] sm:$0xf]
        %v4616 = vld [vmem:[#allocation2 + $0x2c] sm:$0xf]
        %v4617 = vld [vmem:[#allocation2 + $0x30] sm:$0xf]
        %v4618 = vld [vmem:[#allocation2 + $0x34] sm:$0xf]
        %v4619 = vld [vmem:[#allocation2 + $0x38] sm:$0xf]
        %v4620 = vld [vmem:[#allocation2 + $0x3c] sm:$0xf]
        %v4621 = vld [vmem:[#allocation2 + $0x40] sm:$0xf]
        %v4622 = vld [vmem:[#allocation2 + $0x44] sm:$0xf]
        %v4623 = vld [vmem:[#allocation2 + $0x48] sm:$0xf]
        %v4624 = vld [vmem:[#allocation2 + $0x4c] sm:$0xf]
        %v4625 = vld [vmem:[#allocation2 + $0x50] sm:$0xf]
        %v4626 = vld [vmem:[#allocation2 + $0x54] sm:$0xf]
        %v4627 = vld [vmem:[#allocation2 + $0x58] sm:$0xf]
        %v4628 = vld [vmem:[#allocation2 + $0x5c] sm:$0xf]
        %v4629 = vld [vmem:[#allocation2 + $0x60] sm:$0xf]
        %v4630 = vld [vmem:[#allocation2 + $0x64] sm:$0xf]
        %v4631 = vld [vmem:[#allocation2 + $0x68] sm:$0xf]
        %v4632 = vld [vmem:[#allocation2 + $0x6c] sm:$0xf]
        %v4633 = vld [vmem:[#allocation2 + $0x70] sm:$0xf]
        %v4634 = vld [vmem:[#allocation2 + $0x74] sm:$0xf]
        %v4635 = vld [vmem:[#allocation2 + $0x78] sm:$0xf]
        %v4636 = vld [vmem:[#allocation2 + $0x7c] sm:$0xf]
        %v4637 = vld [vmem:[#allocation2 + $0x80] sm:$0xf]
        %v4638 = vld [vmem:[#allocation2 + $0x84] sm:$0xf]
        %v4639 = vld [vmem:[#allocation2 + $0x88] sm:$0xf]
        %v4640 = vld [vmem:[#allocation2 + $0x8c] sm:$0xf]
        %v4641 = vld [vmem:[#allocation2 + $0x90] sm:$0xf]
        %v4642 = vld [vmem:[#allocation2 + $0x94] sm:$0xf]
        %v4643 = vld [vmem:[#allocation2 + $0x98] sm:$0xf]
        %v4644 = vld [vmem:[#allocation2 + $0x9c] sm:$0xf]
        %v4645 = vld [vmem:[#allocation2 + $0xa0] sm:$0xf]
        %v4646 = vld [vmem:[#allocation2 + $0xa4] sm:$0xf]
        %v4647 = vld [vmem:[#allocation2 + $0xa8] sm:$0xf]
        %v4648 = vld [vmem:[#allocation2 + $0xac] sm:$0xf]
        %v4649 = vld [vmem:[#allocation2 + $0xb0] sm:$0xf]
        %v4650 = vld [vmem:[#allocation2 + $0xb4] sm:$0xf]
        %v4651 = vld [vmem:[#allocation2 + $0xb8] sm:$0xf]
        %v4652 = vld [vmem:[#allocation2 + $0xbc] sm:$0xf]
        %v4653 = vld [vmem:[#allocation2 + $0xc0] sm:$0xf]
        %v4654 = vld [vmem:[#allocation2 + $0xc4] sm:$0xf]
        %v4655 = vld [vmem:[#allocation2 + $0xc8] sm:$0xf]
        %v4656 = vld [vmem:[#allocation2 + $0xcc] sm:$0xf]
        %v4657 = vld [vmem:[#allocation2 + $0xd0] sm:$0xf]
        %v4658 = vld [vmem:[#allocation2 + $0xd4] sm:$0xf]
        %v4659 = vld [vmem:[#allocation2 + $0xd8] sm:$0xf]
        %v4660 = vld [vmem:[#allocation2 + $0xdc] sm:$0xf]
        %v4661 = vld [vmem:[#allocation2 + $0xe0] sm:$0xf]
        %v4662 = vld [vmem:[#allocation2 + $0xe4] sm:$0xf]
        %v4663 = vld [vmem:[#allocation2 + $0xe8] sm:$0xf]
        %v4664 = vld [vmem:[#allocation2 + $0xec] sm:$0xf]
        %v4665 = vld [vmem:[#allocation2 + $0xf0] sm:$0xf]
        %v4666 = vld [vmem:[#allocation2 + $0xf4] sm:$0xf]
        %v4667 = vld [vmem:[#allocation2 + $0xf8] sm:$0xf]
        %v4668 = vld [vmem:[#allocation2 + $0xfc] sm:$0xf]
        %v4669 = vld [vmem:[#allocation2 + $0x100] sm:$0xf]
        %v4670 = vld [vmem:[#allocation2 + $0x104] sm:$0xf]
        %v4671 = vld [vmem:[#allocation2 + $0x108] sm:$0xf]
        %v4672 = vld [vmem:[#allocation2 + $0x10c] sm:$0xf]
        %v4673 = vld [vmem:[#allocation2 + $0x110] sm:$0xf]
        %v4674 = vld [vmem:[#allocation2 + $0x114] sm:$0xf]
        %v4675 = vld [vmem:[#allocation2 + $0x118] sm:$0xf]
        %v4676 = vld [vmem:[#allocation2 + $0x11c] sm:$0xf]
        %v4677 = vld [vmem:[#allocation2 + $0x120] sm:$0xf]
        %v4678 = vld [vmem:[#allocation2 + $0x124] sm:$0xf]
        %v4679 = vld [vmem:[#allocation2 + $0x128] sm:$0xf]
        %v4680 = vld [vmem:[#allocation2 + $0x12c] sm:$0xf]
        %v4681 = vld [vmem:[#allocation2 + $0x130] sm:$0xf]
        %v4682 = vld [vmem:[#allocation2 + $0x134] sm:$0xf]
        %v4683 = vld [vmem:[#allocation2 + $0x138] sm:$0xf]
        %v4684 = vld [vmem:[#allocation2 + $0x13c] sm:$0xf]
        %v4685 = vld [vmem:[#allocation2 + $0x140] sm:$0xf]
        %v4686 = vld [vmem:[#allocation2 + $0x144] sm:$0xf]
        %v4687 = vld [vmem:[#allocation2 + $0x148] sm:$0xf]
        %v4688 = vld [vmem:[#allocation2 + $0x14c] sm:$0xf]
        %v4689 = vld [vmem:[#allocation2 + $0x150] sm:$0xf]
        %v4690 = vld [vmem:[#allocation2 + $0x154] sm:$0xf]
        %v4691 = vld [vmem:[#allocation2 + $0x158] sm:$0xf]
        %v4692 = vld [vmem:[#allocation2 + $0x15c] sm:$0xf]
        %v4693 = vld [vmem:[#allocation2 + $0x160] sm:$0xf]
        %v4694 = vld [vmem:[#allocation2 + $0x164] sm:$0xf]
        %v4695 = vld [vmem:[#allocation2 + $0x168] sm:$0xf]
        %v4696 = vld [vmem:[#allocation2 + $0x16c] sm:$0xf]
        %v4697 = vld [vmem:[#allocation2 + $0x170] sm:$0xf]
        %v4698 = vld [vmem:[#allocation2 + $0x174] sm:$0xf]
        %v4699 = vld [vmem:[#allocation2 + $0x178] sm:$0xf]
        %v4700 = vld [vmem:[#allocation2 + $0x17c] sm:$0xf]
        %v4701 = vld [vmem:[#allocation2 + $0x180] sm:$0xf]
        %v4702 = vld [vmem:[#allocation2 + $0x184] sm:$0xf]
        %v4703 = vld [vmem:[#allocation2 + $0x188] sm:$0xf]
        %v4704 = vld [vmem:[#allocation2 + $0x18c] sm:$0xf]
        %v4705 = vld [vmem:[#allocation2 + $0x190] sm:$0xf]
        %v4706 = vld [vmem:[#allocation2 + $0x194] sm:$0xf]
        %v4707 = vld [vmem:[#allocation2 + $0x198] sm:$0xf]
        %v4708 = vld [vmem:[#allocation2 + $0x19c] sm:$0xf]
        %v4709 = vld [vmem:[#allocation2 + $0x1a0] sm:$0xf]
        %v4710 = vld [vmem:[#allocation2 + $0x1a4] sm:$0xf]
        %v4711 = vld [vmem:[#allocation2 + $0x1a8] sm:$0xf]
        %v4712 = vld [vmem:[#allocation2 + $0x1ac] sm:$0xf]
        %v4713 = vld [vmem:[#allocation2 + $0x1b0] sm:$0xf]
        %v4714 = vld [vmem:[#allocation2 + $0x1b4] sm:$0xf]
        %v4715 = vld [vmem:[#allocation2 + $0x1b8] sm:$0xf]
        %v4716 = vld [vmem:[#allocation2 + $0x1bc] sm:$0xf]
        %v4717 = vld [vmem:[#allocation2 + $0x1c0] sm:$0xf]
        %v4718 = vld [vmem:[#allocation2 + $0x1c4] sm:$0xf]
        %v4719 = vld [vmem:[#allocation2 + $0x1c8] sm:$0xf]
        %v4720 = vld [vmem:[#allocation2 + $0x1cc] sm:$0xf]
        %v4721 = vld [vmem:[#allocation2 + $0x1d0] sm:$0xf]
        %v4722 = vld [vmem:[#allocation2 + $0x1d4] sm:$0xf]
        %v4723 = vld [vmem:[#allocation2 + $0x1d8] sm:$0xf]
        %v4724 = vld [vmem:[#allocation2 + $0x1dc] sm:$0xf]
        %v4725 = vld [vmem:[#allocation2 + $0x1e0] sm:$0xf]
        %v4726 = vld [vmem:[#allocation2 + $0x1e4] sm:$0xf]
        %v4727 = vld [vmem:[#allocation2 + $0x1e8] sm:$0xf]
        %v4728 = vld [vmem:[#allocation2 + $0x1ec] sm:$0xf]
        %v4729 = vld [vmem:[#allocation2 + $0x1f0] sm:$0xf]
        %v4730 = vld [vmem:[#allocation2 + $0x1f4] sm:$0xf]
        %v4731 = vld [vmem:[#allocation2 + $0x1f8] sm:$0xf]
        %v4732 = vld [vmem:[#allocation2 + $0x1fc] sm:$0xf]
        %v4861 = vunpack.c.l.b16 %v4605
        %v4862 = vunpack.c.l.b16 %v4606
        %v4863 = vunpack.c.l.b16 %v4607
        %v4864 = vunpack.c.l.b16 %v4608
        %v4865 = vunpack.c.l.b16 %v4609
        %v4866 = vunpack.c.l.b16 %v4610
        %v4867 = vunpack.c.l.b16 %v4611
        %v4868 = vunpack.c.l.b16 %v4612
        %v4869 = vunpack.c.l.b16 %v4613
        %v4870 = vunpack.c.l.b16 %v4614
        %v4871 = vunpack.c.l.b16 %v4615
        %v4872 = vunpack.c.l.b16 %v4616
        %v4873 = vunpack.c.l.b16 %v4617
        %v4874 = vunpack.c.l.b16 %v4618
        %v4875 = vunpack.c.l.b16 %v4619
        %v4876 = vunpack.c.l.b16 %v4620
        %v4877 = vunpack.c.l.b16 %v4621
        %v4878 = vunpack.c.l.b16 %v4622
        %v4879 = vunpack.c.l.b16 %v4623
        %v4880 = vunpack.c.l.b16 %v4624
        %v4881 = vunpack.c.l.b16 %v4625
        %v4882 = vunpack.c.l.b16 %v4626
        %v4883 = vunpack.c.l.b16 %v4627
        %v4884 = vunpack.c.l.b16 %v4628
        %v4885 = vunpack.c.l.b16 %v4629
        %v4886 = vunpack.c.l.b16 %v4630
        %v4887 = vunpack.c.l.b16 %v4631
        %v4888 = vunpack.c.l.b16 %v4632
        %v4889 = vunpack.c.l.b16 %v4633
        %v4890 = vunpack.c.l.b16 %v4634
        %v4891 = vunpack.c.l.b16 %v4635
        %v4892 = vunpack.c.l.b16 %v4636
        %v4893 = vunpack.c.l.b16 %v4637
        %v4894 = vunpack.c.l.b16 %v4638
        %v4895 = vunpack.c.l.b16 %v4639
        %v4896 = vunpack.c.l.b16 %v4640
        %v4897 = vunpack.c.l.b16 %v4641
        %v4898 = vunpack.c.l.b16 %v4642
        %v4899 = vunpack.c.l.b16 %v4643
        %v4900 = vunpack.c.l.b16 %v4644
        %v4901 = vunpack.c.l.b16 %v4645
        %v4902 = vunpack.c.l.b16 %v4646
        %v4903 = vunpack.c.l.b16 %v4647
        %v4904 = vunpack.c.l.b16 %v4648
        %v4905 = vunpack.c.l.b16 %v4649
        %v4906 = vunpack.c.l.b16 %v4650
        %v4907 = vunpack.c.l.b16 %v4651
        %v4908 = vunpack.c.l.b16 %v4652
        %v4909 = vunpack.c.l.b16 %v4653
        %v4910 = vunpack.c.l.b16 %v4654
        %v4911 = vunpack.c.l.b16 %v4655
        %v4912 = vunpack.c.l.b16 %v4656
        %v4913 = vunpack.c.l.b16 %v4657
        %v4914 = vunpack.c.l.b16 %v4658
        %v4915 = vunpack.c.l.b16 %v4659
        %v4916 = vunpack.c.l.b16 %v4660
        %v4917 = vunpack.c.l.b16 %v4661
        %v4918 = vunpack.c.l.b16 %v4662
        %v4919 = vunpack.c.l.b16 %v4663
        %v4920 = vunpack.c.l.b16 %v4664
        %v4921 = vunpack.c.l.b16 %v4665
        %v4922 = vunpack.c.l.b16 %v4666
        %v4923 = vunpack.c.l.b16 %v4667
        %v4924 = vunpack.c.l.b16 %v4668
        %v4925 = vunpack.c.l.b16 %v4669
        %v4926 = vunpack.c.l.b16 %v4670
        %v4927 = vunpack.c.l.b16 %v4671
        %v4928 = vunpack.c.l.b16 %v4672
        %v4929 = vunpack.c.l.b16 %v4673
        %v4930 = vunpack.c.l.b16 %v4674
        %v4931 = vunpack.c.l.b16 %v4675
        %v4932 = vunpack.c.l.b16 %v4676
        %v4933 = vunpack.c.l.b16 %v4677
        %v4934 = vunpack.c.l.b16 %v4678
        %v4935 = vunpack.c.l.b16 %v4679
        %v4936 = vunpack.c.l.b16 %v4680
        %v4937 = vunpack.c.l.b16 %v4681
        %v4938 = vunpack.c.l.b16 %v4682
        %v4939 = vunpack.c.l.b16 %v4683
        %v4940 = vunpack.c.l.b16 %v4684
        %v4941 = vunpack.c.l.b16 %v4685
        %v4942 = vunpack.c.l.b16 %v4686
        %v4943 = vunpack.c.l.b16 %v4687
        %v4944 = vunpack.c.l.b16 %v4688
        %v4945 = vunpack.c.l.b16 %v4689
        %v4946 = vunpack.c.l.b16 %v4690
        %v4947 = vunpack.c.l.b16 %v4691
        %v4948 = vunpack.c.l.b16 %v4692
        %v4949 = vunpack.c.l.b16 %v4693
        %v4950 = vunpack.c.l.b16 %v4694
        %v4951 = vunpack.c.l.b16 %v4695
        %v4952 = vunpack.c.l.b16 %v4696
        %v4953 = vunpack.c.l.b16 %v4697
        %v4954 = vunpack.c.l.b16 %v4698
        %v4955 = vunpack.c.l.b16 %v4699
        %v4956 = vunpack.c.l.b16 %v4700
        %v4957 = vunpack.c.l.b16 %v4701
        %v4958 = vunpack.c.l.b16 %v4702
        %v4959 = vunpack.c.l.b16 %v4703
        %v4960 = vunpack.c.l.b16 %v4704
        %v4961 = vunpack.c.l.b16 %v4705
        %v4962 = vunpack.c.l.b16 %v4706
        %v4963 = vunpack.c.l.b16 %v4707
        %v4964 = vunpack.c.l.b16 %v4708
        %v4965 = vunpack.c.l.b16 %v4709
        %v4966 = vunpack.c.l.b16 %v4710
        %v4967 = vunpack.c.l.b16 %v4711
        %v4968 = vunpack.c.l.b16 %v4712
        %v4969 = vunpack.c.l.b16 %v4713
        %v4970 = vunpack.c.l.b16 %v4714
        %v4971 = vunpack.c.l.b16 %v4715
        %v4972 = vunpack.c.l.b16 %v4716
        %v4973 = vunpack.c.l.b16 %v4717
        %v4974 = vunpack.c.l.b16 %v4718
        %v4975 = vunpack.c.l.b16 %v4719
        %v4976 = vunpack.c.l.b16 %v4720
        %v4977 = vunpack.c.l.b16 %v4721
        %v4978 = vunpack.c.l.b16 %v4722
        %v4979 = vunpack.c.l.b16 %v4723
        %v4980 = vunpack.c.l.b16 %v4724
        %v4981 = vunpack.c.l.b16 %v4725
        %v4982 = vunpack.c.l.b16 %v4726
        %v4983 = vunpack.c.l.b16 %v4727
        %v4984 = vunpack.c.l.b16 %v4728
        %v4985 = vunpack.c.l.b16 %v4729
        %v4986 = vunpack.c.l.b16 %v4730
        %v4987 = vunpack.c.l.b16 %v4731
        %v4988 = vunpack.c.l.b16 %v4732
        %v4989 = vpack.c.b16 %v4862, %v4861
        %v4990 = vpack.c.b16 %v4864, %v4863
        %v4991 = vpack.c.b16 %v4866, %v4865
        %v4992 = vpack.c.b16 %v4868, %v4867
        %v4993 = vpack.c.b16 %v4870, %v4869
        %v4994 = vpack.c.b16 %v4872, %v4871
        %v4995 = vpack.c.b16 %v4874, %v4873
        %v4996 = vpack.c.b16 %v4876, %v4875
        %v4997 = vpack.c.b16 %v4878, %v4877
        %v4998 = vpack.c.b16 %v4880, %v4879
        %v4999 = vpack.c.b16 %v4882, %v4881
        %v5000 = vpack.c.b16 %v4884, %v4883
        %v5001 = vpack.c.b16 %v4886, %v4885
        %v5002 = vpack.c.b16 %v4888, %v4887
        %v5003 = vpack.c.b16 %v4890, %v4889
        %v5004 = vpack.c.b16 %v4892, %v4891
        %v5005 = vpack.c.b16 %v4894, %v4893
        %v5006 = vpack.c.b16 %v4896, %v4895
        %v5007 = vpack.c.b16 %v4898, %v4897
        %v5008 = vpack.c.b16 %v4900, %v4899
        %v5009 = vpack.c.b16 %v4902, %v4901
        %v5010 = vpack.c.b16 %v4904, %v4903
        %v5011 = vpack.c.b16 %v4906, %v4905
        %v5012 = vpack.c.b16 %v4908, %v4907
        %v5013 = vpack.c.b16 %v4910, %v4909
        %v5014 = vpack.c.b16 %v4912, %v4911
        %v5015 = vpack.c.b16 %v4914, %v4913
        %v5016 = vpack.c.b16 %v4916, %v4915
        %v5017 = vpack.c.b16 %v4918, %v4917
        %v5018 = vpack.c.b16 %v4920, %v4919
        %v5019 = vpack.c.b16 %v4922, %v4921
        %v5020 = vpack.c.b16 %v4924, %v4923
        %v5021 = vpack.c.b16 %v4926, %v4925
        %v5022 = vpack.c.b16 %v4928, %v4927
        %v5023 = vpack.c.b16 %v4930, %v4929
        %v5024 = vpack.c.b16 %v4932, %v4931
        %v5025 = vpack.c.b16 %v4934, %v4933
        %v5026 = vpack.c.b16 %v4936, %v4935
        %v5027 = vpack.c.b16 %v4938, %v4937
        %v5028 = vpack.c.b16 %v4940, %v4939
        %v5029 = vpack.c.b16 %v4942, %v4941
        %v5030 = vpack.c.b16 %v4944, %v4943
        %v5031 = vpack.c.b16 %v4946, %v4945
        %v5032 = vpack.c.b16 %v4948, %v4947
        %v5033 = vpack.c.b16 %v4950, %v4949
        %v5034 = vpack.c.b16 %v4952, %v4951
        %v5035 = vpack.c.b16 %v4954, %v4953
        %v5036 = vpack.c.b16 %v4956, %v4955
        %v5037 = vpack.c.b16 %v4958, %v4957
        %v5038 = vpack.c.b16 %v4960, %v4959
        %v5039 = vpack.c.b16 %v4962, %v4961
        %v5040 = vpack.c.b16 %v4964, %v4963
        %v5041 = vpack.c.b16 %v4966, %v4965
        %v5042 = vpack.c.b16 %v4968, %v4967
        %v5043 = vpack.c.b16 %v4970, %v4969
        %v5044 = vpack.c.b16 %v4972, %v4971
        %v5045 = vpack.c.b16 %v4974, %v4973
        %v5046 = vpack.c.b16 %v4976, %v4975
        %v5047 = vpack.c.b16 %v4978, %v4977
        %v5048 = vpack.c.b16 %v4980, %v4979
        %v5049 = vpack.c.b16 %v4982, %v4981
        %v5050 = vpack.c.b16 %v4984, %v4983
        %v5051 = vpack.c.b16 %v4986, %v4985
        %v5052 = vpack.c.b16 %v4988, %v4987
        %5117 = vmatprep.subr.bf16.mxu0 0
        %5118 = vmatpush1.bf16.msra.mxu0 %v4996
        %5119 = vmatprep.subr.bf16.mxu0 0
        %5120 = vmatpush1.bf16.msra.mxu0 %v4995
        %5121 = vmatprep.subr.bf16.mxu0 0
        %5122 = vmatpush1.bf16.msra.mxu0 %v4994
        %5123 = vmatprep.subr.bf16.mxu0 0
        %5124 = vmatpush1.bf16.msra.mxu0 %v4993
        %5125 = vmatprep.subr.bf16.mxu0 0
        %5126 = vmatpush1.bf16.msra.mxu0 %v4992
        %5127 = vmatprep.subr.bf16.mxu0 0
        %5128 = vmatpush1.bf16.msra.mxu0 %v4991
        %5129 = vmatprep.subr.bf16.mxu0 0
        %5130 = vmatpush1.bf16.msra.mxu0 %v4990
        %5131 = vmatprep.subr.bf16.mxu0 0
        %5132 = vmatpush1.bf16.msra.mxu0 %v4989
        %5133 = vmatprep.subr.bf16.mxu0 0
        %5134 = vmatpush2.bf16.msra.mxu0 %v5004
        %5135 = vmatprep.subr.bf16.mxu0 0
        %5136 = vmatpush2.bf16.msra.mxu0 %v5003
        %5137 = vmatprep.subr.bf16.mxu0 0
        %5138 = vmatpush2.bf16.msra.mxu0 %v5002
        %5139 = vmatprep.subr.bf16.mxu0 0
        %5140 = vmatpush2.bf16.msra.mxu0 %v5001
        %5141 = vmatprep.subr.bf16.mxu0 0
        %5142 = vmatpush2.bf16.msra.mxu0 %v5000
        %5143 = vmatprep.subr.bf16.mxu0 0
        %5144 = vmatpush2.bf16.msra.mxu0 %v4999
        %5145 = vmatprep.subr.bf16.mxu0 0
        %5146 = vmatpush2.bf16.msra.mxu0 %v4998
        %5147 = vmatprep.subr.bf16.mxu0 0
        %5148 = vmatpush2.bf16.msra.mxu0 %v4997
        %5149 = vmatprep.mubr.bf16.mxu0 %v4453
        %5150 = vmatmul.mubr.bf16.gmra.mxu0 %v4452
        %v5151 = vpop.f32.mrf.mxu0
        %v5152 = vadd.f32 0.0, %v5151
        %v5153 = vpop.f32.mrf.mxu0
        %v5154 = vpop.f32.mrf.mxu0
        %v5155 = vadd.f32 0.0, %v5154
        %v5156 = vpop.f32.mrf.mxu0
        %5157 = vmatprep.mubr.bf16.mxu0 %v4461
        %5158 = vmatmul.mubr.bf16.gmra.mxu0 %v4460
        %v5159 = vpop.f32.mrf.mxu0
        %v5160 = vadd.f32 0.0, %v5159
        %v5161 = vpop.f32.mrf.mxu0
        %v5162 = vpop.f32.mrf.mxu0
        %v5163 = vadd.f32 0.0, %v5162
        %v5164 = vpop.f32.mrf.mxu0
        %5165 = vmatprep.mubr.bf16.mxu0 %v4469
        %5166 = vmatmul.mubr.bf16.gmra.mxu0 %v4468
        %v5167 = vpop.f32.mrf.mxu0
        %v5168 = vadd.f32 0.0, %v5167
        %v5169 = vpop.f32.mrf.mxu0
        %v5170 = vpop.f32.mrf.mxu0
        %v5171 = vadd.f32 0.0, %v5170
        %v5172 = vpop.f32.mrf.mxu0
        %5173 = vmatprep.mubr.bf16.mxu0 %v4477
        %5174 = vmatmul.mubr.bf16.gmra.mxu0 %v4476
        %v5175 = vpop.f32.mrf.mxu0
        %v5176 = vadd.f32 0.0, %v5175
        %v5177 = vpop.f32.mrf.mxu0
        %v5178 = vpop.f32.mrf.mxu0
        %v5179 = vadd.f32 0.0, %v5178
        %v5180 = vpop.f32.mrf.mxu0
        %5181 = vmatprep.mubr.bf16.mxu0 %v4485
        %5182 = vmatmul.mubr.bf16.gmra.mxu0 %v4484
        %v5183 = vpop.f32.mrf.mxu0
        %v5184 = vadd.f32 0.0, %v5183
        %v5185 = vpop.f32.mrf.mxu0
        %v5186 = vpop.f32.mrf.mxu0
        %v5187 = vadd.f32 0.0, %v5186
        %v5188 = vpop.f32.mrf.mxu0
        %5189 = vmatprep.mubr.bf16.mxu0 %v4493
        %5190 = vmatmul.mubr.bf16.gmra.mxu0 %v4492
        %v5191 = vpop.f32.mrf.mxu0
        %v5192 = vadd.f32 0.0, %v5191
        %v5193 = vpop.f32.mrf.mxu0
        %v5194 = vpop.f32.mrf.mxu0
        %v5195 = vadd.f32 0.0, %v5194
        %v5196 = vpop.f32.mrf.mxu0
        %5197 = vmatprep.mubr.bf16.mxu0 %v4501
        %5198 = vmatmul.mubr.bf16.gmra.mxu0 %v4500
        %v5199 = vpop.f32.mrf.mxu0
        %v5200 = vadd.f32 0.0, %v5199
        %v5201 = vpop.f32.mrf.mxu0
        %v5202 = vpop.f32.mrf.mxu0
        %v5203 = vadd.f32 0.0, %v5202
        %v5204 = vpop.f32.mrf.mxu0
        %5205 = vmatprep.mubr.bf16.mxu0 %v4509
        %5206 = vmatmul.mubr.bf16.gmra.mxu0 %v4508
        %v5207 = vpop.f32.mrf.mxu0
        %v5208 = vadd.f32 0.0, %v5207
        %v5209 = vpop.f32.mrf.mxu0
        %v5210 = vpop.f32.mrf.mxu0
        %v5211 = vadd.f32 0.0, %v5210
        %v5212 = vpop.f32.mrf.mxu0
        %5213 = vmatprep.mubr.bf16.mxu0 %v4517
        %5214 = vmatmul.mubr.bf16.gmra.mxu0 %v4516
        %v5215 = vpop.f32.mrf.mxu0
        %v5216 = vadd.f32 0.0, %v5215
        %v5217 = vpop.f32.mrf.mxu0
        %v5218 = vpop.f32.mrf.mxu0
        %v5219 = vadd.f32 0.0, %v5218
        %v5220 = vpop.f32.mrf.mxu0
        %5221 = vmatprep.mubr.bf16.mxu0 %v4525
        %5222 = vmatmul.mubr.bf16.gmra.mxu0 %v4524
        %v5223 = vpop.f32.mrf.mxu0
        %v5224 = vadd.f32 0.0, %v5223
        %v5225 = vpop.f32.mrf.mxu0
        %v5226 = vpop.f32.mrf.mxu0
        %v5227 = vadd.f32 0.0, %v5226
        %v5228 = vpop.f32.mrf.mxu0
        %5229 = vmatprep.mubr.bf16.mxu0 %v4533
        %5230 = vmatmul.mubr.bf16.gmra.mxu0 %v4532
        %v5231 = vpop.f32.mrf.mxu0
        %v5232 = vadd.f32 0.0, %v5231
        %v5233 = vpop.f32.mrf.mxu0
        %v5234 = vpop.f32.mrf.mxu0
        %v5235 = vadd.f32 0.0, %v5234
        %v5236 = vpop.f32.mrf.mxu0
        %5237 = vmatprep.mubr.bf16.mxu0 %v4541
        %5238 = vmatmul.mubr.bf16.gmra.mxu0 %v4540
        %v5239 = vpop.f32.mrf.mxu0
        %v5240 = vadd.f32 0.0, %v5239
        %v5241 = vpop.f32.mrf.mxu0
        %v5242 = vpop.f32.mrf.mxu0
        %v5243 = vadd.f32 0.0, %v5242
        %v5244 = vpop.f32.mrf.mxu0
        %5245 = vmatprep.mubr.bf16.mxu0 %v4549
        %5246 = vmatmul.mubr.bf16.gmra.mxu0 %v4548
        %v5247 = vpop.f32.mrf.mxu0
        %v5248 = vadd.f32 0.0, %v5247
        %v5249 = vpop.f32.mrf.mxu0
        %v5250 = vpop.f32.mrf.mxu0
        %v5251 = vadd.f32 0.0, %v5250
        %v5252 = vpop.f32.mrf.mxu0
        %5253 = vmatprep.mubr.bf16.mxu0 %v4557
        %5254 = vmatmul.mubr.bf16.gmra.mxu0 %v4556
        %v5255 = vpop.f32.mrf.mxu0
        %v5256 = vadd.f32 0.0, %v5255
        %v5257 = vpop.f32.mrf.mxu0
        %v5258 = vpop.f32.mrf.mxu0
        %v5259 = vadd.f32 0.0, %v5258
        %v5260 = vpop.f32.mrf.mxu0
        %5261 = vmatprep.mubr.bf16.mxu0 %v4565
        %5262 = vmatmul.mubr.bf16.gmra.mxu0 %v4564
        %v5263 = vpop.f32.mrf.mxu0
        %v5264 = vadd.f32 0.0, %v5263
        %v5265 = vpop.f32.mrf.mxu0
        %v5266 = vpop.f32.mrf.mxu0
        %v5267 = vadd.f32 0.0, %v5266
        %v5268 = vpop.f32.mrf.mxu0
        %5269 = vmatprep.mubr.bf16.mxu0 %v4573
        %5270 = vmatmul.mubr.bf16.gmra.mxu0 %v4572
        %v5271 = vpop.f32.mrf.mxu0
        %v5272 = vadd.f32 0.0, %v5271
        %v5273 = vpop.f32.mrf.mxu0
        %v5274 = vpop.f32.mrf.mxu0
        %v5275 = vadd.f32 0.0, %v5274
        %v5276 = vpop.f32.mrf.mxu0
        %5277 = vdwg.mxu0
        %5278 = vmatprep.subr.bf16.mxu0 0
        %5279 = vmatpush1.bf16.msra.mxu0 %v5012
        %5280 = vmatprep.subr.bf16.mxu0 0
        %5281 = vmatpush1.bf16.msra.mxu0 %v5011
        %5282 = vmatprep.subr.bf16.mxu0 0
        %5283 = vmatpush1.bf16.msra.mxu0 %v5010
        %5284 = vmatprep.subr.bf16.mxu0 0
        %5285 = vmatpush1.bf16.msra.mxu0 %v5009
        %5286 = vmatprep.subr.bf16.mxu0 0
        %5287 = vmatpush1.bf16.msra.mxu0 %v5008
        %5288 = vmatprep.subr.bf16.mxu0 0
        %5289 = vmatpush1.bf16.msra.mxu0 %v5007
        %5290 = vmatprep.subr.bf16.mxu0 0
        %5291 = vmatpush1.bf16.msra.mxu0 %v5006
        %5292 = vmatprep.subr.bf16.mxu0 0
        %5293 = vmatpush1.bf16.msra.mxu0 %v5005
        %5294 = vmatprep.subr.bf16.mxu0 0
        %5295 = vmatpush2.bf16.msra.mxu0 %v5020
        %5296 = vmatprep.subr.bf16.mxu0 0
        %5297 = vmatpush2.bf16.msra.mxu0 %v5019
        %5298 = vmatprep.subr.bf16.mxu0 0
        %5299 = vmatpush2.bf16.msra.mxu0 %v5018
        %5300 = vmatprep.subr.bf16.mxu0 0
        %5301 = vmatpush2.bf16.msra.mxu0 %v5017
        %5302 = vmatprep.subr.bf16.mxu0 0
        %5303 = vmatpush2.bf16.msra.mxu0 %v5016
        %5304 = vmatprep.subr.bf16.mxu0 0
        %5305 = vmatpush2.bf16.msra.mxu0 %v5015
        %5306 = vmatprep.subr.bf16.mxu0 0
        %5307 = vmatpush2.bf16.msra.mxu0 %v5014
        %5308 = vmatprep.subr.bf16.mxu0 0
        %5309 = vmatpush2.bf16.msra.mxu0 %v5013
        %5310 = vmatprep.mubr.bf16.mxu0 %v4455
        %5311 = vmatmul.mubr.bf16.gmra.mxu0 %v4454
        %v5312 = vpop.f32.mrf.mxu0
        %v5313 = vadd.f32 %v5152, %v5312
        %v5314 = vpop.f32.mrf.mxu0
        %v5315 = vpop.f32.mrf.mxu0
        %v5316 = vadd.f32 %v5155, %v5315
        %v5317 = vpop.f32.mrf.mxu0
        %5318 = vmatprep.mubr.bf16.mxu0 %v4463
        %5319 = vmatmul.mubr.bf16.gmra.mxu0 %v4462
        %v5320 = vpop.f32.mrf.mxu0
        %v5321 = vadd.f32 %v5160, %v5320
        %v5322 = vpop.f32.mrf.mxu0
        %v5323 = vpop.f32.mrf.mxu0
        %v5324 = vadd.f32 %v5163, %v5323
        %v5325 = vpop.f32.mrf.mxu0
        %5326 = vmatprep.mubr.bf16.mxu0 %v4471
        %5327 = vmatmul.mubr.bf16.gmra.mxu0 %v4470
        %v5328 = vpop.f32.mrf.mxu0
        %v5329 = vadd.f32 %v5168, %v5328
        %v5330 = vpop.f32.mrf.mxu0
        %v5331 = vpop.f32.mrf.mxu0
        %v5332 = vadd.f32 %v5171, %v5331
        %v5333 = vpop.f32.mrf.mxu0
        %5334 = vmatprep.mubr.bf16.mxu0 %v4479
        %5335 = vmatmul.mubr.bf16.gmra.mxu0 %v4478
        %v5336 = vpop.f32.mrf.mxu0
        %v5337 = vadd.f32 %v5176, %v5336
        %v5338 = vpop.f32.mrf.mxu0
        %v5339 = vpop.f32.mrf.mxu0
        %v5340 = vadd.f32 %v5179, %v5339
        %v5341 = vpop.f32.mrf.mxu0
        %5342 = vmatprep.mubr.bf16.mxu0 %v4487
        %5343 = vmatmul.mubr.bf16.gmra.mxu0 %v4486
        %v5344 = vpop.f32.mrf.mxu0
        %v5345 = vadd.f32 %v5184, %v5344
        %v5346 = vpop.f32.mrf.mxu0
        %v5347 = vpop.f32.mrf.mxu0
        %v5348 = vadd.f32 %v5187, %v5347
        %v5349 = vpop.f32.mrf.mxu0
        %5350 = vmatprep.mubr.bf16.mxu0 %v4495
        %5351 = vmatmul.mubr.bf16.gmra.mxu0 %v4494
        %v5352 = vpop.f32.mrf.mxu0
        %v5353 = vadd.f32 %v5192, %v5352
        %v5354 = vpop.f32.mrf.mxu0
        %v5355 = vpop.f32.mrf.mxu0
        %v5356 = vadd.f32 %v5195, %v5355
        %v5357 = vpop.f32.mrf.mxu0
        %5358 = vmatprep.mubr.bf16.mxu0 %v4503
        %5359 = vmatmul.mubr.bf16.gmra.mxu0 %v4502
        %v5360 = vpop.f32.mrf.mxu0
        %v5361 = vadd.f32 %v5200, %v5360
        %v5362 = vpop.f32.mrf.mxu0
        %v5363 = vpop.f32.mrf.mxu0
        %v5364 = vadd.f32 %v5203, %v5363
        %v5365 = vpop.f32.mrf.mxu0
        %5366 = vmatprep.mubr.bf16.mxu0 %v4511
        %5367 = vmatmul.mubr.bf16.gmra.mxu0 %v4510
        %v5368 = vpop.f32.mrf.mxu0
        %v5369 = vadd.f32 %v5208, %v5368
        %v5370 = vpop.f32.mrf.mxu0
        %v5371 = vpop.f32.mrf.mxu0
        %v5372 = vadd.f32 %v5211, %v5371
        %v5373 = vpop.f32.mrf.mxu0
        %5374 = vmatprep.mubr.bf16.mxu0 %v4519
        %5375 = vmatmul.mubr.bf16.gmra.mxu0 %v4518
        %v5376 = vpop.f32.mrf.mxu0
        %v5377 = vadd.f32 %v5216, %v5376
        %v5378 = vpop.f32.mrf.mxu0
        %v5379 = vpop.f32.mrf.mxu0
        %v5380 = vadd.f32 %v5219, %v5379
        %v5381 = vpop.f32.mrf.mxu0
        %5382 = vmatprep.mubr.bf16.mxu0 %v4527
        %5383 = vmatmul.mubr.bf16.gmra.mxu0 %v4526
        %v5384 = vpop.f32.mrf.mxu0
        %v5385 = vadd.f32 %v5224, %v5384
        %v5386 = vpop.f32.mrf.mxu0
        %v5387 = vpop.f32.mrf.mxu0
        %v5388 = vadd.f32 %v5227, %v5387
        %v5389 = vpop.f32.mrf.mxu0
        %5390 = vmatprep.mubr.bf16.mxu0 %v4535
        %5391 = vmatmul.mubr.bf16.gmra.mxu0 %v4534
        %v5392 = vpop.f32.mrf.mxu0
        %v5393 = vadd.f32 %v5232, %v5392
        %v5394 = vpop.f32.mrf.mxu0
        %v5395 = vpop.f32.mrf.mxu0
        %v5396 = vadd.f32 %v5235, %v5395
        %v5397 = vpop.f32.mrf.mxu0
        %5398 = vmatprep.mubr.bf16.mxu0 %v4543
        %5399 = vmatmul.mubr.bf16.gmra.mxu0 %v4542
        %v5400 = vpop.f32.mrf.mxu0
        %v5401 = vadd.f32 %v5240, %v5400
        %v5402 = vpop.f32.mrf.mxu0
        %v5403 = vpop.f32.mrf.mxu0
        %v5404 = vadd.f32 %v5243, %v5403
        %v5405 = vpop.f32.mrf.mxu0
        %5406 = vmatprep.mubr.bf16.mxu0 %v4551
        %5407 = vmatmul.mubr.bf16.gmra.mxu0 %v4550
        %v5408 = vpop.f32.mrf.mxu0
        %v5409 = vadd.f32 %v5248, %v5408
        %v5410 = vpop.f32.mrf.mxu0
        %v5411 = vpop.f32.mrf.mxu0
        %v5412 = vadd.f32 %v5251, %v5411
        %v5413 = vpop.f32.mrf.mxu0
        %5414 = vmatprep.mubr.bf16.mxu0 %v4559
        %5415 = vmatmul.mubr.bf16.gmra.mxu0 %v4558
        %v5416 = vpop.f32.mrf.mxu0
        %v5417 = vadd.f32 %v5256, %v5416
        %v5418 = vpop.f32.mrf.mxu0
        %v5419 = vpop.f32.mrf.mxu0
        %v5420 = vadd.f32 %v5259, %v5419
        %v5421 = vpop.f32.mrf.mxu0
        %5422 = vmatprep.mubr.bf16.mxu0 %v4567
        %5423 = vmatmul.mubr.bf16.gmra.mxu0 %v4566
        %v5424 = vpop.f32.mrf.mxu0
        %v5425 = vadd.f32 %v5264, %v5424
        %v5426 = vpop.f32.mrf.mxu0
        %v5427 = vpop.f32.mrf.mxu0
        %v5428 = vadd.f32 %v5267, %v5427
        %v5429 = vpop.f32.mrf.mxu0
        %5430 = vmatprep.mubr.bf16.mxu0 %v4575
        %5431 = vmatmul.mubr.bf16.gmra.mxu0 %v4574
        %v5432 = vpop.f32.mrf.mxu0
        %v5433 = vadd.f32 %v5272, %v5432
        %v5434 = vpop.f32.mrf.mxu0
        %v5435 = vpop.f32.mrf.mxu0
        %v5436 = vadd.f32 %v5275, %v5435
        %v5437 = vpop.f32.mrf.mxu0
        %5438 = vdwg.mxu0
        %5439 = vmatprep.subr.bf16.mxu0 0
        %5440 = vmatpush1.bf16.msra.mxu0 %v5028
        %5441 = vmatprep.subr.bf16.mxu0 0
        %5442 = vmatpush1.bf16.msra.mxu0 %v5027
        %5443 = vmatprep.subr.bf16.mxu0 0
        %5444 = vmatpush1.bf16.msra.mxu0 %v5026
        %5445 = vmatprep.subr.bf16.mxu0 0
        %5446 = vmatpush1.bf16.msra.mxu0 %v5025
        %5447 = vmatprep.subr.bf16.mxu0 0
        %5448 = vmatpush1.bf16.msra.mxu0 %v5024
        %5449 = vmatprep.subr.bf16.mxu0 0
        %5450 = vmatpush1.bf16.msra.mxu0 %v5023
        %5451 = vmatprep.subr.bf16.mxu0 0
        %5452 = vmatpush1.bf16.msra.mxu0 %v5022
        %5453 = vmatprep.subr.bf16.mxu0 0
        %5454 = vmatpush1.bf16.msra.mxu0 %v5021
        %5455 = vmatprep.subr.bf16.mxu0 0
        %5456 = vmatpush2.bf16.msra.mxu0 %v5036
        %5457 = vmatprep.subr.bf16.mxu0 0
        %5458 = vmatpush2.bf16.msra.mxu0 %v5035
        %5459 = vmatprep.subr.bf16.mxu0 0
        %5460 = vmatpush2.bf16.msra.mxu0 %v5034
        %5461 = vmatprep.subr.bf16.mxu0 0
        %5462 = vmatpush2.bf16.msra.mxu0 %v5033
        %5463 = vmatprep.subr.bf16.mxu0 0
        %5464 = vmatpush2.bf16.msra.mxu0 %v5032
        %5465 = vmatprep.subr.bf16.mxu0 0
        %5466 = vmatpush2.bf16.msra.mxu0 %v5031
        %5467 = vmatprep.subr.bf16.mxu0 0
        %5468 = vmatpush2.bf16.msra.mxu0 %v5030
        %5469 = vmatprep.subr.bf16.mxu0 0
        %5470 = vmatpush2.bf16.msra.mxu0 %v5029
        %5471 = vmatprep.mubr.bf16.mxu0 %v4457
        %5472 = vmatmul.mubr.bf16.gmra.mxu0 %v4456
        %v5473 = vpop.f32.mrf.mxu0
        %v5474 = vadd.f32 %v5313, %v5473
        %v5475 = vpop.f32.mrf.mxu0
        %v5476 = vpop.f32.mrf.mxu0
        %v5477 = vadd.f32 %v5316, %v5476
        %v5478 = vpop.f32.mrf.mxu0
        %5479 = vmatprep.mubr.bf16.mxu0 %v4465
        %5480 = vmatmul.mubr.bf16.gmra.mxu0 %v4464
        %v5481 = vpop.f32.mrf.mxu0
        %v5482 = vadd.f32 %v5321, %v5481
        %v5483 = vpop.f32.mrf.mxu0
        %v5484 = vpop.f32.mrf.mxu0
        %v5485 = vadd.f32 %v5324, %v5484
        %v5486 = vpop.f32.mrf.mxu0
        %5487 = vmatprep.mubr.bf16.mxu0 %v4473
        %5488 = vmatmul.mubr.bf16.gmra.mxu0 %v4472
        %v5489 = vpop.f32.mrf.mxu0
        %v5490 = vadd.f32 %v5329, %v5489
        %v5491 = vpop.f32.mrf.mxu0
        %v5492 = vpop.f32.mrf.mxu0
        %v5493 = vadd.f32 %v5332, %v5492
        %v5494 = vpop.f32.mrf.mxu0
        %5495 = vmatprep.mubr.bf16.mxu0 %v4481
        %5496 = vmatmul.mubr.bf16.gmra.mxu0 %v4480
        %v5497 = vpop.f32.mrf.mxu0
        %v5498 = vadd.f32 %v5337, %v5497
        %v5499 = vpop.f32.mrf.mxu0
        %v5500 = vpop.f32.mrf.mxu0
        %v5501 = vadd.f32 %v5340, %v5500
        %v5502 = vpop.f32.mrf.mxu0
        %5503 = vmatprep.mubr.bf16.mxu0 %v4489
        %5504 = vmatmul.mubr.bf16.gmra.mxu0 %v4488
        %v5505 = vpop.f32.mrf.mxu0
        %v5506 = vadd.f32 %v5345, %v5505
        %v5507 = vpop.f32.mrf.mxu0
        %v5508 = vpop.f32.mrf.mxu0
        %v5509 = vadd.f32 %v5348, %v5508
        %v5510 = vpop.f32.mrf.mxu0
        %5511 = vmatprep.mubr.bf16.mxu0 %v4497
        %5512 = vmatmul.mubr.bf16.gmra.mxu0 %v4496
        %v5513 = vpop.f32.mrf.mxu0
        %v5514 = vadd.f32 %v5353, %v5513
        %v5515 = vpop.f32.mrf.mxu0
        %v5516 = vpop.f32.mrf.mxu0
        %v5517 = vadd.f32 %v5356, %v5516
        %v5518 = vpop.f32.mrf.mxu0
        %5519 = vmatprep.mubr.bf16.mxu0 %v4505
        %5520 = vmatmul.mubr.bf16.gmra.mxu0 %v4504
        %v5521 = vpop.f32.mrf.mxu0
        %v5522 = vadd.f32 %v5361, %v5521
        %v5523 = vpop.f32.mrf.mxu0
        %v5524 = vpop.f32.mrf.mxu0
        %v5525 = vadd.f32 %v5364, %v5524
        %v5526 = vpop.f32.mrf.mxu0
        %5527 = vmatprep.mubr.bf16.mxu0 %v4513
        %5528 = vmatmul.mubr.bf16.gmra.mxu0 %v4512
        %v5529 = vpop.f32.mrf.mxu0
        %v5530 = vadd.f32 %v5369, %v5529
        %v5531 = vpop.f32.mrf.mxu0
        %v5532 = vpop.f32.mrf.mxu0
        %v5533 = vadd.f32 %v5372, %v5532
        %v5534 = vpop.f32.mrf.mxu0
        %5535 = vmatprep.mubr.bf16.mxu0 %v4521
        %5536 = vmatmul.mubr.bf16.gmra.mxu0 %v4520
        %v5537 = vpop.f32.mrf.mxu0
        %v5538 = vadd.f32 %v5377, %v5537
        %v5539 = vpop.f32.mrf.mxu0
        %v5540 = vpop.f32.mrf.mxu0
        %v5541 = vadd.f32 %v5380, %v5540
        %v5542 = vpop.f32.mrf.mxu0
        %5543 = vmatprep.mubr.bf16.mxu0 %v4529
        %5544 = vmatmul.mubr.bf16.gmra.mxu0 %v4528
        %v5545 = vpop.f32.mrf.mxu0
        %v5546 = vadd.f32 %v5385, %v5545
        %v5547 = vpop.f32.mrf.mxu0
        %v5548 = vpop.f32.mrf.mxu0
        %v5549 = vadd.f32 %v5388, %v5548
        %v5550 = vpop.f32.mrf.mxu0
        %5551 = vmatprep.mubr.bf16.mxu0 %v4537
        %5552 = vmatmul.mubr.bf16.gmra.mxu0 %v4536
        %v5553 = vpop.f32.mrf.mxu0
        %v5554 = vadd.f32 %v5393, %v5553
        %v5555 = vpop.f32.mrf.mxu0
        %v5556 = vpop.f32.mrf.mxu0
        %v5557 = vadd.f32 %v5396, %v5556
        %v5558 = vpop.f32.mrf.mxu0
        %5559 = vmatprep.mubr.bf16.mxu0 %v4545
        %5560 = vmatmul.mubr.bf16.gmra.mxu0 %v4544
        %v5561 = vpop.f32.mrf.mxu0
        %v5562 = vadd.f32 %v5401, %v5561
        %v5563 = vpop.f32.mrf.mxu0
        %v5564 = vpop.f32.mrf.mxu0
        %v5565 = vadd.f32 %v5404, %v5564
        %v5566 = vpop.f32.mrf.mxu0
        %5567 = vmatprep.mubr.bf16.mxu0 %v4553
        %5568 = vmatmul.mubr.bf16.gmra.mxu0 %v4552
        %v5569 = vpop.f32.mrf.mxu0
        %v5570 = vadd.f32 %v5409, %v5569
        %v5571 = vpop.f32.mrf.mxu0
        %v5572 = vpop.f32.mrf.mxu0
        %v5573 = vadd.f32 %v5412, %v5572
        %v5574 = vpop.f32.mrf.mxu0
        %5575 = vmatprep.mubr.bf16.mxu0 %v4561
        %5576 = vmatmul.mubr.bf16.gmra.mxu0 %v4560
        %v5577 = vpop.f32.mrf.mxu0
        %v5578 = vadd.f32 %v5417, %v5577
        %v5579 = vpop.f32.mrf.mxu0
        %v5580 = vpop.f32.mrf.mxu0
        %v5581 = vadd.f32 %v5420, %v5580
        %v5582 = vpop.f32.mrf.mxu0
        %5583 = vmatprep.mubr.bf16.mxu0 %v4569
        %5584 = vmatmul.mubr.bf16.gmra.mxu0 %v4568
        %v5585 = vpop.f32.mrf.mxu0
        %v5586 = vadd.f32 %v5425, %v5585
        %v5587 = vpop.f32.mrf.mxu0
        %v5588 = vpop.f32.mrf.mxu0
        %v5589 = vadd.f32 %v5428, %v5588
        %v5590 = vpop.f32.mrf.mxu0
        %5591 = vmatprep.mubr.bf16.mxu0 %v4577
        %5592 = vmatmul.mubr.bf16.gmra.mxu0 %v4576
        %v5593 = vpop.f32.mrf.mxu0
        %v5594 = vadd.f32 %v5433, %v5593
        %v5595 = vpop.f32.mrf.mxu0
        %v5596 = vpop.f32.mrf.mxu0
        %v5597 = vadd.f32 %v5436, %v5596
        %v5598 = vpop.f32.mrf.mxu0
        %5599 = vdwg.mxu0
        %5600 = vmatprep.subr.bf16.mxu0 0
        %5601 = vmatpush1.bf16.msra.mxu0 %v5044
        %5602 = vmatprep.subr.bf16.mxu0 0
        %5603 = vmatpush1.bf16.msra.mxu0 %v5043
        %5604 = vmatprep.subr.bf16.mxu0 0
        %5605 = vmatpush1.bf16.msra.mxu0 %v5042
        %5606 = vmatprep.subr.bf16.mxu0 0
        %5607 = vmatpush1.bf16.msra.mxu0 %v5041
        %5608 = vmatprep.subr.bf16.mxu0 0
        %5609 = vmatpush1.bf16.msra.mxu0 %v5040
        %5610 = vmatprep.subr.bf16.mxu0 0
        %5611 = vmatpush1.bf16.msra.mxu0 %v5039
        %5612 = vmatprep.subr.bf16.mxu0 0
        %5613 = vmatpush1.bf16.msra.mxu0 %v5038
        %5614 = vmatprep.subr.bf16.mxu0 0
        %5615 = vmatpush1.bf16.msra.mxu0 %v5037
        %5616 = vmatprep.subr.bf16.mxu0 0
        %5617 = vmatpush2.bf16.msra.mxu0 %v5052
        %5618 = vmatprep.subr.bf16.mxu0 0
        %5619 = vmatpush2.bf16.msra.mxu0 %v5051
        %5620 = vmatprep.subr.bf16.mxu0 0
        %5621 = vmatpush2.bf16.msra.mxu0 %v5050
        %5622 = vmatprep.subr.bf16.mxu0 0
        %5623 = vmatpush2.bf16.msra.mxu0 %v5049
        %5624 = vmatprep.subr.bf16.mxu0 0
        %5625 = vmatpush2.bf16.msra.mxu0 %v5048
        %5626 = vmatprep.subr.bf16.mxu0 0
        %5627 = vmatpush2.bf16.msra.mxu0 %v5047
        %5628 = vmatprep.subr.bf16.mxu0 0
        %5629 = vmatpush2.bf16.msra.mxu0 %v5046
        %5630 = vmatprep.subr.bf16.mxu0 0
        %5631 = vmatpush2.bf16.msra.mxu0 %v5045
        %5632 = vmatprep.mubr.bf16.mxu0 %v4459
        %5633 = vmatmul.mubr.bf16.gmra.mxu0 %v4458
        %v5634 = vpop.f32.mrf.mxu0
        %v5635 = vadd.f32 %v5474, %v5634
        %v5636 = vpop.f32.mrf.mxu0
        %v5637 = vpop.f32.mrf.mxu0
        %v5638 = vadd.f32 %v5477, %v5637
        %v5639 = vpop.f32.mrf.mxu0
        %5640 = vmatprep.mubr.bf16.mxu0 %v4467
        %5641 = vmatmul.mubr.bf16.gmra.mxu0 %v4466
        %v5642 = vpop.f32.mrf.mxu0
        %v5643 = vadd.f32 %v5482, %v5642
        %v5644 = vpop.f32.mrf.mxu0
        %v5645 = vpop.f32.mrf.mxu0
        %v5646 = vadd.f32 %v5485, %v5645
        %v5647 = vpop.f32.mrf.mxu0
        %5648 = vmatprep.mubr.bf16.mxu0 %v4475
        %5649 = vmatmul.mubr.bf16.gmra.mxu0 %v4474
        %v5650 = vpop.f32.mrf.mxu0
        %v5651 = vadd.f32 %v5490, %v5650
        %v5652 = vpop.f32.mrf.mxu0
        %v5653 = vpop.f32.mrf.mxu0
        %v5654 = vadd.f32 %v5493, %v5653
        %v5655 = vpop.f32.mrf.mxu0
        %5656 = vmatprep.mubr.bf16.mxu0 %v4483
        %5657 = vmatmul.mubr.bf16.gmra.mxu0 %v4482
        %v5658 = vpop.f32.mrf.mxu0
        %v5659 = vadd.f32 %v5498, %v5658
        %v5660 = vpop.f32.mrf.mxu0
        %v5661 = vpop.f32.mrf.mxu0
        %v5662 = vadd.f32 %v5501, %v5661
        %v5663 = vpop.f32.mrf.mxu0
        %5664 = vmatprep.mubr.bf16.mxu0 %v4491
        %5665 = vmatmul.mubr.bf16.gmra.mxu0 %v4490
        %v5666 = vpop.f32.mrf.mxu0
        %v5667 = vadd.f32 %v5506, %v5666
        %v5668 = vpop.f32.mrf.mxu0
        %v5669 = vpop.f32.mrf.mxu0
        %v5670 = vadd.f32 %v5509, %v5669
        %v5671 = vpop.f32.mrf.mxu0
        %5672 = vmatprep.mubr.bf16.mxu0 %v4499
        %5673 = vmatmul.mubr.bf16.gmra.mxu0 %v4498
        %v5674 = vpop.f32.mrf.mxu0
        %v5675 = vadd.f32 %v5514, %v5674
        %v5676 = vpop.f32.mrf.mxu0
        %v5677 = vpop.f32.mrf.mxu0
        %v5678 = vadd.f32 %v5517, %v5677
        %v5679 = vpop.f32.mrf.mxu0
        %5680 = vmatprep.mubr.bf16.mxu0 %v4507
        %5681 = vmatmul.mubr.bf16.gmra.mxu0 %v4506
        %v5682 = vpop.f32.mrf.mxu0
        %v5683 = vadd.f32 %v5522, %v5682
        %v5684 = vpop.f32.mrf.mxu0
        %v5685 = vpop.f32.mrf.mxu0
        %v5686 = vadd.f32 %v5525, %v5685
        %v5687 = vpop.f32.mrf.mxu0
        %5688 = vmatprep.mubr.bf16.mxu0 %v4515
        %5689 = vmatmul.mubr.bf16.gmra.mxu0 %v4514
        %v5690 = vpop.f32.mrf.mxu0
        %v5691 = vadd.f32 %v5530, %v5690
        %v5692 = vpop.f32.mrf.mxu0
        %v5693 = vpop.f32.mrf.mxu0
        %v5694 = vadd.f32 %v5533, %v5693
        %v5695 = vpop.f32.mrf.mxu0
        %5696 = vmatprep.mubr.bf16.mxu0 %v4523
        %5697 = vmatmul.mubr.bf16.gmra.mxu0 %v4522
        %v5698 = vpop.f32.mrf.mxu0
        %v5699 = vadd.f32 %v5538, %v5698
        %v5700 = vpop.f32.mrf.mxu0
        %v5701 = vpop.f32.mrf.mxu0
        %v5702 = vadd.f32 %v5541, %v5701
        %v5703 = vpop.f32.mrf.mxu0
        %5704 = vmatprep.mubr.bf16.mxu0 %v4531
        %5705 = vmatmul.mubr.bf16.gmra.mxu0 %v4530
        %v5706 = vpop.f32.mrf.mxu0
        %v5707 = vadd.f32 %v5546, %v5706
        %v5708 = vpop.f32.mrf.mxu0
        %v5709 = vpop.f32.mrf.mxu0
        %v5710 = vadd.f32 %v5549, %v5709
        %v5711 = vpop.f32.mrf.mxu0
        %5712 = vmatprep.mubr.bf16.mxu0 %v4539
        %5713 = vmatmul.mubr.bf16.gmra.mxu0 %v4538
        %v5714 = vpop.f32.mrf.mxu0
        %v5715 = vadd.f32 %v5554, %v5714
        %v5716 = vpop.f32.mrf.mxu0
        %v5717 = vpop.f32.mrf.mxu0
        %v5718 = vadd.f32 %v5557, %v5717
        %v5719 = vpop.f32.mrf.mxu0
        %5720 = vmatprep.mubr.bf16.mxu0 %v4547
        %5721 = vmatmul.mubr.bf16.gmra.mxu0 %v4546
        %v5722 = vpop.f32.mrf.mxu0
        %v5723 = vadd.f32 %v5562, %v5722
        %v5724 = vpop.f32.mrf.mxu0
        %v5725 = vpop.f32.mrf.mxu0
        %v5726 = vadd.f32 %v5565, %v5725
        %v5727 = vpop.f32.mrf.mxu0
        %5728 = vmatprep.mubr.bf16.mxu0 %v4555
        %5729 = vmatmul.mubr.bf16.gmra.mxu0 %v4554
        %v5730 = vpop.f32.mrf.mxu0
        %v5731 = vadd.f32 %v5570, %v5730
        %v5732 = vpop.f32.mrf.mxu0
        %v5733 = vpop.f32.mrf.mxu0
        %v5734 = vadd.f32 %v5573, %v5733
        %v5735 = vpop.f32.mrf.mxu0
        %5736 = vmatprep.mubr.bf16.mxu0 %v4563
        %5737 = vmatmul.mubr.bf16.gmra.mxu0 %v4562
        %v5738 = vpop.f32.mrf.mxu0
        %v5739 = vadd.f32 %v5578, %v5738
        %v5740 = vpop.f32.mrf.mxu0
        %v5741 = vpop.f32.mrf.mxu0
        %v5742 = vadd.f32 %v5581, %v5741
        %v5743 = vpop.f32.mrf.mxu0
        %5744 = vmatprep.mubr.bf16.mxu0 %v4571
        %5745 = vmatmul.mubr.bf16.gmra.mxu0 %v4570
        %v5746 = vpop.f32.mrf.mxu0
        %v5747 = vadd.f32 %v5586, %v5746
        %v5748 = vpop.f32.mrf.mxu0
        %v5749 = vpop.f32.mrf.mxu0
        %v5750 = vadd.f32 %v5589, %v5749
        %v5751 = vpop.f32.mrf.mxu0
        %5752 = vmatprep.mubr.bf16.mxu0 %v4579
        %5753 = vmatmul.mubr.bf16.gmra.mxu0 %v4578
        %v5754 = vpop.f32.mrf.mxu0
        %v5755 = vadd.f32 %v5594, %v5754
        %v5756 = vpop.f32.mrf.mxu0
        %v5757 = vpop.f32.mrf.mxu0
        %v5758 = vadd.f32 %v5597, %v5757
        %v5759 = vpop.f32.mrf.mxu0
        %5760 = vdwg.mxu0
        %v5785 = vunpack.c.l.b16 %v4581
        %v5786 = vunpack.c.l.b16 %v4582
        %v5787 = vunpack.c.l.b16 %v4583
        %v5788 = vunpack.c.l.b16 %v4584
        %v5789 = vunpack.c.l.b16 %v4585
        %v5790 = vunpack.c.l.b16 %v4586
        %v5791 = vunpack.c.l.b16 %v4587
        %v5792 = vunpack.c.l.b16 %v4588
        %v5793 = vunpack.c.l.b16 %v4589
        %v5794 = vunpack.c.l.b16 %v4590
        %v5795 = vunpack.c.l.b16 %v4591
        %v5796 = vunpack.c.l.b16 %v4592
        %v5797 = vunpack.c.l.b16 %v4593
        %v5798 = vunpack.c.l.b16 %v4594
        %v5799 = vunpack.c.l.b16 %v4595
        %v5800 = vunpack.c.l.b16 %v4596
        %v5801 = vunpack.c.l.b16 %v4597
        %v5802 = vunpack.c.l.b16 %v4598
        %v5803 = vunpack.c.l.b16 %v4599
        %v5804 = vunpack.c.l.b16 %v4600
        %v5805 = vunpack.c.l.b16 %v4601
        %v5806 = vunpack.c.l.b16 %v4602
        %v5807 = vunpack.c.l.b16 %v4603
        %v5808 = vunpack.c.l.b16 %v4604
        %v5809 = vpack.c.b16 %v5786, %v5785
        %v5810 = vpack.c.b16 %v5788, %v5787
        %v5811 = vpack.c.b16 %v5790, %v5789
        %v5812 = vpack.c.b16 %v5792, %v5791
        %v5813 = vpack.c.b16 %v5794, %v5793
        %v5814 = vpack.c.b16 %v5796, %v5795
        %v5815 = vpack.c.b16 %v5798, %v5797
        %v5816 = vpack.c.b16 %v5800, %v5799
        %v5817 = vpack.c.b16 %v5802, %v5801
        %v5818 = vpack.c.b16 %v5804, %v5803
        %v5819 = vpack.c.b16 %v5806, %v5805
        %v5820 = vpack.c.b16 %v5808, %v5807
        %5833 = vmatprep.subr.bf16.mxu0 0
        %5834 = vmatpush1.bf16.msra.mxu0 %v5816
        %5835 = vmatprep.subr.bf16.mxu0 0
        %5836 = vmatpush1.bf16.msra.mxu0 %v5815
        %5837 = vmatprep.subr.bf16.mxu0 0
        %5838 = vmatpush1.bf16.msra.mxu0 %v5814
        %5839 = vmatprep.subr.bf16.mxu0 0
        %5840 = vmatpush1.bf16.msra.mxu0 %v5813
        %5841 = vmatprep.subr.bf16.mxu0 0
        %5842 = vmatpush1.bf16.msra.mxu0 %v5812
        %5843 = vmatprep.subr.bf16.mxu0 0
        %5844 = vmatpush1.bf16.msra.mxu0 %v5811
        %5845 = vmatprep.subr.bf16.mxu0 0
        %5846 = vmatpush1.bf16.msra.mxu0 %v5810
        %5847 = vmatprep.subr.bf16.mxu0 0
        %5848 = vmatpush1.bf16.msra.mxu0 %v5809
        %5849 = vmatprep.subr.bf16.mxu0 0
        %5850 = vmatpush2.bf16.msra.mxu0 0
        %5851 = vmatprep.subr.bf16.mxu0 0
        %5852 = vmatpush2.bf16.msra.mxu0 0
        %5853 = vmatprep.subr.bf16.mxu0 0
        %5854 = vmatpush2.bf16.msra.mxu0 0
        %5855 = vmatprep.subr.bf16.mxu0 0
        %5856 = vmatpush2.bf16.msra.mxu0 0
        %5857 = vmatprep.subr.bf16.mxu0 0
        %5858 = vmatpush2.bf16.msra.mxu0 %v5820
        %5859 = vmatprep.subr.bf16.mxu0 0
        %5860 = vmatpush2.bf16.msra.mxu0 %v5819
        %5861 = vmatprep.subr.bf16.mxu0 0
        %5862 = vmatpush2.bf16.msra.mxu0 %v5818
        %5863 = vmatprep.subr.bf16.mxu0 0
        %5864 = vmatpush2.bf16.msra.mxu0 %v5817
        %5865 = vmatprep.mubr.bf16.mxu0 %v3377
        %5866 = vmatmul.mubr.bf16.gmra.mxu0 %v595
        %v5867 = vpop.f32.mrf.mxu0
        %v5868 = vadd.f32 %v5635, %v5867
        %v5869 = vpop.f32.mrf.mxu0
        %v5870 = vpop.f32.mrf.mxu0
        %v5871 = vadd.f32 %v5638, %v5870
        %v5872 = vpop.f32.mrf.mxu0
        %5873 = vmatprep.mubr.bf16.mxu0 %v3380
        %5874 = vmatmul.mubr.bf16.gmra.mxu0 %v597
        %v5875 = vpop.f32.mrf.mxu0
        %v5876 = vadd.f32 %v5643, %v5875
        %v5877 = vpop.f32.mrf.mxu0
        %v5878 = vpop.f32.mrf.mxu0
        %v5879 = vadd.f32 %v5646, %v5878
        %v5880 = vpop.f32.mrf.mxu0
        %5881 = vmatprep.mubr.bf16.mxu0 %v3383
        %5882 = vmatmul.mubr.bf16.gmra.mxu0 %v599
        %v5883 = vpop.f32.mrf.mxu0
        %v5884 = vadd.f32 %v5651, %v5883
        %v5885 = vpop.f32.mrf.mxu0
        %v5886 = vpop.f32.mrf.mxu0
        %v5887 = vadd.f32 %v5654, %v5886
        %v5888 = vpop.f32.mrf.mxu0
        %5889 = vmatprep.mubr.bf16.mxu0 %v3386
        %5890 = vmatmul.mubr.bf16.gmra.mxu0 %v601
        %v5891 = vpop.f32.mrf.mxu0
        %v5892 = vadd.f32 %v5659, %v5891
        %v5893 = vpop.f32.mrf.mxu0
        %v5894 = vpop.f32.mrf.mxu0
        %v5895 = vadd.f32 %v5662, %v5894
        %v5896 = vpop.f32.mrf.mxu0
        %5897 = vmatprep.mubr.bf16.mxu0 %v3389
        %5898 = vmatmul.mubr.bf16.gmra.mxu0 %v603
        %v5899 = vpop.f32.mrf.mxu0
        %v5900 = vadd.f32 %v5667, %v5899
        %v5901 = vpop.f32.mrf.mxu0
        %v5902 = vpop.f32.mrf.mxu0
        %v5903 = vadd.f32 %v5670, %v5902
        %v5904 = vpop.f32.mrf.mxu0
        %5905 = vmatprep.mubr.bf16.mxu0 %v3392
        %5906 = vmatmul.mubr.bf16.gmra.mxu0 %v605
        %v5907 = vpop.f32.mrf.mxu0
        %v5908 = vadd.f32 %v5675, %v5907
        %v5909 = vpop.f32.mrf.mxu0
        %v5910 = vpop.f32.mrf.mxu0
        %v5911 = vadd.f32 %v5678, %v5910
        %v5912 = vpop.f32.mrf.mxu0
        %5913 = vmatprep.mubr.bf16.mxu0 %v3395
        %5914 = vmatmul.mubr.bf16.gmra.mxu0 %v607
        %v5915 = vpop.f32.mrf.mxu0
        %v5916 = vadd.f32 %v5683, %v5915
        %v5917 = vpop.f32.mrf.mxu0
        %v5918 = vpop.f32.mrf.mxu0
        %v5919 = vadd.f32 %v5686, %v5918
        %v5920 = vpop.f32.mrf.mxu0
        %5921 = vmatprep.mubr.bf16.mxu0 %v3398
        %5922 = vmatmul.mubr.bf16.gmra.mxu0 %v609
        %v5923 = vpop.f32.mrf.mxu0
        %v5924 = vadd.f32 %v5691, %v5923
        %v5925 = vpop.f32.mrf.mxu0
        %v5926 = vpop.f32.mrf.mxu0
        %v5927 = vadd.f32 %v5694, %v5926
        %v5928 = vpop.f32.mrf.mxu0
        %5929 = vmatprep.mubr.bf16.mxu0 %v3401
        %5930 = vmatmul.mubr.bf16.gmra.mxu0 %v611
        %v5931 = vpop.f32.mrf.mxu0
        %v5932 = vadd.f32 %v5699, %v5931
        %v5933 = vpop.f32.mrf.mxu0
        %v5934 = vpop.f32.mrf.mxu0
        %v5935 = vadd.f32 %v5702, %v5934
        %v5936 = vpop.f32.mrf.mxu0
        %5937 = vmatprep.mubr.bf16.mxu0 %v3404
        %5938 = vmatmul.mubr.bf16.gmra.mxu0 %v613
        %v5939 = vpop.f32.mrf.mxu0
        %v5940 = vadd.f32 %v5707, %v5939
        %v5941 = vpop.f32.mrf.mxu0
        %v5942 = vpop.f32.mrf.mxu0
        %v5943 = vadd.f32 %v5710, %v5942
        %v5944 = vpop.f32.mrf.mxu0
        %5945 = vmatprep.mubr.bf16.mxu0 %v3407
        %5946 = vmatmul.mubr.bf16.gmra.mxu0 %v615
        %v5947 = vpop.f32.mrf.mxu0
        %v5948 = vadd.f32 %v5715, %v5947
        %v5949 = vpop.f32.mrf.mxu0
        %v5950 = vpop.f32.mrf.mxu0
        %v5951 = vadd.f32 %v5718, %v5950
        %v5952 = vpop.f32.mrf.mxu0
        %5953 = vmatprep.mubr.bf16.mxu0 %v3410
        %5954 = vmatmul.mubr.bf16.gmra.mxu0 %v617
        %v5955 = vpop.f32.mrf.mxu0
        %v5956 = vadd.f32 %v5723, %v5955
        %v5957 = vpop.f32.mrf.mxu0
        %v5958 = vpop.f32.mrf.mxu0
        %v5959 = vadd.f32 %v5726, %v5958
        %v5960 = vpop.f32.mrf.mxu0
        %5961 = vmatprep.mubr.bf16.mxu0 %v3413
        %5962 = vmatmul.mubr.bf16.gmra.mxu0 %v619
        %v5963 = vpop.f32.mrf.mxu0
        %v5964 = vadd.f32 %v5731, %v5963
        %v5965 = vpop.f32.mrf.mxu0
        %v5966 = vpop.f32.mrf.mxu0
        %v5967 = vadd.f32 %v5734, %v5966
        %v5968 = vpop.f32.mrf.mxu0
        %5969 = vmatprep.mubr.bf16.mxu0 %v3416
        %5970 = vmatmul.mubr.bf16.gmra.mxu0 %v621
        %v5971 = vpop.f32.mrf.mxu0
        %v5972 = vadd.f32 %v5739, %v5971
        %v5973 = vpop.f32.mrf.mxu0
        %v5974 = vpop.f32.mrf.mxu0
        %v5975 = vadd.f32 %v5742, %v5974
        %v5976 = vpop.f32.mrf.mxu0
        %5977 = vmatprep.mubr.bf16.mxu0 %v3419
        %5978 = vmatmul.mubr.bf16.gmra.mxu0 %v623
        %v5979 = vpop.f32.mrf.mxu0
        %v5980 = vadd.f32 %v5747, %v5979
        %v5981 = vpop.f32.mrf.mxu0
        %v5982 = vpop.f32.mrf.mxu0
        %v5983 = vadd.f32 %v5750, %v5982
        %v5984 = vpop.f32.mrf.mxu0
        %5985 = vmatprep.mubr.bf16.mxu0 %v3422
        %5986 = vmatmul.mubr.bf16.gmra.mxu0 %v625
        %v5987 = vpop.f32.mrf.mxu0
        %v5988 = vadd.f32 %v5755, %v5987
        %v5989 = vpop.f32.mrf.mxu0
        %v5990 = vpop.f32.mrf.mxu0
        %v5991 = vadd.f32 %v5758, %v5990
        %v5992 = vpop.f32.mrf.mxu0
        %5993 = vdwg.mxu0
        %v5994 = vlaneseq
        %v5995 = vshrl.u32 %v5994, 7
        %v5996 = vsub.s32 0, %v5995
        %v5997 = vrot.slane %v4580, %v5996
        %v5998 = vadd.f32 %v5868, %v5997
        %v5999 = vadd.f32 %v5871, %v5997
        %v6000 = vadd.f32 %v5876, %v5997
        %v6001 = vadd.f32 %v5879, %v5997
        %v6002 = vadd.f32 %v5884, %v5997
        %v6003 = vadd.f32 %v5887, %v5997
        %v6004 = vadd.f32 %v5892, %v5997
        %v6005 = vadd.f32 %v5895, %v5997
        %v6006 = vadd.f32 %v5900, %v5997
        %v6007 = vadd.f32 %v5903, %v5997
        %v6008 = vadd.f32 %v5908, %v5997
        %v6009 = vadd.f32 %v5911, %v5997
        %v6010 = vadd.f32 %v5916, %v5997
        %v6011 = vadd.f32 %v5919, %v5997
        %v6012 = vadd.f32 %v5924, %v5997
        %v6013 = vadd.f32 %v5927, %v5997
        %v6014 = vadd.f32 %v5932, %v5997
        %v6015 = vadd.f32 %v5935, %v5997
        %v6016 = vadd.f32 %v5940, %v5997
        %v6017 = vadd.f32 %v5943, %v5997
        %v6018 = vadd.f32 %v5948, %v5997
        %v6019 = vadd.f32 %v5951, %v5997
        %v6020 = vadd.f32 %v5956, %v5997
        %v6021 = vadd.f32 %v5959, %v5997
        %v6022 = vadd.f32 %v5964, %v5997
        %v6023 = vadd.f32 %v5967, %v5997
        %v6024 = vadd.f32 %v5972, %v5997
        %v6025 = vadd.f32 %v5975, %v5997
        %v6026 = vadd.f32 %v5980, %v5997
        %v6027 = vadd.f32 %v5983, %v5997
        %v6028 = vadd.f32 %v5988, %v5997
        %v6029 = vadd.f32 %v5991, %v5997
        %v6030 = vadd.f32 %v5998, %v531
        %v6031 = vadd.f32 %v5999, %v532
        %v6032 = vadd.f32 %v6000, %v533
        %v6033 = vadd.f32 %v6001, %v534
        %v6034 = vadd.f32 %v6002, %v535
        %v6035 = vadd.f32 %v6003, %v536
        %v6036 = vadd.f32 %v6004, %v537
        %v6037 = vadd.f32 %v6005, %v538
        %v6038 = vadd.f32 %v6006, %v539
        %v6039 = vadd.f32 %v6007, %v540
        %v6040 = vadd.f32 %v6008, %v541
        %v6041 = vadd.f32 %v6009, %v542
        %v6042 = vadd.f32 %v6010, %v543
        %v6043 = vadd.f32 %v6011, %v544
        %v6044 = vadd.f32 %v6012, %v545
        %v6045 = vadd.f32 %v6013, %v546
        %v6046 = vadd.f32 %v6014, %v547
        %v6047 = vadd.f32 %v6015, %v548
        %v6048 = vadd.f32 %v6016, %v549
        %v6049 = vadd.f32 %v6017, %v550
        %v6050 = vadd.f32 %v6018, %v551
        %v6051 = vadd.f32 %v6019, %v552
        %v6052 = vadd.f32 %v6020, %v553
        %v6053 = vadd.f32 %v6021, %v554
        %v6054 = vadd.f32 %v6022, %v555
        %v6055 = vadd.f32 %v6023, %v556
        %v6056 = vadd.f32 %v6024, %v557
        %v6057 = vadd.f32 %v6025, %v558
        %v6058 = vadd.f32 %v6026, %v559
        %v6059 = vadd.f32 %v6027, %v560
        %v6060 = vadd.f32 %v6028, %v561
        %v6061 = vadd.f32 %v6029, %v562
        %6062 = vadd.xlane.f32.xlu0 %v6030
        %v6063 = vpop.xlane.xlu0 %6062
        %6064 = vadd.xlane.f32.xlu0 %v6031
        %v6065 = vpop.xlane.xlu0 %6064
        %6066 = vadd.xlane.f32.xlu0 %v6032
        %v6067 = vpop.xlane.xlu0 %6066
        %6068 = vadd.xlane.f32.xlu0 %v6033
        %v6069 = vpop.xlane.xlu0 %6068
        %6070 = vadd.xlane.f32.xlu0 %v6034
        %v6071 = vpop.xlane.xlu0 %6070
        %6072 = vadd.xlane.f32.xlu0 %v6035
        %v6073 = vpop.xlane.xlu0 %6072
        %6074 = vadd.xlane.f32.xlu0 %v6036
        %v6075 = vpop.xlane.xlu0 %6074
        %6076 = vadd.xlane.f32.xlu0 %v6037
        %v6077 = vpop.xlane.xlu0 %6076
        %6078 = vadd.xlane.f32.xlu0 %v6038
        %v6079 = vpop.xlane.xlu0 %6078
        %6080 = vadd.xlane.f32.xlu0 %v6039
        %v6081 = vpop.xlane.xlu0 %6080
        %6082 = vadd.xlane.f32.xlu0 %v6040
        %v6083 = vpop.xlane.xlu0 %6082
        %6084 = vadd.xlane.f32.xlu0 %v6041
        %v6085 = vpop.xlane.xlu0 %6084
        %6086 = vadd.xlane.f32.xlu0 %v6042
        %v6087 = vpop.xlane.xlu0 %6086
        %6088 = vadd.xlane.f32.xlu0 %v6043
        %v6089 = vpop.xlane.xlu0 %6088
        %6090 = vadd.xlane.f32.xlu0 %v6044
        %v6091 = vpop.xlane.xlu0 %6090
        %6092 = vadd.xlane.f32.xlu0 %v6045
        %v6093 = vpop.xlane.xlu0 %6092
        %6094 = vadd.xlane.f32.xlu0 %v6046
        %v6095 = vpop.xlane.xlu0 %6094
        %6096 = vadd.xlane.f32.xlu0 %v6047
        %v6097 = vpop.xlane.xlu0 %6096
        %6098 = vadd.xlane.f32.xlu0 %v6048
        %v6099 = vpop.xlane.xlu0 %6098
        %6100 = vadd.xlane.f32.xlu0 %v6049
        %v6101 = vpop.xlane.xlu0 %6100
        %6102 = vadd.xlane.f32.xlu0 %v6050
        %v6103 = vpop.xlane.xlu0 %6102
        %6104 = vadd.xlane.f32.xlu0 %v6051
        %v6105 = vpop.xlane.xlu0 %6104
        %6106 = vadd.xlane.f32.xlu0 %v6052
        %v6107 = vpop.xlane.xlu0 %6106
        %6108 = vadd.xlane.f32.xlu0 %v6053
        %v6109 = vpop.xlane.xlu0 %6108
        %6110 = vadd.xlane.f32.xlu0 %v6054
        %v6111 = vpop.xlane.xlu0 %6110
        %6112 = vadd.xlane.f32.xlu0 %v6055
        %v6113 = vpop.xlane.xlu0 %6112
        %6114 = vadd.xlane.f32.xlu0 %v6056
        %v6115 = vpop.xlane.xlu0 %6114
        %6116 = vadd.xlane.f32.xlu0 %v6057
        %v6117 = vpop.xlane.xlu0 %6116
        %6118 = vadd.xlane.f32.xlu0 %v6058
        %v6119 = vpop.xlane.xlu0 %6118
        %6120 = vadd.xlane.f32.xlu0 %v6059
        %v6121 = vpop.xlane.xlu0 %6120
        %6122 = vadd.xlane.f32.xlu0 %v6060
        %v6123 = vpop.xlane.xlu0 %6122
        %6124 = vadd.xlane.f32.xlu0 %v6061
        %v6125 = vpop.xlane.xlu0 %6124
        %v6126 = vrcp.pop 128.0
        %v6127 = vmul.f32 %v6063, %v6126
        %v6128 = vmul.f32 %v6065, %v6126
        %v6129 = vmul.f32 %v6067, %v6126
        %v6130 = vmul.f32 %v6069, %v6126
        %v6131 = vmul.f32 %v6071, %v6126
        %v6132 = vmul.f32 %v6073, %v6126
        %v6133 = vmul.f32 %v6075, %v6126
        %v6134 = vmul.f32 %v6077, %v6126
        %v6135 = vmul.f32 %v6079, %v6126
        %v6136 = vmul.f32 %v6081, %v6126
        %v6137 = vmul.f32 %v6083, %v6126
        %v6138 = vmul.f32 %v6085, %v6126
        %v6139 = vmul.f32 %v6087, %v6126
        %v6140 = vmul.f32 %v6089, %v6126
        %v6141 = vmul.f32 %v6091, %v6126
        %v6142 = vmul.f32 %v6093, %v6126
        %v6143 = vmul.f32 %v6095, %v6126
        %v6144 = vmul.f32 %v6097, %v6126
        %v6145 = vmul.f32 %v6099, %v6126
        %v6146 = vmul.f32 %v6101, %v6126
        %v6147 = vmul.f32 %v6103, %v6126
        %v6148 = vmul.f32 %v6105, %v6126
        %v6149 = vmul.f32 %v6107, %v6126
        %v6150 = vmul.f32 %v6109, %v6126
        %v6151 = vmul.f32 %v6111, %v6126
        %v6152 = vmul.f32 %v6113, %v6126
        %v6153 = vmul.f32 %v6115, %v6126
        %v6154 = vmul.f32 %v6117, %v6126
        %v6155 = vmul.f32 %v6119, %v6126
        %v6156 = vmul.f32 %v6121, %v6126
        %v6157 = vmul.f32 %v6123, %v6126
        %v6158 = vmul.f32 %v6125, %v6126
        %v6159 = vsub.f32 %v6030, %v6127
        %v6160 = vsub.f32 %v6031, %v6128
        %v6161 = vsub.f32 %v6032, %v6129
        %v6162 = vsub.f32 %v6033, %v6130
        %v6163 = vsub.f32 %v6034, %v6131
        %v6164 = vsub.f32 %v6035, %v6132
        %v6165 = vsub.f32 %v6036, %v6133
        %v6166 = vsub.f32 %v6037, %v6134
        %v6167 = vsub.f32 %v6038, %v6135
        %v6168 = vsub.f32 %v6039, %v6136
        %v6169 = vsub.f32 %v6040, %v6137
        %v6170 = vsub.f32 %v6041, %v6138
        %v6171 = vsub.f32 %v6042, %v6139
        %v6172 = vsub.f32 %v6043, %v6140
        %v6173 = vsub.f32 %v6044, %v6141
        %v6174 = vsub.f32 %v6045, %v6142
        %v6175 = vsub.f32 %v6046, %v6143
        %v6176 = vsub.f32 %v6047, %v6144
        %v6177 = vsub.f32 %v6048, %v6145
        %v6178 = vsub.f32 %v6049, %v6146
        %v6179 = vsub.f32 %v6050, %v6147
        %v6180 = vsub.f32 %v6051, %v6148
        %v6181 = vsub.f32 %v6052, %v6149
        %v6182 = vsub.f32 %v6053, %v6150
        %v6183 = vsub.f32 %v6054, %v6151
        %v6184 = vsub.f32 %v6055, %v6152
        %v6185 = vsub.f32 %v6056, %v6153
        %v6186 = vsub.f32 %v6057, %v6154
        %v6187 = vsub.f32 %v6058, %v6155
        %v6188 = vsub.f32 %v6059, %v6156
        %v6189 = vsub.f32 %v6060, %v6157
        %v6190 = vsub.f32 %v6061, %v6158
        %v6191 = vmul.f32 %v6159, %v6159
        %v6192 = vmul.f32 %v6160, %v6160
        %v6193 = vmul.f32 %v6161, %v6161
        %v6194 = vmul.f32 %v6162, %v6162
        %v6195 = vmul.f32 %v6163, %v6163
        %v6196 = vmul.f32 %v6164, %v6164
        %v6197 = vmul.f32 %v6165, %v6165
        %v6198 = vmul.f32 %v6166, %v6166
        %v6199 = vmul.f32 %v6167, %v6167
        %v6200 = vmul.f32 %v6168, %v6168
        %v6201 = vmul.f32 %v6169, %v6169
        %v6202 = vmul.f32 %v6170, %v6170
        %v6203 = vmul.f32 %v6171, %v6171
        %v6204 = vmul.f32 %v6172, %v6172
        %v6205 = vmul.f32 %v6173, %v6173
        %v6206 = vmul.f32 %v6174, %v6174
        %v6207 = vmul.f32 %v6175, %v6175
        %v6208 = vmul.f32 %v6176, %v6176
        %v6209 = vmul.f32 %v6177, %v6177
        %v6210 = vmul.f32 %v6178, %v6178
        %v6211 = vmul.f32 %v6179, %v6179
        %v6212 = vmul.f32 %v6180, %v6180
        %v6213 = vmul.f32 %v6181, %v6181
        %v6214 = vmul.f32 %v6182, %v6182
        %v6215 = vmul.f32 %v6183, %v6183
        %v6216 = vmul.f32 %v6184, %v6184
        %v6217 = vmul.f32 %v6185, %v6185
        %v6218 = vmul.f32 %v6186, %v6186
        %v6219 = vmul.f32 %v6187, %v6187
        %v6220 = vmul.f32 %v6188, %v6188
        %v6221 = vmul.f32 %v6189, %v6189
        %v6222 = vmul.f32 %v6190, %v6190
        %6223 = vadd.xlane.f32.xlu0 %v6191
        %v6224 = vpop.xlane.xlu0 %6223
        %6225 = vadd.xlane.f32.xlu0 %v6192
        %v6226 = vpop.xlane.xlu0 %6225
        %6227 = vadd.xlane.f32.xlu0 %v6193
        %v6228 = vpop.xlane.xlu0 %6227
        %6229 = vadd.xlane.f32.xlu0 %v6194
        %v6230 = vpop.xlane.xlu0 %6229
        %6231 = vadd.xlane.f32.xlu0 %v6195
        %v6232 = vpop.xlane.xlu0 %6231
        %6233 = vadd.xlane.f32.xlu0 %v6196
        %v6234 = vpop.xlane.xlu0 %6233
        %6235 = vadd.xlane.f32.xlu0 %v6197
        %v6236 = vpop.xlane.xlu0 %6235
        %6237 = vadd.xlane.f32.xlu0 %v6198
        %v6238 = vpop.xlane.xlu0 %6237
        %6239 = vadd.xlane.f32.xlu0 %v6199
        %v6240 = vpop.xlane.xlu0 %6239
        %6241 = vadd.xlane.f32.xlu0 %v6200
        %v6242 = vpop.xlane.xlu0 %6241
        %6243 = vadd.xlane.f32.xlu0 %v6201
        %v6244 = vpop.xlane.xlu0 %6243
        %6245 = vadd.xlane.f32.xlu0 %v6202
        %v6246 = vpop.xlane.xlu0 %6245
        %6247 = vadd.xlane.f32.xlu0 %v6203
        %v6248 = vpop.xlane.xlu0 %6247
        %6249 = vadd.xlane.f32.xlu0 %v6204
        %v6250 = vpop.xlane.xlu0 %6249
        %6251 = vadd.xlane.f32.xlu0 %v6205
        %v6252 = vpop.xlane.xlu0 %6251
        %6253 = vadd.xlane.f32.xlu0 %v6206
        %v6254 = vpop.xlane.xlu0 %6253
        %6255 = vadd.xlane.f32.xlu0 %v6207
        %v6256 = vpop.xlane.xlu0 %6255
        %6257 = vadd.xlane.f32.xlu0 %v6208
        %v6258 = vpop.xlane.xlu0 %6257
        %6259 = vadd.xlane.f32.xlu0 %v6209
        %v6260 = vpop.xlane.xlu0 %6259
        %6261 = vadd.xlane.f32.xlu0 %v6210
        %v6262 = vpop.xlane.xlu0 %6261
        %6263 = vadd.xlane.f32.xlu0 %v6211
        %v6264 = vpop.xlane.xlu0 %6263
        %6265 = vadd.xlane.f32.xlu0 %v6212
        %v6266 = vpop.xlane.xlu0 %6265
        %6267 = vadd.xlane.f32.xlu0 %v6213
        %v6268 = vpop.xlane.xlu0 %6267
        %6269 = vadd.xlane.f32.xlu0 %v6214
        %v6270 = vpop.xlane.xlu0 %6269
        %6271 = vadd.xlane.f32.xlu0 %v6215
        %v6272 = vpop.xlane.xlu0 %6271
        %6273 = vadd.xlane.f32.xlu0 %v6216
        %v6274 = vpop.xlane.xlu0 %6273
        %6275 = vadd.xlane.f32.xlu0 %v6217
        %v6276 = vpop.xlane.xlu0 %6275
        %6277 = vadd.xlane.f32.xlu0 %v6218
        %v6278 = vpop.xlane.xlu0 %6277
        %6279 = vadd.xlane.f32.xlu0 %v6219
        %v6280 = vpop.xlane.xlu0 %6279
        %6281 = vadd.xlane.f32.xlu0 %v6220
        %v6282 = vpop.xlane.xlu0 %6281
        %6283 = vadd.xlane.f32.xlu0 %v6221
        %v6284 = vpop.xlane.xlu0 %6283
        %6285 = vadd.xlane.f32.xlu0 %v6222
        %v6286 = vpop.xlane.xlu0 %6285
        %v6287 = vmul.f32 %v6224, %v6126
        %v6288 = vmul.f32 %v6226, %v6126
        %v6289 = vmul.f32 %v6228, %v6126
        %v6290 = vmul.f32 %v6230, %v6126
        %v6291 = vmul.f32 %v6232, %v6126
        %v6292 = vmul.f32 %v6234, %v6126
        %v6293 = vmul.f32 %v6236, %v6126
        %v6294 = vmul.f32 %v6238, %v6126
        %v6295 = vmul.f32 %v6240, %v6126
        %v6296 = vmul.f32 %v6242, %v6126
        %v6297 = vmul.f32 %v6244, %v6126
        %v6298 = vmul.f32 %v6246, %v6126
        %v6299 = vmul.f32 %v6248, %v6126
        %v6300 = vmul.f32 %v6250, %v6126
        %v6301 = vmul.f32 %v6252, %v6126
        %v6302 = vmul.f32 %v6254, %v6126
        %v6303 = vmul.f32 %v6256, %v6126
        %v6304 = vmul.f32 %v6258, %v6126
        %v6305 = vmul.f32 %v6260, %v6126
        %v6306 = vmul.f32 %v6262, %v6126
        %v6307 = vmul.f32 %v6264, %v6126
        %v6308 = vmul.f32 %v6266, %v6126
        %v6309 = vmul.f32 %v6268, %v6126
        %v6310 = vmul.f32 %v6270, %v6126
        %v6311 = vmul.f32 %v6272, %v6126
        %v6312 = vmul.f32 %v6274, %v6126
        %v6313 = vmul.f32 %v6276, %v6126
        %v6314 = vmul.f32 %v6278, %v6126
        %v6315 = vmul.f32 %v6280, %v6126
        %v6316 = vmul.f32 %v6282, %v6126
        %v6317 = vmul.f32 %v6284, %v6126
        %v6318 = vmul.f32 %v6286, %v6126
        %v6319 = vadd.f32 %v6287, 1e-05
        %v6320 = vadd.f32 %v6288, 1e-05
        %v6321 = vadd.f32 %v6289, 1e-05
        %v6322 = vadd.f32 %v6290, 1e-05
        %v6323 = vadd.f32 %v6291, 1e-05
        %v6324 = vadd.f32 %v6292, 1e-05
        %v6325 = vadd.f32 %v6293, 1e-05
        %v6326 = vadd.f32 %v6294, 1e-05
        %v6327 = vadd.f32 %v6295, 1e-05
        %v6328 = vadd.f32 %v6296, 1e-05
        %v6329 = vadd.f32 %v6297, 1e-05
        %v6330 = vadd.f32 %v6298, 1e-05
        %v6331 = vadd.f32 %v6299, 1e-05
        %v6332 = vadd.f32 %v6300, 1e-05
        %v6333 = vadd.f32 %v6301, 1e-05
        %v6334 = vadd.f32 %v6302, 1e-05
        %v6335 = vadd.f32 %v6303, 1e-05
        %v6336 = vadd.f32 %v6304, 1e-05
        %v6337 = vadd.f32 %v6305, 1e-05
        %v6338 = vadd.f32 %v6306, 1e-05
        %v6339 = vadd.f32 %v6307, 1e-05
        %v6340 = vadd.f32 %v6308, 1e-05
        %v6341 = vadd.f32 %v6309, 1e-05
        %v6342 = vadd.f32 %v6310, 1e-05
        %v6343 = vadd.f32 %v6311, 1e-05
        %v6344 = vadd.f32 %v6312, 1e-05
        %v6345 = vadd.f32 %v6313, 1e-05
        %v6346 = vadd.f32 %v6314, 1e-05
        %v6347 = vadd.f32 %v6315, 1e-05
        %v6348 = vadd.f32 %v6316, 1e-05
        %v6349 = vadd.f32 %v6317, 1e-05
        %v6350 = vadd.f32 %v6318, 1e-05
        %v6351 = vrsqrt.pop %v6319
        %v6352 = vrsqrt.pop %v6320
        %v6353 = vrsqrt.pop %v6321
        %v6354 = vrsqrt.pop %v6322
        %v6355 = vrsqrt.pop %v6323
        %v6356 = vrsqrt.pop %v6324
        %v6357 = vrsqrt.pop %v6325
        %v6358 = vrsqrt.pop %v6326
        %v6359 = vrsqrt.pop %v6327
        %v6360 = vrsqrt.pop %v6328
        %v6361 = vrsqrt.pop %v6329
        %v6362 = vrsqrt.pop %v6330
        %v6363 = vrsqrt.pop %v6331
        %v6364 = vrsqrt.pop %v6332
        %v6365 = vrsqrt.pop %v6333
        %v6366 = vrsqrt.pop %v6334
        %v6367 = vrsqrt.pop %v6335
        %v6368 = vrsqrt.pop %v6336
        %v6369 = vrsqrt.pop %v6337
        %v6370 = vrsqrt.pop %v6338
        %v6371 = vrsqrt.pop %v6339
        %v6372 = vrsqrt.pop %v6340
        %v6373 = vrsqrt.pop %v6341
        %v6374 = vrsqrt.pop %v6342
        %v6375 = vrsqrt.pop %v6343
        %v6376 = vrsqrt.pop %v6344
        %v6377 = vrsqrt.pop %v6345
        %v6378 = vrsqrt.pop %v6346
        %v6379 = vrsqrt.pop %v6347
        %v6380 = vrsqrt.pop %v6348
        %v6381 = vrsqrt.pop %v6349
        %v6382 = vrsqrt.pop %v6350
        %v6383 = vmul.f32 %v6159, %v6351
        %v6384 = vmul.f32 %v6160, %v6352
        %v6385 = vmul.f32 %v6161, %v6353
        %v6386 = vmul.f32 %v6162, %v6354
        %v6387 = vmul.f32 %v6163, %v6355
        %v6388 = vmul.f32 %v6164, %v6356
        %v6389 = vmul.f32 %v6165, %v6357
        %v6390 = vmul.f32 %v6166, %v6358
        %v6391 = vmul.f32 %v6167, %v6359
        %v6392 = vmul.f32 %v6168, %v6360
        %v6393 = vmul.f32 %v6169, %v6361
        %v6394 = vmul.f32 %v6170, %v6362
        %v6395 = vmul.f32 %v6171, %v6363
        %v6396 = vmul.f32 %v6172, %v6364
        %v6397 = vmul.f32 %v6173, %v6365
        %v6398 = vmul.f32 %v6174, %v6366
        %v6399 = vmul.f32 %v6175, %v6367
        %v6400 = vmul.f32 %v6176, %v6368
        %v6401 = vmul.f32 %v6177, %v6369
        %v6402 = vmul.f32 %v6178, %v6370
        %v6403 = vmul.f32 %v6179, %v6371
        %v6404 = vmul.f32 %v6180, %v6372
        %v6405 = vmul.f32 %v6181, %v6373
        %v6406 = vmul.f32 %v6182, %v6374
        %v6407 = vmul.f32 %v6183, %v6375
        %v6408 = vmul.f32 %v6184, %v6376
        %v6409 = vmul.f32 %v6185, %v6377
        %v6410 = vmul.f32 %v6186, %v6378
        %v6411 = vmul.f32 %v6187, %v6379
        %v6412 = vmul.f32 %v6188, %v6380
        %v6413 = vmul.f32 %v6189, %v6381
        %v6414 = vmul.f32 %v6190, %v6382
        %v6415 = vlaneseq
        %v6416 = vshrl.u32 %v6415, 7
        %v6417 = vsub.s32 1, %v6416
        %v6418 = vrot.slane %v4580, %v6417
        %v6419 = vmul.f32 %v6383, %v6418
        %v6420 = vmul.f32 %v6384, %v6418
        %v6421 = vmul.f32 %v6385, %v6418
        %v6422 = vmul.f32 %v6386, %v6418
        %v6423 = vmul.f32 %v6387, %v6418
        %v6424 = vmul.f32 %v6388, %v6418
        %v6425 = vmul.f32 %v6389, %v6418
        %v6426 = vmul.f32 %v6390, %v6418
        %v6427 = vmul.f32 %v6391, %v6418
        %v6428 = vmul.f32 %v6392, %v6418
        %v6429 = vmul.f32 %v6393, %v6418
        %v6430 = vmul.f32 %v6394, %v6418
        %v6431 = vmul.f32 %v6395, %v6418
        %v6432 = vmul.f32 %v6396, %v6418
        %v6433 = vmul.f32 %v6397, %v6418
        %v6434 = vmul.f32 %v6398, %v6418
        %v6435 = vmul.f32 %v6399, %v6418
        %v6436 = vmul.f32 %v6400, %v6418
        %v6437 = vmul.f32 %v6401, %v6418
        %v6438 = vmul.f32 %v6402, %v6418
        %v6439 = vmul.f32 %v6403, %v6418
        %v6440 = vmul.f32 %v6404, %v6418
        %v6441 = vmul.f32 %v6405, %v6418
        %v6442 = vmul.f32 %v6406, %v6418
        %v6443 = vmul.f32 %v6407, %v6418
        %v6444 = vmul.f32 %v6408, %v6418
        %v6445 = vmul.f32 %v6409, %v6418
        %v6446 = vmul.f32 %v6410, %v6418
        %v6447 = vmul.f32 %v6411, %v6418
        %v6448 = vmul.f32 %v6412, %v6418
        %v6449 = vmul.f32 %v6413, %v6418
        %v6450 = vmul.f32 %v6414, %v6418
        %v6451 = vlaneseq
        %v6452 = vshrl.u32 %v6451, 7
        %v6453 = vsub.s32 2, %v6452
        %v6454 = vrot.slane %v4580, %v6453
        %v6455 = vadd.f32 %v6419, %v6454
        %v6456 = vadd.f32 %v6420, %v6454
        %v6457 = vadd.f32 %v6421, %v6454
        %v6458 = vadd.f32 %v6422, %v6454
        %v6459 = vadd.f32 %v6423, %v6454
        %v6460 = vadd.f32 %v6424, %v6454
        %v6461 = vadd.f32 %v6425, %v6454
        %v6462 = vadd.f32 %v6426, %v6454
        %v6463 = vadd.f32 %v6427, %v6454
        %v6464 = vadd.f32 %v6428, %v6454
        %v6465 = vadd.f32 %v6429, %v6454
        %v6466 = vadd.f32 %v6430, %v6454
        %v6467 = vadd.f32 %v6431, %v6454
        %v6468 = vadd.f32 %v6432, %v6454
        %v6469 = vadd.f32 %v6433, %v6454
        %v6470 = vadd.f32 %v6434, %v6454
        %v6471 = vadd.f32 %v6435, %v6454
        %v6472 = vadd.f32 %v6436, %v6454
        %v6473 = vadd.f32 %v6437, %v6454
        %v6474 = vadd.f32 %v6438, %v6454
        %v6475 = vadd.f32 %v6439, %v6454
        %v6476 = vadd.f32 %v6440, %v6454
        %v6477 = vadd.f32 %v6441, %v6454
        %v6478 = vadd.f32 %v6442, %v6454
        %v6479 = vadd.f32 %v6443, %v6454
        %v6480 = vadd.f32 %v6444, %v6454
        %v6481 = vadd.f32 %v6445, %v6454
        %v6482 = vadd.f32 %v6446, %v6454
        %v6483 = vadd.f32 %v6447, %v6454
        %v6484 = vadd.f32 %v6448, %v6454
        %v6485 = vadd.f32 %v6449, %v6454
        %v6486 = vadd.f32 %v6450, %v6454
        %6487 = vst [vmem:[%s497] sm:$0xff] %v6455
        %6488 = vst [vmem:[%s497 + $0x8] sm:$0xff] %v6456
        %6489 = vst [vmem:[%s497 + $0x10] sm:$0xff] %v6457
        %6490 = vst [vmem:[%s497 + $0x18] sm:$0xff] %v6458
        %6491 = vst [vmem:[%s497 + $0x20] sm:$0xff] %v6459
        %6492 = vst [vmem:[%s497 + $0x28] sm:$0xff] %v6460
        %6493 = vst [vmem:[%s497 + $0x30] sm:$0xff] %v6461
        %6494 = vst [vmem:[%s497 + $0x38] sm:$0xff] %v6462
        %6495 = vst [vmem:[%s497 + $0x40] sm:$0xff] %v6463
        %6496 = vst [vmem:[%s497 + $0x48] sm:$0xff] %v6464
        %6497 = vst [vmem:[%s497 + $0x50] sm:$0xff] %v6465
        %6498 = vst [vmem:[%s497 + $0x58] sm:$0xff] %v6466
        %6499 = vst [vmem:[%s497 + $0x60] sm:$0xff] %v6467
        %6500 = vst [vmem:[%s497 + $0x68] sm:$0xff] %v6468
        %6501 = vst [vmem:[%s497 + $0x70] sm:$0xff] %v6469
        %6502 = vst [vmem:[%s497 + $0x78] sm:$0xff] %v6470
        %6503 = vst [vmem:[%s497 + $0x80] sm:$0xff] %v6471
        %6504 = vst [vmem:[%s497 + $0x88] sm:$0xff] %v6472
        %6505 = vst [vmem:[%s497 + $0x90] sm:$0xff] %v6473
        %6506 = vst [vmem:[%s497 + $0x98] sm:$0xff] %v6474
        %6507 = vst [vmem:[%s497 + $0xa0] sm:$0xff] %v6475
        %6508 = vst [vmem:[%s497 + $0xa8] sm:$0xff] %v6476
        %6509 = vst [vmem:[%s497 + $0xb0] sm:$0xff] %v6477
        %6510 = vst [vmem:[%s497 + $0xb8] sm:$0xff] %v6478
        %6511 = vst [vmem:[%s497 + $0xc0] sm:$0xff] %v6479
        %6512 = vst [vmem:[%s497 + $0xc8] sm:$0xff] %v6480
        %6513 = vst [vmem:[%s497 + $0xd0] sm:$0xff] %v6481
        %6514 = vst [vmem:[%s497 + $0xd8] sm:$0xff] %v6482
        %6515 = vst [vmem:[%s497 + $0xe0] sm:$0xff] %v6483
        %6516 = vst [vmem:[%s497 + $0xe8] sm:$0xff] %v6484
        %6517 = vst [vmem:[%s497 + $0xf0] sm:$0xff] %v6485
        %6518 = vst [vmem:[%s497 + $0xf8] sm:$0xff] %v6486
        %s6519 = sand.u32 %s305, 1
        %s6520 = scalar_lea.sflag [#allocation4], %s6519
        %s6521 = sand.u32 %s305, 1
        %s6522 = smul.addr %s6521, 256
        %s6523 = scalar_lea.vmem [#allocation7], %s6522
        %s6524 = smul.u32 32, %s30
        %p6525 = scmp.lt.s32.totalorder %s6524, 63
        %s6526 = scalar_select %p6525, %s6524, 63
        %s6527 = smul.addr %s6526, 8
        %s6528 = scalar_lea.vmem %s13, %s6527
        // Predicated region
        $region77: #{tpu_custom_call.1} parent=67 // pred_check
          %p6529 = pneg %p315
        $region78: #{tpu_custom_call.1} parent=67 // pred_check_branch
          %6531 = sbr.rel (%p6529) target = $region80
        $region79: #{tpu_custom_call.1} parent=67 // pred_region
          %s6532 = smul.u32 32, %s30
          %s6534 = ssub.s32 4096, 4096
          %6535 = vsyncadd %s6520, %s6534
          %s6536 = smul.addr %s6532, 128
          %s6537 = scalar_lea.hbm %s12, %s6536
          %s6538 = sshll.u32 %s6523, 4
          %s6539 = int_to_ptr.vmem [resolvable:$true] %s6538
          %6544 = dma.vmem_to_hbm [thread:$0]  %s6539, 4096, %s6537, %s6520, 128, 128, 8
        $region80: #{tpu_custom_call.1} parent=67 // pred_fallthru
          _
        // Predicated region
        $region81: #{tpu_custom_call.1} parent=67 // pred_check
          %p6545 = pneg %p341
        $region82: #{tpu_custom_call.1} parent=67 // pred_check_branch
          %6547 = sbr.rel (%p6545) target = $region84
        $region83: #{tpu_custom_call.1} parent=67 // pred_region
          %s6548 = smul.u32 32, %s30
        $region84: #{tpu_custom_call.1} parent=67 // pred_fallthru
          _
      $region68: #{tpu_custom_call.1} parent=5 // pred_fallthru
        _
      %p6549 = scmp.le.s32.totalorder 2, %s25
      // Predicated region
      $region85: #{tpu_custom_call.1} parent=5 // pred_check
        %p6550 = pneg %p6549
      $region86: #{tpu_custom_call.1} parent=5 // pred_check_branch
        %6552 = sbr.rel (%p6550) target = $region88
      $region87: #{tpu_custom_call.1} parent=5 // pred_region
        %s6553 = ssub.s32 %s25, 2
        // Predicated region
        $region89: #{tpu_custom_call.1} parent=87 // pred_check
          %p6554 = pneg %p321
        $region90: #{tpu_custom_call.1} parent=87 // pred_check_branch
          %6556 = sbr.rel (%p6554) target = $region92
        $region91: #{tpu_custom_call.1} parent=87 // pred_region
          %s6557 = sand.u32 %s306, 1
          %s6558 = scalar_lea.sflag [#allocation4], %s6557
          %s6559 = sand.u32 %s306, 1
          %s6560 = smul.addr %s6559, 256
          %s6561 = scalar_lea.vmem [#allocation7], %s6560
          %6562 = dma.done %s6558, 4096
        $region92: #{tpu_custom_call.1} parent=87 // pred_fallthru
          _
        // Predicated region
        $region93: #{tpu_custom_call.1} parent=87 // pred_check
          %p6563 = pneg %p347
        $region94: #{tpu_custom_call.1} parent=87 // pred_check_branch
          %6565 = sbr.rel (%p6563) target = $region96
        $region95: #{tpu_custom_call.1} parent=87 // pred_region
          %s6566 = smul.u32 32, %s31
          %p6567 = scmp.lt.s32.totalorder %s6566, 63
          %s6568 = scalar_select %p6567, %s6566, 63
          %s6569 = smul.addr %s6568, 8
          %s6570 = scalar_lea.vmem %s13, %s6569
        $region96: #{tpu_custom_call.1} parent=87 // pred_fallthru
          _
      $region88: #{tpu_custom_call.1} parent=5 // pred_fallthru
        _
    $region6: #{tpu_custom_call.1} parent=1 // loop_footer
      %s29 = sadd.s32 1, %s25
    $region7: #{tpu_custom_call.1} parent=1 // loop_footer_branch
      %24 = sbr.rel target = $region3
    $region8: #{tpu_custom_call.1} parent=1 // loop_exit
      _
    %6571 = vsyncpa [#allocation3], 1
    %s6572 = scalar_lea.sflag [#allocation3], 1
    %6573 = vsyncpa %s6572, 1
    %6574 = vsyncpa [#allocation6], 1
    %6575 = vsyncpa [#allocation4], 1
    %s6576 = scalar_lea.sflag [#allocation4], 1
    %6577 = vsyncpa %s6576, 1

</llo_original>
